<compile_context>
chip_gen: v6e
topology: v6e:2x2x1
jax: 0.10.0
libtpu: 0.0.40
codegen_flags: <defaults>
</compile_context>

<pallas_src>
import functools

import jax
import jax.numpy as jnp
from jax import lax
from jax.experimental import pallas as pl
from jax.experimental.pallas import tpu as pltpu

NEG_INF = -10000000.0


def _round_up(x, m):
    return (x + m - 1) // m * m


def _sigmoid(x):
    # explicit form to keep the lowering trivially portable
    return 1.0 / (1.0 + jnp.exp(-x))


# ----------------------------------------------------------------------------
# Generic row-tiled linear (used for the small classifier layers)
# ----------------------------------------------------------------------------
def _linear_kernel(act, x_ref, w_ref, b_ref, o_ref):
    y = jnp.dot(x_ref[...], w_ref[...], preferred_element_type=jnp.float32)
    y = y + b_ref[...]
    if act == "relu":
        y = jnp.maximum(y, 0.0)
    elif act == "tanh":
        y = jnp.tanh(y)
    o_ref[...] = y


def linear(x, w_t, b, act=None, block_rows=256):
    """y = act(x @ w_t + b); rows tiled over a parallel grid."""
    n, din = x.shape
    dout = w_t.shape[1]
    tm = min(block_rows, _round_up(n, 8))
    n_pad = _round_up(n, tm)
    if n_pad != n:
        x = jnp.pad(x, ((0, n_pad - n), (0, 0)))
    out = pl.pallas_call(
        functools.partial(_linear_kernel, act),
        out_shape=jax.ShapeDtypeStruct((n_pad, dout), jnp.float32),
        grid=(n_pad // tm,),
        in_specs=[pl.BlockSpec((tm, din), lambda i: (i, 0)),
                  pl.BlockSpec((din, dout), lambda i: (0, 0)),
                  pl.BlockSpec((1, dout), lambda i: (0, 0))],
        out_specs=pl.BlockSpec((tm, dout), lambda i: (i, 0)),
        compiler_params=pltpu.CompilerParams(
            dimension_semantics=("parallel",)),
    )(x, w_t, b.reshape(1, dout))
    return out[:n]


# ----------------------------------------------------------------------------
# Fused enhancement-concat + mapping linear
#   relu([e, a, e-a, e*a] @ W + b) == relu(e@(W0+W2) + a@(W1-W2) + (e*a)@W3 + b)
# ----------------------------------------------------------------------------
def _enhance_map_kernel(e_ref, a_ref, wa_ref, wb_ref, wc_ref, b_ref, o_ref):
    e = e_ref[...]
    a = a_ref[...]
    y = jnp.dot(e, wa_ref[...], preferred_element_type=jnp.float32)
    y = y + jnp.dot(a, wb_ref[...], preferred_element_type=jnp.float32)
    y = y + jnp.dot(e * a, wc_ref[...], preferred_element_type=jnp.float32)
    o_ref[...] = jnp.maximum(y + b_ref[...], 0.0)


def enhance_and_map(enc, attn, wa_t, wb_t, wc_t, bias, block_rows=256):
    n, s, d2 = enc.shape
    h = wa_t.shape[1]
    rows = n * s
    e = enc.reshape(rows, d2)
    a = attn.reshape(rows, d2)
    tm = min(block_rows, _round_up(rows, 8))
    rows_p = _round_up(rows, tm)
    if rows_p != rows:
        e = jnp.pad(e, ((0, rows_p - rows), (0, 0)))
        a = jnp.pad(a, ((0, rows_p - rows), (0, 0)))
    out = pl.pallas_call(
        _enhance_map_kernel,
        out_shape=jax.ShapeDtypeStruct((rows_p, h), jnp.float32),
        grid=(rows_p // tm,),
        in_specs=[pl.BlockSpec((tm, d2), lambda i: (i, 0)),
                  pl.BlockSpec((tm, d2), lambda i: (i, 0)),
                  pl.BlockSpec((d2, h), lambda i: (0, 0)),
                  pl.BlockSpec((d2, h), lambda i: (0, 0)),
                  pl.BlockSpec((d2, h), lambda i: (0, 0)),
                  pl.BlockSpec((1, h), lambda i: (0, 0))],
        out_specs=pl.BlockSpec((tm, h), lambda i: (i, 0)),
        compiler_params=pltpu.CompilerParams(
            dimension_semantics=("parallel",)),
    )(e, a, wa_t, wb_t, wc_t, bias.reshape(1, h))
    return out[:rows].reshape(n, s, h)


# ----------------------------------------------------------------------------
# BiLSTM:  gate pre-activation kernel (writes time-major) + fused recurrence
# ----------------------------------------------------------------------------
def _xp_kernel(x_ref, xr_ref, wf_ref, wb_ref, b_ref, o_ref):
    # x/xr block: (1, N, Din); output block: (1, N, 8H) time-major.
    h4 = wf_ref.shape[1]
    o_ref[0, :, :h4] = (jnp.dot(x_ref[0], wf_ref[...],
                                preferred_element_type=jnp.float32)
                        + b_ref[:, :h4])
    o_ref[0, :, h4:] = (jnp.dot(xr_ref[0], wb_ref[...],
                                preferred_element_type=jnp.float32)
                        + b_ref[:, h4:])


def xp_project(x_tm, xr_tm, p):
    """Both-direction gate pre-activations, time-major: (S, N, Din) -> (S, N, 8H)."""
    s, n, din = x_tm.shape
    h8 = p["bias"].shape[1]
    h4 = h8 // 2
    return pl.pallas_call(
        _xp_kernel,
        out_shape=jax.ShapeDtypeStruct((s, n, h8), jnp.float32),
        grid=(s,),
        in_specs=[pl.BlockSpec((1, n, din), lambda t: (t, 0, 0)),
                  pl.BlockSpec((1, n, din), lambda t: (t, 0, 0)),
                  pl.BlockSpec((din, h4), lambda t: (0, 0)),
                  pl.BlockSpec((din, h4), lambda t: (0, 0)),
                  pl.BlockSpec((1, h8), lambda t: (0, 0))],
        out_specs=pl.BlockSpec((1, n, h8), lambda t: (t, 0, 0)),
        compiler_params=pltpu.CompilerParams(
            dimension_semantics=("parallel",)),
    )(x_tm, xr_tm, p["w_in_f"], p["w_in_b"], p["bias"])


def _lstm_step_kernel(h, xp_ref, w_ref, m_ref, o_ref, h_sc, c_sc):
    # Per-grid-step recurrence; both directions fused via block-diag W_hh.
    # Gate column layout (per direction): [i, f, o, g].
    t = pl.program_id(0)

    @pl.when(t == 0)
    def _():
        h_sc[...] = jnp.zeros_like(h_sc)
        c_sc[...] = jnp.zeros_like(c_sc)

    xp = xp_ref[0]                       # (N, 8H)
    m = m_ref[0]                         # (N, 1)
    h_prev = h_sc[...]                   # (N, 2H)
    c_prev = c_sc[...]
    gates = xp + jnp.dot(h_prev, w_ref[...],
                         preferred_element_type=jnp.float32)     # (N, 8H)

    def cell(g4, c_p):
        ifo = _sigmoid(g4[:, :3 * h])
        g_new = jnp.tanh(g4[:, 3 * h:])
        c_n = ifo[:, h:2 * h] * c_p + ifo[:, :h] * g_new
        h_n = ifo[:, 2 * h:3 * h] * jnp.tanh(c_n)
        return h_n, c_n

    h_f, c_f = cell(gates[:, :4 * h], c_prev[:, :h])
    h_b, c_b = cell(gates[:, 4 * h:], c_prev[:, h:])
    h_new = jnp.concatenate([h_f, h_b], axis=1)
    c_new = jnp.concatenate([c_f, c_b], axis=1)

    keep = m > 0.0                       # padded steps: freeze state, zero out
    h_sc[...] = jnp.where(keep, h_new, h_prev)
    c_sc[...] = jnp.where(keep, c_new, c_prev)
    o_ref[0] = jnp.where(keep, h_new, 0.0)


def lstm_scan(xp_tm, w_hh_bd, mask_tm):
    s, n, h8 = xp_tm.shape
    h = h8 // 8
    return pl.pallas_call(
        functools.partial(_lstm_step_kernel, h),
        out_shape=jax.ShapeDtypeStruct((s, n, 2 * h), jnp.float32),
        grid=(s,),
        in_specs=[pl.BlockSpec((1, n, h8), lambda t: (t, 0, 0)),
                  pl.BlockSpec((2 * h, h8), lambda t: (0, 0)),
                  pl.BlockSpec((1, n, 1), lambda t: (t, 0, 0))],
        out_specs=pl.BlockSpec((1, n, 2 * h), lambda t: (t, 0, 0)),
        scratch_shapes=[pltpu.VMEM((n, 2 * h), jnp.float32),
                        pltpu.VMEM((n, 2 * h), jnp.float32)],
        compiler_params=pltpu.CompilerParams(
            dimension_semantics=("arbitrary",)),
    )(xp_tm, w_hh_bd, mask_tm)


def reverse_within_length(x, lengths):
    """Reverse (N, S, D) along time but only within each valid length."""
    s = x.shape[1]
    pos = jnp.arange(s)[None, :]
    rev_idx = jnp.where(pos < lengths[:, None], lengths[:, None] - 1 - pos, pos)
    return jnp.take_along_axis(x, rev_idx[:, :, None], axis=1)


def bilstm(x, lengths, mask, p):
    """Fused bidirectional LSTM over a padded batch.  x: (N, S, Din) -> (N, S, 2H)."""
    h = p["w_hh_bd"].shape[0] // 2
    x_rev = reverse_within_length(x, lengths)
    x_tm = jnp.transpose(x, (1, 0, 2))
    xr_tm = jnp.transpose(x_rev, (1, 0, 2))
    xp_tm = xp_project(x_tm, xr_tm, p)                    # (S, N, 8H) time-major
    mask_tm = jnp.transpose(mask, (1, 0))[:, :, None]     # (S, N, 1)
    out_tm = lstm_scan(xp_tm, p["w_hh_bd"], mask_tm)      # (S, N, 2H)
    out = jnp.transpose(out_tm, (1, 0, 2))
    fwd = out[:, :, :h]
    bwd = reverse_within_length(out[:, :, h:], lengths)
    return jnp.concatenate([fwd, bwd], axis=-1)           # (N, S, 2H)


# ----------------------------------------------------------------------------
# Cross-attention (score matrix computed once, batch-parallel grid)
# ----------------------------------------------------------------------------
def _attention_kernel(p_ref, h_ref, pmr_ref, pmc_ref, hmr_ref, hmc_ref,
                      ap_ref, ah_ref):
    p = p_ref[0]                          # (Sp, D)
    hh = h_ref[0]                         # (Sh, D)
    pm_row = pmr_ref[0]                   # (1, Sp)
    pm_col = pmc_ref[0]                   # (Sp, 1)
    hm_row = hmr_ref[0]                   # (1, Sh)
    hm_col = hmc_ref[0]                   # (Sh, 1)

    # single score matmul; second direction reuses its transpose
    s = lax.dot_general(p, hh, (((1,), (1,)), ((), ())),
                        preferred_element_type=jnp.float32)       # (Sp, Sh)

    s_ph = s + (1.0 - hm_row) * NEG_INF
    s_ph = s_ph - jnp.max(s_ph, axis=1, keepdims=True)
    e_ph = jnp.exp(s_ph)
    a_ph = e_ph / jnp.sum(e_ph, axis=1, keepdims=True)

    s_hp = s.T + (1.0 - pm_row) * NEG_INF
    s_hp = s_hp - jnp.max(s_hp, axis=1, keepdims=True)
    e_hp = jnp.exp(s_hp)
    a_hp = e_hp / jnp.sum(e_hp, axis=1, keepdims=True)

    ap_ref[0] = jnp.dot(a_ph, hh, preferred_element_type=jnp.float32) * pm_col
    ah_ref[0] = jnp.dot(a_hp, p, preferred_element_type=jnp.float32) * hm_col


def attention(enc_p, enc_h, p_mask, h_mask):
    b, sp, d = enc_p.shape
    sh = enc_h.shape[1]
    return pl.pallas_call(
        _attention_kernel,
        out_shape=(jax.ShapeDtypeStruct((b, sp, d), jnp.float32),
                   jax.ShapeDtypeStruct((b, sh, d), jnp.float32)),
        grid=(b,),
        in_specs=[pl.BlockSpec((1, sp, d), lambda i: (i, 0, 0)),
                  pl.BlockSpec((1, sh, d), lambda i: (i, 0, 0)),
                  pl.BlockSpec((1, 1, sp), lambda i: (i, 0, 0)),
                  pl.BlockSpec((1, sp, 1), lambda i: (i, 0, 0)),
                  pl.BlockSpec((1, 1, sh), lambda i: (i, 0, 0)),
                  pl.BlockSpec((1, sh, 1), lambda i: (i, 0, 0))],
        out_specs=(pl.BlockSpec((1, sp, d), lambda i: (i, 0, 0)),
                   pl.BlockSpec((1, sh, d), lambda i: (i, 0, 0))),
        compiler_params=pltpu.CompilerParams(
            dimension_semantics=("parallel",)),
    )(enc_p, enc_h,
      p_mask[:, None, :], p_mask[:, :, None],
      h_mask[:, None, :], h_mask[:, :, None])


# ----------------------------------------------------------------------------
# Masked mean + max pooling (batch-parallel grid, halves written directly)
# ----------------------------------------------------------------------------
def _pool_kernel(v_ref, m_ref, o_ref):
    d = v_ref.shape[2]
    v = v_ref[0]                          # (S, D)
    m = m_ref[0]                          # (S, 1)
    cnt = jnp.maximum(jnp.sum(m, axis=0, keepdims=True), 1.0)     # (1, 1)
    ave = jnp.sum(v * m, axis=0, keepdims=True) / cnt             # (1, D)
    vmax = jnp.max(jnp.where(m > 0.0, v, NEG_INF), axis=0, keepdims=True)
    o_ref[0, :, :d] = ave
    o_ref[0, :, d:] = vmax


def masked_pool(v, mask):
    n, s, d = v.shape
    out = pl.pallas_call(
        _pool_kernel,
        out_shape=jax.ShapeDtypeStruct((n, 1, 2 * d), jnp.float32),
        grid=(n,),
        in_specs=[pl.BlockSpec((1, s, d), lambda i: (i, 0, 0)),
                  pl.BlockSpec((1, s, 1), lambda i: (i, 0, 0))],
        out_specs=pl.BlockSpec((1, 1, 2 * d), lambda i: (i, 0, 0)),
        compiler_params=pltpu.CompilerParams(
            dimension_semantics=("parallel",)),
    )(v, mask[:, :, None])
    return out[:, 0, :]                   # (N, 2D) = [masked-mean, masked-max]


# ----------------------------------------------------------------------------
# ESIM forward (eval mode: dropout = identity)
# ----------------------------------------------------------------------------
def esim_forward(params, premise_seq, premise_len, hyp_seq, hyp_len):
    b, sp = premise_seq.shape
    sh = hyp_seq.shape[1]
    s = max(sp, sh)

    p_mask = (jnp.arange(sp)[None, :] < premise_len[:, None]).astype(jnp.float32)
    h_mask = (jnp.arange(sh)[None, :] < hyp_len[:, None]).astype(jnp.float32)

    # embedding lookup (data-dependent gather stays in XLA glue)
    prem = params["embedding"][premise_seq]                 # (B, Sp, E)
    hyp = params["embedding"][hyp_seq]                      # (B, Sh, E)

    # stack premise + hypothesis along batch: one encoder/composition launch
    prem_p = jnp.pad(prem, ((0, 0), (0, s - sp), (0, 0)))
    hyp_p = jnp.pad(hyp, ((0, 0), (0, s - sh), (0, 0)))
    x = jnp.concatenate([prem_p, hyp_p], axis=0)            # (2B, S, E)
    lengths = jnp.concatenate([premise_len, hyp_len], axis=0)
    mask = (jnp.arange(s)[None, :] < lengths[:, None]).astype(jnp.float32)

    enc = bilstm(x, lengths, mask, params["encoder"])       # (2B, S, 2H)
    enc_p = enc[:b, :sp]
    enc_h = enc[b:, :sh]

    attn_p, attn_h = attention(enc_p, enc_h, p_mask, h_mask)
    attn = jnp.concatenate(
        [jnp.pad(attn_p, ((0, 0), (0, s - sp), (0, 0))),
         jnp.pad(attn_h, ((0, 0), (0, s - sh), (0, 0)))], axis=0)   # (2B, S, 2H)

    # enhancement concat fused with the mapping layer (never materialised)
    mapped = enhance_and_map(enc, attn, params["map_wa_t"], params["map_wb_t"],
                             params["map_wc_t"], params["map_b"])   # (2B, S, H)

    comp = bilstm(mapped, lengths, mask, params["composition"])     # (2B, S, 2H)

    pooled = masked_pool(comp, mask)                                # (2B, 4H)
    final_v = jnp.concatenate([pooled[:b], pooled[b:]], axis=-1)    # (B, 8H)

    hid = linear(final_v, params["cls1_w_t"], params["cls1_b"], act="tanh")
    logits = linear(hid, params["cls2_w_t"], params["cls2_b"], act=None)
    prediction = jax.nn.softmax(logits, axis=1)
    return logits, prediction


# ----------------------------------------------------------------------------
# Parameter construction (mirrors _init_esim_weights shapes / init semantics)
# ----------------------------------------------------------------------------
def xavier_uniform(key, shape):
    fan_out, fan_in = shape
    limit = (6.0 / (fan_in + fan_out)) ** 0.5
    return jax.random.uniform(key, shape, jnp.float32, -limit, limit)


def orthogonal(key, shape):
    return jax.nn.initializers.orthogonal()(key, shape, jnp.float32)


def _reorder_gates(w):
    # PyTorch LSTM gate order [i, f, g, o] -> kernel gate order [i, f, o, g]
    i, f, g, o = jnp.split(w, 4, axis=-1)
    return jnp.concatenate([i, f, o, g], axis=-1)


def make_bilstm_params(key, input_size, hidden_size):
    ks = jax.random.split(key, 4)
    w_ih = xavier_uniform(ks[0], (4 * hidden_size, input_size))
    w_hh = orthogonal(ks[1], (4 * hidden_size, hidden_size))
    w_ih_r = xavier_uniform(ks[2], (4 * hidden_size, input_size))
    w_hh_r = orthogonal(ks[3], (4 * hidden_size, hidden_size))
    # b = b_ih + b_hh; forget-gate slice of b_hh initialised to 1
    b = jnp.zeros((4 * hidden_size,), jnp.float32)
    b = b.at[hidden_size:2 * hidden_size].set(1.0)

    w_in_f = _reorder_gates(w_ih.T)                       # (Din, 4H)
    w_in_b = _reorder_gates(w_ih_r.T)
    bias = jnp.concatenate([_reorder_gates(b), _reorder_gates(b)])[None, :]
    whh_f = _reorder_gates(w_hh.T)                        # (H, 4H)
    whh_b = _reorder_gates(w_hh_r.T)
    z = jnp.zeros_like(whh_f)
    w_hh_bd = jnp.concatenate(
        [jnp.concatenate([whh_f, z], axis=1),
         jnp.concatenate([z, whh_b], axis=1)], axis=0)    # (2H, 8H) block-diag
    return {"w_in_f": w_in_f, "w_in_b": w_in_b, "bias": bias, "w_hh_bd": w_hh_bd}


def make_params(key, vocab_size, embedded_dim, hidden_size, num_class):
    ks = jax.random.split(key, 6)
    emb = 0.1 * jax.random.normal(ks[0], (vocab_size, embedded_dim), jnp.float32)
    emb = emb.at[1, :].set(0.0)                           # padding_idx = 1
    map_w = xavier_uniform(ks[3], (hidden_size, 8 * hidden_size))
    w0, w1, w2, w3 = jnp.split(map_w.T, 4, axis=0)        # enc / attn / diff / prod blocks
    cls1_w = xavier_uniform(ks[4], (hidden_size, 8 * hidden_size))
    cls2_w = xavier_uniform(ks[5], (num_class, hidden_size))
    return {
        "embedding": emb,
        "encoder": make_bilstm_params(ks[1], embedded_dim, hidden_size),
        "composition": make_bilstm_params(ks[2], hidden_size, hidden_size),
        # enhancement concat folded into the mapping weights
        "map_wa_t": w0 + w2, "map_wb_t": w1 - w2, "map_wc_t": w3,
        "map_b": jnp.zeros((hidden_size,), jnp.float32),
        "cls1_w_t": cls1_w.T, "cls1_b": jnp.zeros((hidden_size,), jnp.float32),
        "cls2_w_t": cls2_w.T, "cls2_b": jnp.zeros((num_class,), jnp.float32),
    }


# ----------------------------------------------------------------------------
if __name__ == "__main__":
    VOCAB = 50
    EMB = 32
    HIDDEN = 32
    NUM_CLASS = 3
    BATCH = 2
    SEQ_P = 8
    SEQ_H = 8

    key = jax.random.PRNGKey(0)
    k_param, k_p, k_h = jax.random.split(key, 3)
    params = make_params(k_param, VOCAB, EMB, HIDDEN, NUM_CLASS)

    premise_seq = jax.random.randint(k_p, (BATCH, SEQ_P), 2, VOCAB, jnp.int32)
    hypothesis_seq = jax.random.randint(k_h, (BATCH, SEQ_H), 2, VOCAB, jnp.int32)
    premise_len = jnp.array([SEQ_P, 5], jnp.int32)
    hypothesis_len = jnp.array([6, SEQ_H], jnp.int32)
    # mark padded positions with the pad token (index 1) like a real batch
    premise_seq = jnp.where(jnp.arange(SEQ_P)[None, :] < premise_len[:, None],
                            premise_seq, 1)
    hypothesis_seq = jnp.where(jnp.arange(SEQ_H)[None, :] < hypothesis_len[:, None],
                               hypothesis_seq, 1)

    fwd = jax.jit(esim_forward)
    logits, prediction = fwd(params, premise_seq, premise_len,
                             hypothesis_seq, hypothesis_len)
    jax.block_until_ready((logits, prediction))

    assert logits.shape == (BATCH, NUM_CLASS)
    assert prediction.shape == (BATCH, NUM_CLASS)
    assert bool(jnp.all(jnp.isfinite(logits)))
    assert bool(jnp.all(jnp.abs(jnp.sum(prediction, axis=1) - 1.0) < 1e-4))
    print("KERNEL_OK")
</pallas_src>

<mosaic_0001>
module attributes {stable_mosaic.version = 11 : i64} {
  func.func @_xp_kernel(%arg0: i32, %arg1: memref<1x4x32xf32, #tpu.memory_space<vmem>>, %arg2: memref<1x4x32xf32, #tpu.memory_space<vmem>>, %arg3: memref<32x128xf32, #tpu.memory_space<vmem>>, %arg4: memref<32x128xf32, #tpu.memory_space<vmem>>, %arg5: memref<1x256xf32, #tpu.memory_space<vmem>>, %arg6: memref<1x4x256xf32, #tpu.memory_space<vmem>>) attributes {dimension_semantics = [#tpu.dimension_semantics<parallel>], iteration_bounds = array<i64: 8>, scalar_prefetch = 0 : i64, scratch_operands = 0 : i64, tpu.core_type = #tpu.core_type<tc>, window_params = [{transform_indices = @transform_0, window_bounds = array<i64: 1, 4, 32>}, {transform_indices = @transform_1, window_bounds = array<i64: 1, 4, 32>}, {pipeline_mode = #tpu.pipeline_mode<synchronous>, transform_indices = @transform_2, window_bounds = array<i64: 32, 128>}, {pipeline_mode = #tpu.pipeline_mode<synchronous>, transform_indices = @transform_3, window_bounds = array<i64: 32, 128>}, {pipeline_mode = #tpu.pipeline_mode<synchronous>, transform_indices = @transform_4, window_bounds = array<i64: 1, 256>}, {transform_indices = @transform_5, window_bounds = array<i64: 1, 4, 256>}]} {
    %c0 = arith.constant 0 : index
    %c0_0 = arith.constant 0 : index
    %c0_1 = arith.constant 0 : index
    %0 = vector.load %arg1[%c0, %c0_0, %c0_1] : memref<1x4x32xf32, #tpu.memory_space<vmem>>, vector<1x4x32xf32>
    %1 = vector.shape_cast %0 : vector<1x4x32xf32> to vector<4x32xf32>
    %c0_2 = arith.constant 0 : index
    %c0_3 = arith.constant 0 : index
    %2 = vector.load %arg3[%c0_2, %c0_3] : memref<32x128xf32, #tpu.memory_space<vmem>>, vector<32x128xf32>
    %cst = arith.constant dense<0.000000e+00> : vector<4x128xf32>
    %3 = tpu.matmul %1, %2, %cst {dimension_numbers = #tpu.dot_dimension_numbers<[1], [0], [0], [1], [0, 0, 1, 1], [], []>} : vector<4x32xf32>, vector<32x128xf32>, vector<4x128xf32> -> vector<4x128xf32>
    %c0_4 = arith.constant 0 : index
    %c0_5 = arith.constant 0 : index
    %4 = vector.load %arg5[%c0_4, %c0_5] : memref<1x256xf32, #tpu.memory_space<vmem>>, vector<1x128xf32>
    %5 = vector.broadcast %4 : vector<1x128xf32> to vector<4x128xf32>
    %6 = arith.addf %3, %5 : vector<4x128xf32>
    %c0_6 = arith.constant 0 : index
    %c0_7 = arith.constant 0 : index
    %c0_8 = arith.constant 0 : index
    %7 = vector.load %arg6[%c0_6, %c0_7, %c0_8] : memref<1x4x256xf32, #tpu.memory_space<vmem>>, vector<1x4x128xf32>
    %8 = vector.shape_cast %7 : vector<1x4x128xf32> to vector<4x128xf32>
    %9 = vector.shape_cast %6 : vector<4x128xf32> to vector<1x4x128xf32>
    tpu.vector_store %arg6[%c0_6, %c0_7, %c0_8], %9 {strides = array<i32>} : memref<1x4x256xf32, #tpu.memory_space<vmem>>, vector<1x4x128xf32>,
    %c0_9 = arith.constant 0 : index
    %c0_10 = arith.constant 0 : index
    %c0_11 = arith.constant 0 : index
    %10 = vector.load %arg2[%c0_9, %c0_10, %c0_11] : memref<1x4x32xf32, #tpu.memory_space<vmem>>, vector<1x4x32xf32>
    %11 = vector.shape_cast %10 : vector<1x4x32xf32> to vector<4x32xf32>
    %c0_12 = arith.constant 0 : index
    %c0_13 = arith.constant 0 : index
    %12 = vector.load %arg4[%c0_12, %c0_13] : memref<32x128xf32, #tpu.memory_space<vmem>>, vector<32x128xf32>
    %cst_14 = arith.constant dense<0.000000e+00> : vector<4x128xf32>
    %13 = tpu.matmul %11, %12, %cst_14 {dimension_numbers = #tpu.dot_dimension_numbers<[1], [0], [0], [1], [0, 0, 1, 1], [], []>} : vector<4x32xf32>, vector<32x128xf32>, vector<4x128xf32> -> vector<4x128xf32>
    %c0_15 = arith.constant 0 : index
    %c128 = arith.constant 128 : index
    %14 = vector.load %arg5[%c0_15, %c128] : memref<1x256xf32, #tpu.memory_space<vmem>>, vector<1x128xf32>
    %15 = vector.broadcast %14 : vector<1x128xf32> to vector<4x128xf32>
    %16 = arith.addf %13, %15 : vector<4x128xf32>
    %c0_16 = arith.constant 0 : index
    %c0_17 = arith.constant 0 : index
    %c128_18 = arith.constant 128 : index
    %17 = vector.load %arg6[%c0_16, %c0_17, %c128_18] : memref<1x4x256xf32, #tpu.memory_space<vmem>>, vector<1x4x128xf32>
    %18 = vector.shape_cast %17 : vector<1x4x128xf32> to vector<4x128xf32>
    %19 = vector.shape_cast %16 : vector<4x128xf32> to vector<1x4x128xf32>
    tpu.vector_store %arg6[%c0_16, %c0_17, %c128_18], %19 {strides = array<i32>} : memref<1x4x256xf32, #tpu.memory_space<vmem>>, vector<1x4x128xf32>,
    return
  }
  func.func @transform_0(%arg0: i32) -> (i32, i32, i32) {
    %c0_i32 = arith.constant 0 : i32
    %c0_i32_0 = arith.constant 0 : i32
    %c0_i32_1 = arith.constant 0 : i32
    return %arg0, %c0_i32, %c0_i32_0 : i32, i32, i32
  }
  func.func @transform_1(%arg0: i32) -> (i32, i32, i32) {
    %c0_i32 = arith.constant 0 : i32
    %c0_i32_0 = arith.constant 0 : i32
    %c0_i32_1 = arith.constant 0 : i32
    return %arg0, %c0_i32, %c0_i32_0 : i32, i32, i32
  }
  func.func @transform_2(%arg0: i32) -> (i32, i32) {
    %c0_i32 = arith.constant 0 : i32
    %c0_i32_0 = arith.constant 0 : i32
    %c0_i32_1 = arith.constant 0 : i32
    return %c0_i32, %c0_i32_0 : i32, i32
  }
  func.func @transform_3(%arg0: i32) -> (i32, i32) {
    %c0_i32 = arith.constant 0 : i32
    %c0_i32_0 = arith.constant 0 : i32
    %c0_i32_1 = arith.constant 0 : i32
    return %c0_i32, %c0_i32_0 : i32, i32
  }
  func.func @transform_4(%arg0: i32) -> (i32, i32) {
    %c0_i32 = arith.constant 0 : i32
    %c0_i32_0 = arith.constant 0 : i32
    %c0_i32_1 = arith.constant 0 : i32
    return %c0_i32, %c0_i32_0 : i32, i32
  }
  func.func @transform_5(%arg0: i32) -> (i32, i32, i32) {
    %c0_i32 = arith.constant 0 : i32
    %c0_i32_0 = arith.constant 0 : i32
    %c0_i32_1 = arith.constant 0 : i32
    return %arg0, %c0_i32, %c0_i32_0 : i32, i32, i32
  }
}

module attributes {stable_mosaic.version = 11 : i64} {
  func.func @_lstm_step_kernel(%arg0: i32, %arg1: memref<1x4x256xf32, #tpu.memory_space<vmem>>, %arg2: memref<64x256xf32, #tpu.memory_space<vmem>>, %arg3: memref<1x4x1xf32, #tpu.memory_space<vmem>>, %arg4: memref<1x4x64xf32, #tpu.memory_space<vmem>>, %arg5: memref<4x64xf32, #tpu.memory_space<vmem>>, %arg6: memref<4x64xf32, #tpu.memory_space<vmem>>) attributes {dimension_semantics = [#tpu.dimension_semantics<arbitrary>], iteration_bounds = array<i64: 8>, scalar_prefetch = 0 : i64, scratch_operands = 2 : i64, tpu.core_type = #tpu.core_type<tc>, window_params = [{transform_indices = @transform_0, window_bounds = array<i64: 1, 4, 256>}, {pipeline_mode = #tpu.pipeline_mode<synchronous>, transform_indices = @transform_1, window_bounds = array<i64: 64, 256>}, {transform_indices = @transform_2, window_bounds = array<i64: 1, 4, 1>}, {transform_indices = @transform_3, window_bounds = array<i64: 1, 4, 64>}]} {
    %c0_i32 = arith.constant 0 : i32
    %0 = arith.cmpi eq, %arg0, %c0_i32 : i32
    %1 = arith.extui %0 : i1 to i32
    %c0_i32_0 = arith.constant 0 : i32
    %2 = arith.cmpi ne, %1, %c0_i32_0 : i32
    scf.if %2 {
      %cst_27 = arith.constant 0.000000e+00 : f32
      %71 = vector.broadcast %cst_27 : f32 to vector<4x64xf32>
      %c0_28 = arith.constant 0 : index
      %c0_29 = arith.constant 0 : index
      %72 = vector.load %arg5[%c0_28, %c0_29] : memref<4x64xf32, #tpu.memory_space<vmem>>, vector<4x64xf32>
      tpu.vector_store %arg5[%c0_28, %c0_29], %71 {strides = array<i32>} : memref<4x64xf32, #tpu.memory_space<vmem>>, vector<4x64xf32>,
      %cst_30 = arith.constant 0.000000e+00 : f32
      %73 = vector.broadcast %cst_30 : f32 to vector<4x64xf32>
      %c0_31 = arith.constant 0 : index
      %c0_32 = arith.constant 0 : index
      %74 = vector.load %arg6[%c0_31, %c0_32] : memref<4x64xf32, #tpu.memory_space<vmem>>, vector<4x64xf32>
      tpu.vector_store %arg6[%c0_31, %c0_32], %73 {strides = array<i32>} : memref<4x64xf32, #tpu.memory_space<vmem>>, vector<4x64xf32>,
    } else {
    }
    %c0 = arith.constant 0 : index
    %c0_1 = arith.constant 0 : index
    %c0_2 = arith.constant 0 : index
    %3 = vector.load %arg1[%c0, %c0_1, %c0_2] : memref<1x4x256xf32, #tpu.memory_space<vmem>>, vector<1x4x256xf32>
    %4 = vector.shape_cast %3 : vector<1x4x256xf32> to vector<4x256xf32>
    %c0_3 = arith.constant 0 : index
    %c0_4 = arith.constant 0 : index
    %c0_5 = arith.constant 0 : index
    %5 = vector.load %arg3[%c0_3, %c0_4, %c0_5] : memref<1x4x1xf32, #tpu.memory_space<vmem>>, vector<1x4x1xf32>
    %6 = vector.shape_cast %5 : vector<1x4x1xf32> to vector<4x1xf32>
    %c0_6 = arith.constant 0 : index
    %c0_7 = arith.constant 0 : index
    %7 = vector.load %arg5[%c0_6, %c0_7] : memref<4x64xf32, #tpu.memory_space<vmem>>, vector<4x64xf32>
    %c0_8 = arith.constant 0 : index
    %c0_9 = arith.constant 0 : index
    %8 = vector.load %arg6[%c0_8, %c0_9] : memref<4x64xf32, #tpu.memory_space<vmem>>, vector<4x64xf32>
    %c0_10 = arith.constant 0 : index
    %c0_11 = arith.constant 0 : index
    %9 = vector.load %arg2[%c0_10, %c0_11] : memref<64x256xf32, #tpu.memory_space<vmem>>, vector<64x256xf32>
    %cst = arith.constant dense<0.000000e+00> : vector<4x256xf32>
    %10 = tpu.matmul %7, %9, %cst {dimension_numbers = #tpu.dot_dimension_numbers<[1], [0], [0], [1], [0, 0, 1, 1], [], []>} : vector<4x64xf32>, vector<64x256xf32>, vector<4x256xf32> -> vector<4x256xf32>
    %11 = arith.addf %4, %10 : vector<4x256xf32>
    %12 = vector.extract_strided_slice %11 {offsets = [0, 0], sizes = [4, 128], strides = [1, 1]} : vector<4x256xf32> to vector<4x128xf32>
    %13 = vector.extract_strided_slice %8 {offsets = [0, 0], sizes = [4, 32], strides = [1, 1]} : vector<4x64xf32> to vector<4x32xf32>
    %14 = vector.extract_strided_slice %12 {offsets = [0, 0], sizes = [4, 96], strides = [1, 1]} : vector<4x128xf32> to vector<4x96xf32>
    %cst_12 = arith.constant 0.000000e+00 : f32
    %15 = vector.broadcast %cst_12 : f32 to vector<4x96xf32>
    %16 = arith.subf %15, %14 : vector<4x96xf32>
    %17 = math.exp %16 : vector<4x96xf32>
    %cst_13 = arith.constant 1.000000e+00 : f32
    %18 = vector.broadcast %cst_13 : f32 to vector<4x96xf32>
    %19 = arith.addf %18, %17 : vector<4x96xf32>
    %cst_14 = arith.constant 1.000000e+00 : f32
    %20 = vector.broadcast %cst_14 : f32 to vector<4x96xf32>
    %21 = arith.divf %20, %19 : vector<4x96xf32>
    %22 = vector.extract_strided_slice %12 {offsets = [0, 96], sizes = [4, 32], strides = [1, 1]} : vector<4x128xf32> to vector<4x32xf32>
    %23 = math.tanh %22 : vector<4x32xf32>
    %24 = vector.extract_strided_slice %21 {offsets = [0, 32], sizes = [4, 32], strides = [1, 1]} : vector<4x96xf32> to vector<4x32xf32>
    %25 = arith.mulf %24, %13 : vector<4x32xf32>
    %26 = vector.extract_strided_slice %21 {offsets = [0, 0], sizes = [4, 32], strides = [1, 1]} : vector<4x96xf32> to vector<4x32xf32>
    %27 = arith.mulf %26, %23 : vector<4x32xf32>
    %28 = arith.addf %25, %27 : vector<4x32xf32>
    %29 = vector.extract_strided_slice %21 {offsets = [0, 64], sizes = [4, 32], strides = [1, 1]} : vector<4x96xf32> to vector<4x32xf32>
    %30 = math.tanh %28 : vector<4x32xf32>
    %31 = arith.mulf %29, %30 : vector<4x32xf32>
    %32 = vector.extract_strided_slice %11 {offsets = [0, 128], sizes = [4, 128], strides = [1, 1]} : vector<4x256xf32> to vector<4x128xf32>
    %33 = vector.extract_strided_slice %8 {offsets = [0, 32], sizes = [4, 32], strides = [1, 1]} : vector<4x64xf32> to vector<4x32xf32>
    %34 = vector.extract_strided_slice %32 {offsets = [0, 0], sizes = [4, 96], strides = [1, 1]} : vector<4x128xf32> to vector<4x96xf32>
    %cst_15 = arith.constant 0.000000e+00 : f32
    %35 = vector.broadcast %cst_15 : f32 to vector<4x96xf32>
    %36 = arith.subf %35, %34 : vector<4x96xf32>
    %37 = math.exp %36 : vector<4x96xf32>
    %cst_16 = arith.constant 1.000000e+00 : f32
    %38 = vector.broadcast %cst_16 : f32 to vector<4x96xf32>
    %39 = arith.addf %38, %37 : vector<4x96xf32>
    %cst_17 = arith.constant 1.000000e+00 : f32
    %40 = vector.broadcast %cst_17 : f32 to vector<4x96xf32>
    %41 = arith.divf %40, %39 : vector<4x96xf32>
    %42 = vector.extract_strided_slice %32 {offsets = [0, 96], sizes = [4, 32], strides = [1, 1]} : vector<4x128xf32> to vector<4x32xf32>
    %43 = math.tanh %42 : vector<4x32xf32>
    %44 = vector.extract_strided_slice %41 {offsets = [0, 32], sizes = [4, 32], strides = [1, 1]} : vector<4x96xf32> to vector<4x32xf32>
    %45 = arith.mulf %44, %33 : vector<4x32xf32>
    %46 = vector.extract_strided_slice %41 {offsets = [0, 0], sizes = [4, 32], strides = [1, 1]} : vector<4x96xf32> to vector<4x32xf32>
    %47 = arith.mulf %46, %43 : vector<4x32xf32>
    %48 = arith.addf %45, %47 : vector<4x32xf32>
    %49 = vector.extract_strided_slice %41 {offsets = [0, 64], sizes = [4, 32], strides = [1, 1]} : vector<4x96xf32> to vector<4x32xf32>
    %50 = math.tanh %48 : vector<4x32xf32>
    %51 = arith.mulf %49, %50 : vector<4x32xf32>
    %52 = tpu.concatenate %31, %51 in 1 : vector<4x32xf32>, vector<4x32xf32> -> vector<4x64xf32>
    %53 = tpu.concatenate %28, %48 in 1 : vector<4x32xf32>, vector<4x32xf32> -> vector<4x64xf32>
    %cst_18 = arith.constant 0.000000e+00 : f32
    %54 = vector.broadcast %cst_18 : f32 to vector<4x1xf32>
    %55 = arith.cmpf ogt, %6, %54 : vector<4x1xf32>
    %56 = vector.shape_cast %55 : vector<4x1xi1> to vector<4x1xi1>
    %57 = vector.broadcast %56 : vector<4x1xi1> to vector<4x64xi1>
    %58 = arith.select %57, %52, %7 : vector<4x64xi1>, vector<4x64xf32>
    %c0_19 = arith.constant 0 : index
    %c0_20 = arith.constant 0 : index
    %59 = vector.load %arg5[%c0_19, %c0_20] : memref<4x64xf32, #tpu.memory_space<vmem>>, vector<4x64xf32>
    tpu.vector_store %arg5[%c0_19, %c0_20], %58 {strides = array<i32>} : memref<4x64xf32, #tpu.memory_space<vmem>>, vector<4x64xf32>,
    %60 = vector.shape_cast %55 : vector<4x1xi1> to vector<4x1xi1>
    %61 = vector.broadcast %60 : vector<4x1xi1> to vector<4x64xi1>
    %62 = arith.select %61, %53, %8 : vector<4x64xi1>, vector<4x64xf32>
    %c0_21 = arith.constant 0 : index
    %c0_22 = arith.constant 0 : index
    %63 = vector.load %arg6[%c0_21, %c0_22] : memref<4x64xf32, #tpu.memory_space<vmem>>, vector<4x64xf32>
    tpu.vector_store %arg6[%c0_21, %c0_22], %62 {strides = array<i32>} : memref<4x64xf32, #tpu.memory_space<vmem>>, vector<4x64xf32>,
    %cst_23 = arith.constant 0.000000e+00 : f32
    %64 = vector.shape_cast %55 : vector<4x1xi1> to vector<4x1xi1>
    %65 = vector.broadcast %64 : vector<4x1xi1> to vector<4x64xi1>
    %66 = vector.broadcast %cst_23 : f32 to vector<4x64xf32>
    %67 = arith.select %65, %52, %66 : vector<4x64xi1>, vector<4x64xf32>
    %c0_24 = arith.constant 0 : index
    %c0_25 = arith.constant 0 : index
    %c0_26 = arith.constant 0 : index
    %68 = vector.load %arg4[%c0_24, %c0_25, %c0_26] : memref<1x4x64xf32, #tpu.memory_space<vmem>>, vector<1x4x64xf32>
    %69 = vector.shape_cast %68 : vector<1x4x64xf32> to vector<4x64xf32>
    %70 = vector.shape_cast %67 : vector<4x64xf32> to vector<1x4x64xf32>
    tpu.vector_store %arg4[%c0_24, %c0_25, %c0_26], %70 {strides = array<i32>} : memref<1x4x64xf32, #tpu.memory_space<vmem>>, vector<1x4x64xf32>,
    return
  }
  func.func @transform_0(%arg0: i32) -> (i32, i32, i32) {
    %c0_i32 = arith.constant 0 : i32
    %c0_i32_0 = arith.constant 0 : i32
    %c0_i32_1 = arith.constant 0 : i32
    return %arg0, %c0_i32, %c0_i32_0 : i32, i32, i32
  }
  func.func @transform_1(%arg0: i32) -> (i32, i32) {
    %c0_i32 = arith.constant 0 : i32
    %c0_i32_0 = arith.constant 0 : i32
    %c0_i32_1 = arith.constant 0 : i32
    return %c0_i32, %c0_i32_0 : i32, i32
  }
  func.func @transform_2(%arg0: i32) -> (i32, i32, i32) {
    %c0_i32 = arith.constant 0 : i32
    %c0_i32_0 = arith.constant 0 : i32
    %c0_i32_1 = arith.constant 0 : i32
    return %arg0, %c0_i32, %c0_i32_0 : i32, i32, i32
  }
  func.func @transform_3(%arg0: i32) -> (i32, i32, i32) {
    %c0_i32 = arith.constant 0 : i32
    %c0_i32_0 = arith.constant 0 : i32
    %c0_i32_1 = arith.constant 0 : i32
    return %arg0, %c0_i32, %c0_i32_0 : i32, i32, i32
  }
}

module attributes {stable_mosaic.version = 11 : i64} {
  func.func @_attention_kernel(%arg0: i32, %arg1: memref<1x8x64xf32, #tpu.memory_space<vmem>>, %arg2: memref<1x8x64xf32, #tpu.memory_space<vmem>>, %arg3: memref<1x1x8xf32, #tpu.memory_space<vmem>>, %arg4: memref<1x8x1xf32, #tpu.memory_space<vmem>>, %arg5: memref<1x1x8xf32, #tpu.memory_space<vmem>>, %arg6: memref<1x8x1xf32, #tpu.memory_space<vmem>>, %arg7: memref<1x8x64xf32, #tpu.memory_space<vmem>>, %arg8: memref<1x8x64xf32, #tpu.memory_space<vmem>>) attributes {dimension_semantics = [#tpu.dimension_semantics<parallel>], iteration_bounds = array<i64: 2>, scalar_prefetch = 0 : i64, scratch_operands = 0 : i64, tpu.core_type = #tpu.core_type<tc>, window_params = [{transform_indices = @transform_0, window_bounds = array<i64: 1, 8, 64>}, {transform_indices = @transform_1, window_bounds = array<i64: 1, 8, 64>}, {transform_indices = @transform_2, window_bounds = array<i64: 1, 1, 8>}, {transform_indices = @transform_3, window_bounds = array<i64: 1, 8, 1>}, {transform_indices = @transform_4, window_bounds = array<i64: 1, 1, 8>}, {transform_indices = @transform_5, window_bounds = array<i64: 1, 8, 1>}, {transform_indices = @transform_6, window_bounds = array<i64: 1, 8, 64>}, {transform_indices = @transform_7, window_bounds = array<i64: 1, 8, 64>}]} {
    %c0 = arith.constant 0 : index
    %c0_0 = arith.constant 0 : index
    %c0_1 = arith.constant 0 : index
    %0 = vector.load %arg1[%c0, %c0_0, %c0_1] : memref<1x8x64xf32, #tpu.memory_space<vmem>>, vector<1x8x64xf32>
    %1 = vector.shape_cast %0 : vector<1x8x64xf32> to vector<8x64xf32>
    %c0_2 = arith.constant 0 : index
    %c0_3 = arith.constant 0 : index
    %c0_4 = arith.constant 0 : index
    %2 = vector.load %arg2[%c0_2, %c0_3, %c0_4] : memref<1x8x64xf32, #tpu.memory_space<vmem>>, vector<1x8x64xf32>
    %3 = vector.shape_cast %2 : vector<1x8x64xf32> to vector<8x64xf32>
    %c0_5 = arith.constant 0 : index
    %c0_6 = arith.constant 0 : index
    %c0_7 = arith.constant 0 : index
    %4 = vector.load %arg3[%c0_5, %c0_6, %c0_7] : memref<1x1x8xf32, #tpu.memory_space<vmem>>, vector<1x1x8xf32>
    %5 = vector.shape_cast %4 : vector<1x1x8xf32> to vector<1x8xf32>
    %c0_8 = arith.constant 0 : index
    %c0_9 = arith.constant 0 : index
    %c0_10 = arith.constant 0 : index
    %6 = vector.load %arg4[%c0_8, %c0_9, %c0_10] : memref<1x8x1xf32, #tpu.memory_space<vmem>>, vector<1x8x1xf32>
    %7 = vector.shape_cast %6 : vector<1x8x1xf32> to vector<8x1xf32>
    %c0_11 = arith.constant 0 : index
    %c0_12 = arith.constant 0 : index
    %c0_13 = arith.constant 0 : index
    %8 = vector.load %arg5[%c0_11, %c0_12, %c0_13] : memref<1x1x8xf32, #tpu.memory_space<vmem>>, vector<1x1x8xf32>
    %9 = vector.shape_cast %8 : vector<1x1x8xf32> to vector<1x8xf32>
    %c0_14 = arith.constant 0 : index
    %c0_15 = arith.constant 0 : index
    %c0_16 = arith.constant 0 : index
    %10 = vector.load %arg6[%c0_14, %c0_15, %c0_16] : memref<1x8x1xf32, #tpu.memory_space<vmem>>, vector<1x8x1xf32>
    %11 = vector.shape_cast %10 : vector<1x8x1xf32> to vector<8x1xf32>
    %cst = arith.constant dense<0.000000e+00> : vector<8x8xf32>
    %12 = tpu.matmul %1, %3, %cst {dimension_numbers = #tpu.dot_dimension_numbers<[1], [1], [0], [0], [0, 0, 1, 0], [], []>} : vector<8x64xf32>, vector<8x64xf32>, vector<8x8xf32> -> vector<8x8xf32>
    %cst_17 = arith.constant 1.000000e+00 : f32
    %13 = vector.broadcast %cst_17 : f32 to vector<1x8xf32>
    %14 = arith.subf %13, %9 : vector<1x8xf32>
    %cst_18 = arith.constant -1.000000e+07 : f32
    %15 = vector.broadcast %cst_18 : f32 to vector<1x8xf32>
    %16 = arith.mulf %14, %15 : vector<1x8xf32>
    %17 = vector.broadcast %16 : vector<1x8xf32> to vector<8x8xf32>
    %18 = arith.addf %12, %17 : vector<8x8xf32>
    %cst_19 = arith.constant dense<0xFF800000> : vector<8xf32>
    %19 = vector.multi_reduction <maximumf>, %18, %cst_19 [1] : vector<8x8xf32> to vector<8xf32>
    %20 = vector.shape_cast %19 : vector<8xf32> to vector<8x1xf32>
    %21 = vector.broadcast %20 : vector<8x1xf32> to vector<8x8xf32>
    %22 = arith.subf %18, %21 : vector<8x8xf32>
    %23 = math.exp %22 : vector<8x8xf32>
    %cst_20 = arith.constant dense<0.000000e+00> : vector<8xf32>
    %24 = vector.multi_reduction <add>, %23, %cst_20 [1] : vector<8x8xf32> to vector<8xf32>
    %25 = vector.shape_cast %24 : vector<8xf32> to vector<8x1xf32>
    %26 = vector.broadcast %25 : vector<8x1xf32> to vector<8x8xf32>
    %27 = arith.divf %23, %26 : vector<8x8xf32>
    %28 = tpu.transpose %12, [1, 0] : vector<8x8xf32> -> vector<8x8xf32>
    %cst_21 = arith.constant 1.000000e+00 : f32
    %29 = vector.broadcast %cst_21 : f32 to vector<1x8xf32>
    %30 = arith.subf %29, %5 : vector<1x8xf32>
    %cst_22 = arith.constant -1.000000e+07 : f32
    %31 = vector.broadcast %cst_22 : f32 to vector<1x8xf32>
    %32 = arith.mulf %30, %31 : vector<1x8xf32>
    %33 = vector.broadcast %32 : vector<1x8xf32> to vector<8x8xf32>
    %34 = arith.addf %28, %33 : vector<8x8xf32>
    %cst_23 = arith.constant dense<0xFF800000> : vector<8xf32>
    %35 = vector.multi_reduction <maximumf>, %34, %cst_23 [1] : vector<8x8xf32> to vector<8xf32>
    %36 = vector.shape_cast %35 : vector<8xf32> to vector<8x1xf32>
    %37 = vector.broadcast %36 : vector<8x1xf32> to vector<8x8xf32>
    %38 = arith.subf %34, %37 : vector<8x8xf32>
    %39 = math.exp %38 : vector<8x8xf32>
    %cst_24 = arith.constant dense<0.000000e+00> : vector<8xf32>
    %40 = vector.multi_reduction <add>, %39, %cst_24 [1] : vector<8x8xf32> to vector<8xf32>
    %41 = vector.shape_cast %40 : vector<8xf32> to vector<8x1xf32>
    %42 = vector.broadcast %41 : vector<8x1xf32> to vector<8x8xf32>
    %43 = arith.divf %39, %42 : vector<8x8xf32>
    %cst_25 = arith.constant dense<0.000000e+00> : vector<8x64xf32>
    %44 = tpu.matmul %27, %3, %cst_25 {dimension_numbers = #tpu.dot_dimension_numbers<[1], [0], [0], [1], [0, 0, 1, 1], [], []>} : vector<8x8xf32>, vector<8x64xf32>, vector<8x64xf32> -> vector<8x64xf32>
    %45 = vector.broadcast %7 : vector<8x1xf32> to vector<8x64xf32>
    %46 = arith.mulf %44, %45 : vector<8x64xf32>
    %c0_26 = arith.constant 0 : index
    %c0_27 = arith.constant 0 : index
    %c0_28 = arith.constant 0 : index
    %47 = vector.load %arg7[%c0_26, %c0_27, %c0_28] : memref<1x8x64xf32, #tpu.memory_space<vmem>>, vector<1x8x64xf32>
    %48 = vector.shape_cast %47 : vector<1x8x64xf32> to vector<8x64xf32>
    %49 = vector.shape_cast %46 : vector<8x64xf32> to vector<1x8x64xf32>
    tpu.vector_store %arg7[%c0_26, %c0_27, %c0_28], %49 {strides = array<i32>} : memref<1x8x64xf32, #tpu.memory_space<vmem>>, vector<1x8x64xf32>,
    %cst_29 = arith.constant dense<0.000000e+00> : vector<8x64xf32>
    %50 = tpu.matmul %43, %1, %cst_29 {dimension_numbers = #tpu.dot_dimension_numbers<[1], [0], [0], [1], [0, 0, 1, 1], [], []>} : vector<8x8xf32>, vector<8x64xf32>, vector<8x64xf32> -> vector<8x64xf32>
    %51 = vector.broadcast %11 : vector<8x1xf32> to vector<8x64xf32>
    %52 = arith.mulf %50, %51 : vector<8x64xf32>
    %c0_30 = arith.constant 0 : index
    %c0_31 = arith.constant 0 : index
    %c0_32 = arith.constant 0 : index
    %53 = vector.load %arg8[%c0_30, %c0_31, %c0_32] : memref<1x8x64xf32, #tpu.memory_space<vmem>>, vector<1x8x64xf32>
    %54 = vector.shape_cast %53 : vector<1x8x64xf32> to vector<8x64xf32>
    %55 = vector.shape_cast %52 : vector<8x64xf32> to vector<1x8x64xf32>
    tpu.vector_store %arg8[%c0_30, %c0_31, %c0_32], %55 {strides = array<i32>} : memref<1x8x64xf32, #tpu.memory_space<vmem>>, vector<1x8x64xf32>,
    return
  }
  func.func @transform_0(%arg0: i32) -> (i32, i32, i32) {
    %c0_i32 = arith.constant 0 : i32
    %c0_i32_0 = arith.constant 0 : i32
    %c0_i32_1 = arith.constant 0 : i32
    return %arg0, %c0_i32, %c0_i32_0 : i32, i32, i32
  }
  func.func @transform_1(%arg0: i32) -> (i32, i32, i32) {
    %c0_i32 = arith.constant 0 : i32
    %c0_i32_0 = arith.constant 0 : i32
    %c0_i32_1 = arith.constant 0 : i32
    return %arg0, %c0_i32, %c0_i32_0 : i32, i32, i32
  }
  func.func @transform_2(%arg0: i32) -> (i32, i32, i32) {
    %c0_i32 = arith.constant 0 : i32
    %c0_i32_0 = arith.constant 0 : i32
    %c0_i32_1 = arith.constant 0 : i32
    return %arg0, %c0_i32, %c0_i32_0 : i32, i32, i32
  }
  func.func @transform_3(%arg0: i32) -> (i32, i32, i32) {
    %c0_i32 = arith.constant 0 : i32
    %c0_i32_0 = arith.constant 0 : i32
    %c0_i32_1 = arith.constant 0 : i32
    return %arg0, %c0_i32, %c0_i32_0 : i32, i32, i32
  }
  func.func @transform_4(%arg0: i32) -> (i32, i32, i32) {
    %c0_i32 = arith.constant 0 : i32
    %c0_i32_0 = arith.constant 0 : i32
    %c0_i32_1 = arith.constant 0 : i32
    return %arg0, %c0_i32, %c0_i32_0 : i32, i32, i32
  }
  func.func @transform_5(%arg0: i32) -> (i32, i32, i32) {
    %c0_i32 = arith.constant 0 : i32
    %c0_i32_0 = arith.constant 0 : i32
    %c0_i32_1 = arith.constant 0 : i32
    return %arg0, %c0_i32, %c0_i32_0 : i32, i32, i32
  }
  func.func @transform_6(%arg0: i32) -> (i32, i32, i32) {
    %c0_i32 = arith.constant 0 : i32
    %c0_i32_0 = arith.constant 0 : i32
    %c0_i32_1 = arith.constant 0 : i32
    return %arg0, %c0_i32, %c0_i32_0 : i32, i32, i32
  }
  func.func @transform_7(%arg0: i32) -> (i32, i32, i32) {
    %c0_i32 = arith.constant 0 : i32
    %c0_i32_0 = arith.constant 0 : i32
    %c0_i32_1 = arith.constant 0 : i32
    return %arg0, %c0_i32, %c0_i32_0 : i32, i32, i32
  }
}

module attributes {stable_mosaic.version = 11 : i64} {
  func.func @_enhance_map_kernel(%arg0: i32, %arg1: memref<32x64xf32, #tpu.memory_space<vmem>>, %arg2: memref<32x64xf32, #tpu.memory_space<vmem>>, %arg3: memref<64x32xf32, #tpu.memory_space<vmem>>, %arg4: memref<64x32xf32, #tpu.memory_space<vmem>>, %arg5: memref<64x32xf32, #tpu.memory_space<vmem>>, %arg6: memref<1x32xf32, #tpu.memory_space<vmem>>, %arg7: memref<32x32xf32, #tpu.memory_space<vmem>>) attributes {dimension_semantics = [#tpu.dimension_semantics<parallel>], iteration_bounds = array<i64: 1>, scalar_prefetch = 0 : i64, scratch_operands = 0 : i64, tpu.core_type = #tpu.core_type<tc>, window_params = [{transform_indices = @transform_0, window_bounds = array<i64: 32, 64>}, {transform_indices = @transform_1, window_bounds = array<i64: 32, 64>}, {pipeline_mode = #tpu.pipeline_mode<synchronous>, transform_indices = @transform_2, window_bounds = array<i64: 64, 32>}, {pipeline_mode = #tpu.pipeline_mode<synchronous>, transform_indices = @transform_3, window_bounds = array<i64: 64, 32>}, {pipeline_mode = #tpu.pipeline_mode<synchronous>, transform_indices = @transform_4, window_bounds = array<i64: 64, 32>}, {pipeline_mode = #tpu.pipeline_mode<synchronous>, transform_indices = @transform_5, window_bounds = array<i64: 1, 32>}, {transform_indices = @transform_6, window_bounds = array<i64: 32, 32>}]} {
    %c0 = arith.constant 0 : index
    %c0_0 = arith.constant 0 : index
    %0 = vector.load %arg1[%c0, %c0_0] : memref<32x64xf32, #tpu.memory_space<vmem>>, vector<32x64xf32>
    %c0_1 = arith.constant 0 : index
    %c0_2 = arith.constant 0 : index
    %1 = vector.load %arg2[%c0_1, %c0_2] : memref<32x64xf32, #tpu.memory_space<vmem>>, vector<32x64xf32>
    %c0_3 = arith.constant 0 : index
    %c0_4 = arith.constant 0 : index
    %2 = vector.load %arg3[%c0_3, %c0_4] : memref<64x32xf32, #tpu.memory_space<vmem>>, vector<64x32xf32>
    %cst = arith.constant dense<0.000000e+00> : vector<32x32xf32>
    %3 = tpu.matmul %0, %2, %cst {dimension_numbers = #tpu.dot_dimension_numbers<[1], [0], [0], [1], [0, 0, 1, 1], [], []>} : vector<32x64xf32>, vector<64x32xf32>, vector<32x32xf32> -> vector<32x32xf32>
    %c0_5 = arith.constant 0 : index
    %c0_6 = arith.constant 0 : index
    %4 = vector.load %arg4[%c0_5, %c0_6] : memref<64x32xf32, #tpu.memory_space<vmem>>, vector<64x32xf32>
    %cst_7 = arith.constant dense<0.000000e+00> : vector<32x32xf32>
    %5 = tpu.matmul %1, %4, %cst_7 {dimension_numbers = #tpu.dot_dimension_numbers<[1], [0], [0], [1], [0, 0, 1, 1], [], []>} : vector<32x64xf32>, vector<64x32xf32>, vector<32x32xf32> -> vector<32x32xf32>
    %6 = arith.addf %3, %5 : vector<32x32xf32>
    %7 = arith.mulf %0, %1 : vector<32x64xf32>
    %c0_8 = arith.constant 0 : index
    %c0_9 = arith.constant 0 : index
    %8 = vector.load %arg5[%c0_8, %c0_9] : memref<64x32xf32, #tpu.memory_space<vmem>>, vector<64x32xf32>
    %cst_10 = arith.constant dense<0.000000e+00> : vector<32x32xf32>
    %9 = tpu.matmul %7, %8, %cst_10 {dimension_numbers = #tpu.dot_dimension_numbers<[1], [0], [0], [1], [0, 0, 1, 1], [], []>} : vector<32x64xf32>, vector<64x32xf32>, vector<32x32xf32> -> vector<32x32xf32>
    %10 = arith.addf %6, %9 : vector<32x32xf32>
    %c0_11 = arith.constant 0 : index
    %c0_12 = arith.constant 0 : index
    %11 = vector.load %arg6[%c0_11, %c0_12] : memref<1x32xf32, #tpu.memory_space<vmem>>, vector<1x32xf32>
    %12 = vector.broadcast %11 : vector<1x32xf32> to vector<32x32xf32>
    %13 = arith.addf %10, %12 : vector<32x32xf32>
    %cst_13 = arith.constant 0.000000e+00 : f32
    %14 = vector.broadcast %cst_13 : f32 to vector<32x32xf32>
    %15 = arith.maximumf %13, %14 : vector<32x32xf32>
    %c0_14 = arith.constant 0 : index
    %c0_15 = arith.constant 0 : index
    %16 = vector.load %arg7[%c0_14, %c0_15] : memref<32x32xf32, #tpu.memory_space<vmem>>, vector<32x32xf32>
    tpu.vector_store %arg7[%c0_14, %c0_15], %15 {strides = array<i32>} : memref<32x32xf32, #tpu.memory_space<vmem>>, vector<32x32xf32>,
    return
  }
  func.func @transform_0(%arg0: i32) -> (i32, i32) {
    %c0_i32 = arith.constant 0 : i32
    %c0_i32_0 = arith.constant 0 : i32
    return %arg0, %c0_i32 : i32, i32
  }
  func.func @transform_1(%arg0: i32) -> (i32, i32) {
    %c0_i32 = arith.constant 0 : i32
    %c0_i32_0 = arith.constant 0 : i32
    return %arg0, %c0_i32 : i32, i32
  }
  func.func @transform_2(%arg0: i32) -> (i32, i32) {
    %c0_i32 = arith.constant 0 : i32
    %c0_i32_0 = arith.constant 0 : i32
    %c0_i32_1 = arith.constant 0 : i32
    return %c0_i32, %c0_i32_0 : i32, i32
  }
  func.func @transform_3(%arg0: i32) -> (i32, i32) {
    %c0_i32 = arith.constant 0 : i32
    %c0_i32_0 = arith.constant 0 : i32
    %c0_i32_1 = arith.constant 0 : i32
    return %c0_i32, %c0_i32_0 : i32, i32
  }
  func.func @transform_4(%arg0: i32) -> (i32, i32) {
    %c0_i32 = arith.constant 0 : i32
    %c0_i32_0 = arith.constant 0 : i32
    %c0_i32_1 = arith.constant 0 : i32
    return %c0_i32, %c0_i32_0 : i32, i32
  }
  func.func @transform_5(%arg0: i32) -> (i32, i32) {
    %c0_i32 = arith.constant 0 : i32
    %c0_i32_0 = arith.constant 0 : i32
    %c0_i32_1 = arith.constant 0 : i32
    return %c0_i32, %c0_i32_0 : i32, i32
  }
  func.func @transform_6(%arg0: i32) -> (i32, i32) {
    %c0_i32 = arith.constant 0 : i32
    %c0_i32_0 = arith.constant 0 : i32
    return %arg0, %c0_i32 : i32, i32
  }
}

module attributes {stable_mosaic.version = 11 : i64} {
  func.func @_pool_kernel(%arg0: i32, %arg1: memref<1x8x64xf32, #tpu.memory_space<vmem>>, %arg2: memref<1x8x1xf32, #tpu.memory_space<vmem>>, %arg3: memref<1x1x128xf32, #tpu.memory_space<vmem>>) attributes {dimension_semantics = [#tpu.dimension_semantics<parallel>], iteration_bounds = array<i64: 4>, scalar_prefetch = 0 : i64, scratch_operands = 0 : i64, tpu.core_type = #tpu.core_type<tc>, window_params = [{transform_indices = @transform_0, window_bounds = array<i64: 1, 8, 64>}, {transform_indices = @transform_1, window_bounds = array<i64: 1, 8, 1>}, {transform_indices = @transform_2, window_bounds = array<i64: 1, 1, 128>}]} {
    %c0 = arith.constant 0 : index
    %c0_0 = arith.constant 0 : index
    %c0_1 = arith.constant 0 : index
    %0 = vector.load %arg1[%c0, %c0_0, %c0_1] : memref<1x8x64xf32, #tpu.memory_space<vmem>>, vector<1x8x64xf32>
    %1 = vector.shape_cast %0 : vector<1x8x64xf32> to vector<8x64xf32>
    %c0_2 = arith.constant 0 : index
    %c0_3 = arith.constant 0 : index
    %c0_4 = arith.constant 0 : index
    %2 = vector.load %arg2[%c0_2, %c0_3, %c0_4] : memref<1x8x1xf32, #tpu.memory_space<vmem>>, vector<1x8x1xf32>
    %3 = vector.shape_cast %2 : vector<1x8x1xf32> to vector<8x1xf32>
    %cst = arith.constant dense<0.000000e+00> : vector<1xf32>
    %4 = vector.multi_reduction <add>, %3, %cst [0] : vector<8x1xf32> to vector<1xf32>
    %5 = vector.shape_cast %4 : vector<1xf32> to vector<1x1xf32>
    %cst_5 = arith.constant 1.000000e+00 : f32
    %6 = vector.broadcast %cst_5 : f32 to vector<1x1xf32>
    %7 = arith.maximumf %5, %6 : vector<1x1xf32>
    %8 = vector.broadcast %3 : vector<8x1xf32> to vector<8x64xf32>
    %9 = arith.mulf %1, %8 : vector<8x64xf32>
    %cst_6 = arith.constant dense<0.000000e+00> : vector<64xf32>
    %10 = vector.multi_reduction <add>, %9, %cst_6 [0] : vector<8x64xf32> to vector<64xf32>
    %11 = vector.shape_cast %10 : vector<64xf32> to vector<1x64xf32>
    %12 = vector.broadcast %7 : vector<1x1xf32> to vector<1x64xf32>
    %13 = arith.divf %11, %12 : vector<1x64xf32>
    %cst_7 = arith.constant 0.000000e+00 : f32
    %14 = vector.broadcast %cst_7 : f32 to vector<8x1xf32>
    %15 = arith.cmpf ogt, %3, %14 : vector<8x1xf32>
    %cst_8 = arith.constant -1.000000e+07 : f32
    %16 = vector.shape_cast %15 : vector<8x1xi1> to vector<8x1xi1>
    %17 = vector.broadcast %16 : vector<8x1xi1> to vector<8x64xi1>
    %18 = vector.broadcast %cst_8 : f32 to vector<8x64xf32>
    %19 = arith.select %17, %1, %18 : vector<8x64xi1>, vector<8x64xf32>
    %cst_9 = arith.constant dense<0xFF800000> : vector<64xf32>
    %20 = vector.multi_reduction <maximumf>, %19, %cst_9 [0] : vector<8x64xf32> to vector<64xf32>
    %21 = vector.shape_cast %20 : vector<64xf32> to vector<1x64xf32>
    %c0_10 = arith.constant 0 : index
    %c0_11 = arith.constant 0 : index
    %c0_12 = arith.constant 0 : index
    %22 = vector.load %arg3[%c0_10, %c0_11, %c0_12] : memref<1x1x128xf32, #tpu.memory_space<vmem>>, vector<1x1x64xf32>
    %23 = vector.shape_cast %22 : vector<1x1x64xf32> to vector<1x64xf32>
    %24 = vector.shape_cast %13 : vector<1x64xf32> to vector<1x1x64xf32>
    tpu.vector_store %arg3[%c0_10, %c0_11, %c0_12], %24 {strides = array<i32>} : memref<1x1x128xf32, #tpu.memory_space<vmem>>, vector<1x1x64xf32>,
    %c0_13 = arith.constant 0 : index
    %c0_14 = arith.constant 0 : index
    %c64 = arith.constant 64 : index
    %25 = vector.load %arg3[%c0_13, %c0_14, %c64] : memref<1x1x128xf32, #tpu.memory_space<vmem>>, vector<1x1x64xf32>
    %26 = vector.shape_cast %25 : vector<1x1x64xf32> to vector<1x64xf32>
    %27 = vector.shape_cast %21 : vector<1x64xf32> to vector<1x1x64xf32>
    tpu.vector_store %arg3[%c0_13, %c0_14, %c64], %27 {strides = array<i32>} : memref<1x1x128xf32, #tpu.memory_space<vmem>>, vector<1x1x64xf32>,
    return
  }
  func.func @transform_0(%arg0: i32) -> (i32, i32, i32) {
    %c0_i32 = arith.constant 0 : i32
    %c0_i32_0 = arith.constant 0 : i32
    %c0_i32_1 = arith.constant 0 : i32
    return %arg0, %c0_i32, %c0_i32_0 : i32, i32, i32
  }
  func.func @transform_1(%arg0: i32) -> (i32, i32, i32) {
    %c0_i32 = arith.constant 0 : i32
    %c0_i32_0 = arith.constant 0 : i32
    %c0_i32_1 = arith.constant 0 : i32
    return %arg0, %c0_i32, %c0_i32_0 : i32, i32, i32
  }
  func.func @transform_2(%arg0: i32) -> (i32, i32, i32) {
    %c0_i32 = arith.constant 0 : i32
    %c0_i32_0 = arith.constant 0 : i32
    %c0_i32_1 = arith.constant 0 : i32
    return %arg0, %c0_i32, %c0_i32_0 : i32, i32, i32
  }
}

module attributes {stable_mosaic.version = 11 : i64} {
  func.func @_linear_kernel(%arg0: i32, %arg1: memref<8x256xf32, #tpu.memory_space<vmem>>, %arg2: memref<256x32xf32, #tpu.memory_space<vmem>>, %arg3: memref<1x32xf32, #tpu.memory_space<vmem>>, %arg4: memref<8x32xf32, #tpu.memory_space<vmem>>) attributes {dimension_semantics = [#tpu.dimension_semantics<parallel>], iteration_bounds = array<i64: 1>, scalar_prefetch = 0 : i64, scratch_operands = 0 : i64, tpu.core_type = #tpu.core_type<tc>, window_params = [{transform_indices = @transform_0, window_bounds = array<i64: 8, 256>}, {pipeline_mode = #tpu.pipeline_mode<synchronous>, transform_indices = @transform_1, window_bounds = array<i64: 256, 32>}, {pipeline_mode = #tpu.pipeline_mode<synchronous>, transform_indices = @transform_2, window_bounds = array<i64: 1, 32>}, {transform_indices = @transform_3, window_bounds = array<i64: 8, 32>}]} {
    %c0 = arith.constant 0 : index
    %c0_0 = arith.constant 0 : index
    %0 = vector.load %arg1[%c0, %c0_0] : memref<8x256xf32, #tpu.memory_space<vmem>>, vector<8x256xf32>
    %c0_1 = arith.constant 0 : index
    %c0_2 = arith.constant 0 : index
    %1 = vector.load %arg2[%c0_1, %c0_2] : memref<256x32xf32, #tpu.memory_space<vmem>>, vector<256x32xf32>
    %cst = arith.constant dense<0.000000e+00> : vector<8x32xf32>
    %2 = tpu.matmul %0, %1, %cst {dimension_numbers = #tpu.dot_dimension_numbers<[1], [0], [0], [1], [0, 0, 1, 1], [], []>} : vector<8x256xf32>, vector<256x32xf32>, vector<8x32xf32> -> vector<8x32xf32>
    %c0_3 = arith.constant 0 : index
    %c0_4 = arith.constant 0 : index
    %3 = vector.load %arg3[%c0_3, %c0_4] : memref<1x32xf32, #tpu.memory_space<vmem>>, vector<1x32xf32>
    %4 = vector.broadcast %3 : vector<1x32xf32> to vector<8x32xf32>
    %5 = arith.addf %2, %4 : vector<8x32xf32>
    %6 = math.tanh %5 : vector<8x32xf32>
    %c0_5 = arith.constant 0 : index
    %c0_6 = arith.constant 0 : index
    %7 = vector.load %arg4[%c0_5, %c0_6] : memref<8x32xf32, #tpu.memory_space<vmem>>, vector<8x32xf32>
    tpu.vector_store %arg4[%c0_5, %c0_6], %6 {strides = array<i32>} : memref<8x32xf32, #tpu.memory_space<vmem>>, vector<8x32xf32>,
    return
  }
  func.func @transform_0(%arg0: i32) -> (i32, i32) {
    %c0_i32 = arith.constant 0 : i32
    %c0_i32_0 = arith.constant 0 : i32
    return %arg0, %c0_i32 : i32, i32
  }
  func.func @transform_1(%arg0: i32) -> (i32, i32) {
    %c0_i32 = arith.constant 0 : i32
    %c0_i32_0 = arith.constant 0 : i32
    %c0_i32_1 = arith.constant 0 : i32
    return %c0_i32, %c0_i32_0 : i32, i32
  }
  func.func @transform_2(%arg0: i32) -> (i32, i32) {
    %c0_i32 = arith.constant 0 : i32
    %c0_i32_0 = arith.constant 0 : i32
    %c0_i32_1 = arith.constant 0 : i32
    return %c0_i32, %c0_i32_0 : i32, i32
  }
  func.func @transform_3(%arg0: i32) -> (i32, i32) {
    %c0_i32 = arith.constant 0 : i32
    %c0_i32_0 = arith.constant 0 : i32
    return %arg0, %c0_i32 : i32, i32
  }
}

module attributes {stable_mosaic.version = 11 : i64} {
  func.func @_linear_kernel(%arg0: i32, %arg1: memref<8x32xf32, #tpu.memory_space<vmem>>, %arg2: memref<32x3xf32, #tpu.memory_space<vmem>>, %arg3: memref<1x3xf32, #tpu.memory_space<vmem>>, %arg4: memref<8x3xf32, #tpu.memory_space<vmem>>) attributes {dimension_semantics = [#tpu.dimension_semantics<parallel>], iteration_bounds = array<i64: 1>, scalar_prefetch = 0 : i64, scratch_operands = 0 : i64, tpu.core_type = #tpu.core_type<tc>, window_params = [{transform_indices = @transform_0, window_bounds = array<i64: 8, 32>}, {pipeline_mode = #tpu.pipeline_mode<synchronous>, transform_indices = @transform_1, window_bounds = array<i64: 32, 3>}, {pipeline_mode = #tpu.pipeline_mode<synchronous>, transform_indices = @transform_2, window_bounds = array<i64: 1, 3>}, {transform_indices = @transform_3, window_bounds = array<i64: 8, 3>}]} {
    %c0 = arith.constant 0 : index
    %c0_0 = arith.constant 0 : index
    %0 = vector.load %arg1[%c0, %c0_0] : memref<8x32xf32, #tpu.memory_space<vmem>>, vector<8x32xf32>
    %c0_1 = arith.constant 0 : index
    %c0_2 = arith.constant 0 : index
    %1 = vector.load %arg2[%c0_1, %c0_2] : memref<32x3xf32, #tpu.memory_space<vmem>>, vector<32x3xf32>
    %cst = arith.constant dense<0.000000e+00> : vector<8x3xf32>
    %2 = tpu.matmul %0, %1, %cst {dimension_numbers = #tpu.dot_dimension_numbers<[1], [0], [0], [1], [0, 0, 1, 1], [], []>} : vector<8x32xf32>, vector<32x3xf32>, vector<8x3xf32> -> vector<8x3xf32>
    %c0_3 = arith.constant 0 : index
    %c0_4 = arith.constant 0 : index
    %3 = vector.load %arg3[%c0_3, %c0_4] : memref<1x3xf32, #tpu.memory_space<vmem>>, vector<1x3xf32>
    %4 = vector.broadcast %3 : vector<1x3xf32> to vector<8x3xf32>
    %5 = arith.addf %2, %4 : vector<8x3xf32>
    %c0_5 = arith.constant 0 : index
    %c0_6 = arith.constant 0 : index
    %6 = vector.load %arg4[%c0_5, %c0_6] : memref<8x3xf32, #tpu.memory_space<vmem>>, vector<8x3xf32>
    tpu.vector_store %arg4[%c0_5, %c0_6], %5 {strides = array<i32>} : memref<8x3xf32, #tpu.memory_space<vmem>>, vector<8x3xf32>,
    return
  }
  func.func @transform_0(%arg0: i32) -> (i32, i32) {
    %c0_i32 = arith.constant 0 : i32
    %c0_i32_0 = arith.constant 0 : i32
    return %arg0, %c0_i32 : i32, i32
  }
  func.func @transform_1(%arg0: i32) -> (i32, i32) {
    %c0_i32 = arith.constant 0 : i32
    %c0_i32_0 = arith.constant 0 : i32
    %c0_i32_1 = arith.constant 0 : i32
    return %c0_i32, %c0_i32_0 : i32, i32
  }
  func.func @transform_2(%arg0: i32) -> (i32, i32) {
    %c0_i32 = arith.constant 0 : i32
    %c0_i32_0 = arith.constant 0 : i32
    %c0_i32_1 = arith.constant 0 : i32
    return %c0_i32, %c0_i32_0 : i32, i32
  }
  func.func @transform_3(%arg0: i32) -> (i32, i32) {
    %c0_i32 = arith.constant 0 : i32
    %c0_i32_0 = arith.constant 0 : i32
    return %arg0, %c0_i32 : i32, i32
  }
}

</mosaic_0001>

<llo_original>
// kernel: esim_forward.10
$region0: #{esim_forward.10}
  #allocation0 [shape = 'u32[]', space=smem, size = 0x4, offset = 0x4, fixed_abs, tag = 'smem constant byte address 0x4 - core index']
  #allocation1 [shape = 'u32[144,128]{1,0:T(1,128)}', space=vmem, size = 0x12000, scoped, tag = 'internal scratch']
  #allocation2 [shape = 'f32[4,64]{1,0:T(4,128)}', space=vmem, size = 0x800, scoped, tag = 'scratch operand']
  #allocation3 [shape = 'f32[4,64]{1,0:T(4,128)}', space=vmem, size = 0x800, scoped, tag = 'scratch operand']
  %s0 = inlined_call_operand.vmem [shape: f32[8,4,256], index: 0, kind: input, shape index: {}]
  %s1 = inlined_call_operand.vmem [shape: f32[64,256], index: 1, kind: input, shape index: {}]
  %s2 = inlined_call_operand.vmem [shape: f32[8,4,1], index: 2, kind: input, shape index: {}]
  %s3 = inlined_call_operand.vmem [shape: f32[8,4,64], index: 3, kind: output, shape index: {}]
  %s4 = sld [smem:[#allocation0]]
  $region49: #{esim_forward.10} parent=0
    _
  %s6 = ssub.s32 1, %s4
  %s7 = scalar_select 0, %s6, %s4
  loop: start=0, step=1, limit=10
  $region2: #{esim_forward.10} parent=0 // loop_pre_header
    _
  $region3: #{esim_forward.10} parent=0 // loop_header
    %s9 = sphi 0, %s13
    %p10 = scmp.ge.s32.totalorder %s9, 10
    %s19 = sphi 0, %s21
    %s22 = sphi 0, %s19
    %s23 = sphi 0, %s22
    %s39 = sphi 0, %s23
    %s43 = sphi 0, %s43
    %s45 = sphi 0, %s43
    %s46 = sphi 0, %s45
    %s60 = sphi 0, %s46
    %s66 = sphi 0, %s68
    %s69 = sphi 0, %s66
    %s70 = sphi 0, %s69
    %s86 = sphi 0, %s70
    %s92 = sphi 0, %s94
    %s95 = sphi 0, %s92
    %s96 = sphi 0, %s95
    %s112 = sphi 0, %s96
  $region4: #{esim_forward.10} parent=0 // loop_header_branch
    %12 = sbr.rel (%p10) target = $region8
  $region5: #{esim_forward.10} parent=0 // loop_body
    %s14 = ssub.s32 %s9, 1
    %s15 = ssub.s32 %s9, 2
    %s16 = sadd.s32 %s9, 1
    %s17 = ssub.s32 %s9, %s16
    %p18 = scmp.eq.s32.totalorder %s17, 0
    %s20 = sadd.s32 %s19, 1
    %s21 = scalar_select %p18, %s19, %s20
    %p24 = pneg %p18
    %p25 = scmp.eq.s32.totalorder %s9, 7
    %p26 = por %p24, %p25
    %p27 = scmp.ne.s32.totalorder %s19, %s22
    %p28 = scmp.eq.s32.totalorder %s9, 0
    %p29 = por %p27, %p28
    %p30 = scmp.ne.s32.totalorder %s19, %s22
    %p31 = scmp.eq.s32.totalorder %s14, 7
    %p32 = por %p30, %p31
    %p33 = scmp.ne.s32.totalorder %s22, %s23
    %p34 = scmp.eq.s32.totalorder %s14, 0
    %p35 = por %p33, %p34
    %p36 = scmp.ne.s32.totalorder %s22, %s23
    %p37 = scmp.eq.s32.totalorder %s15, 7
    %p38 = por %p36, %p37
    %p40 = scmp.ne.s32.totalorder %s23, %s39
    %p41 = scmp.eq.s32.totalorder %s15, 0
    %p42 = por %p40, %p41
    %s44 = sadd.s32 %s43, 1
    %p47 = scmp.eq.s32.totalorder %s9, 7
    %p48 = scmp.ne.s32.totalorder %s43, %s45
    %p49 = scmp.eq.s32.totalorder %s9, 0
    %p50 = por %p48, %p49
    %p51 = scmp.ne.s32.totalorder %s43, %s45
    %p52 = scmp.eq.s32.totalorder %s14, 7
    %p53 = por %p51, %p52
    %p54 = scmp.ne.s32.totalorder %s45, %s46
    %p55 = scmp.eq.s32.totalorder %s14, 0
    %p56 = por %p54, %p55
    %p57 = scmp.ne.s32.totalorder %s45, %s46
    %p58 = scmp.eq.s32.totalorder %s15, 7
    %p59 = por %p57, %p58
    %p61 = scmp.ne.s32.totalorder %s46, %s60
    %p62 = scmp.eq.s32.totalorder %s15, 0
    %p63 = por %p61, %p62
    %s64 = ssub.s32 %s9, %s16
    %p65 = scmp.eq.s32.totalorder %s64, 0
    %s67 = sadd.s32 %s66, 1
    %s68 = scalar_select %p65, %s66, %s67
    %p71 = pneg %p65
    %p72 = scmp.eq.s32.totalorder %s9, 7
    %p73 = por %p71, %p72
    %p74 = scmp.ne.s32.totalorder %s66, %s69
    %p75 = scmp.eq.s32.totalorder %s9, 0
    %p76 = por %p74, %p75
    %p77 = scmp.ne.s32.totalorder %s66, %s69
    %p78 = scmp.eq.s32.totalorder %s14, 7
    %p79 = por %p77, %p78
    %p80 = scmp.ne.s32.totalorder %s69, %s70
    %p81 = scmp.eq.s32.totalorder %s14, 0
    %p82 = por %p80, %p81
    %p83 = scmp.ne.s32.totalorder %s69, %s70
    %p84 = scmp.eq.s32.totalorder %s15, 7
    %p85 = por %p83, %p84
    %p87 = scmp.ne.s32.totalorder %s70, %s86
    %p88 = scmp.eq.s32.totalorder %s15, 0
    %p89 = por %p87, %p88
    %s90 = ssub.s32 %s9, %s16
    %p91 = scmp.eq.s32.totalorder %s90, 0
    %s93 = sadd.s32 %s92, 1
    %s94 = scalar_select %p91, %s92, %s93
    %p97 = pneg %p91
    %p98 = scmp.eq.s32.totalorder %s9, 7
    %p99 = por %p97, %p98
    %p100 = scmp.ne.s32.totalorder %s92, %s95
    %p101 = scmp.eq.s32.totalorder %s9, 0
    %p102 = por %p100, %p101
    %p103 = scmp.ne.s32.totalorder %s92, %s95
    %p104 = scmp.eq.s32.totalorder %s14, 7
    %p105 = por %p103, %p104
    %p106 = scmp.ne.s32.totalorder %s95, %s96
    %p107 = scmp.eq.s32.totalorder %s14, 0
    %p108 = por %p106, %p107
    %p109 = scmp.ne.s32.totalorder %s95, %s96
    %p110 = scmp.eq.s32.totalorder %s15, 7
    %p111 = por %p109, %p110
    %p113 = scmp.ne.s32.totalorder %s96, %s112
    %p114 = scmp.eq.s32.totalorder %s15, 0
    %p115 = por %p113, %p114
    %p116 = scmp.le.s32.totalorder 1, %s9
    %p117 = scmp.lt.s32.totalorder %s9, 9
    %p118 = pnand %p116, %p117
    %p119 = pneg %p118
    // Predicated region
    $region9: #{esim_forward.10} parent=5 // pred_check
      _
    $region10: #{esim_forward.10} parent=5 // pred_check_branch
      %121 = sbr.rel (%p118) target = $region12
    $region11: #{esim_forward.10} parent=5 // pred_region
      %s122 = ssub.s32 %s9, 1
      // Predicated region
      $region13: #{esim_forward.10} parent=11 // pred_check
        %p123 = pneg %p56
      $region14: #{esim_forward.10} parent=11 // pred_check_branch
        %125 = sbr.rel (%p123) target = $region16
      $region15: #{esim_forward.10} parent=11 // pred_region
        _
      $region16: #{esim_forward.10} parent=11 // pred_fallthru
        _
    $region12: #{esim_forward.10} parent=5 // pred_fallthru
      _
    %p126 = scmp.lt.s32.totalorder %s9, 8
    // Predicated region
    $region17: #{esim_forward.10} parent=5 // pred_check
      %p127 = pneg %p126
    $region18: #{esim_forward.10} parent=5 // pred_check_branch
      %129 = sbr.rel (%p127) target = $region20
    $region19: #{esim_forward.10} parent=5 // pred_region
      // Predicated region
      $region21: #{esim_forward.10} parent=19 // pred_check
        %p130 = pneg %p29
      $region22: #{esim_forward.10} parent=19 // pred_check_branch
        %132 = sbr.rel (%p130) target = $region24
      $region23: #{esim_forward.10} parent=19 // pred_region
        %p133 = scmp.lt.s32.totalorder %s9, 7
        %s134 = scalar_select %p133, %s9, 7
        %s135 = smul.addr %s134, 2
        %s136 = smul.addr %s135, 4
        %s137 = scalar_lea.vmem %s0, %s136
      $region24: #{esim_forward.10} parent=19 // pred_fallthru
        _
      // Predicated region
      $region25: #{esim_forward.10} parent=19 // pred_check
        %p138 = pneg %p76
      $region26: #{esim_forward.10} parent=19 // pred_check_branch
        %140 = sbr.rel (%p138) target = $region28
      $region27: #{esim_forward.10} parent=19 // pred_region
        %p141 = scmp.lt.s32.totalorder %s9, 7
        %s142 = scalar_select %p141, %s9, 7
        %s143 = smul.addr %s142, 4
        %s144 = scalar_lea.vmem %s2, %s143
      $region28: #{esim_forward.10} parent=19 // pred_fallthru
        _
    $region20: #{esim_forward.10} parent=5 // pred_fallthru
      _
    %p145 = scmp.le.s32.totalorder 1, %s9
    %p146 = scmp.lt.s32.totalorder %s9, 9
    %p147 = pnand %p145, %p146
    %p148 = pneg %p147
    // Predicated region
    $region29: #{esim_forward.10} parent=5 // pred_check
      _
    $region30: #{esim_forward.10} parent=5 // pred_check_branch
      %150 = sbr.rel (%p147) target = $region32
    $region31: #{esim_forward.10} parent=5 // pred_region
      %s151 = ssub.s32 %s9, 1
      %p152 = scmp.lt.s32.totalorder %s14, 7
      %s153 = scalar_select %p152, %s14, 7
      %s154 = smul.addr %s153, 2
      %s155 = smul.addr %s154, 4
      %s156 = scalar_lea.vmem %s0, %s155
      %p157 = pneg %p35
      %p158 = pneg %p32
      %p159 = pneg %p56
      %p160 = pneg %p53
      %p161 = scmp.lt.s32.totalorder %s14, 7
      %s162 = scalar_select %p161, %s14, 7
      %s163 = smul.addr %s162, 4
      %s164 = scalar_lea.vmem %s2, %s163
      %p165 = pneg %p82
      %p166 = pneg %p79
      %p167 = pneg %p108
      %p168 = pneg %p105
      %p169 = scmp.lt.s32.totalorder %s14, 7
      %s170 = scalar_select %p169, %s14, 7
      %s171 = smul.addr %s170, 4
      %s172 = scalar_lea.vmem %s3, %s171
      %p173 = scmp.lt.s32.totalorder %s14, 7
      %s174 = scalar_select %p173, %s14, 7
      %s175 = smul.addr %s174, 2
      %s176 = smul.addr %s175, 4
      %s177 = scalar_lea.vmem %s0, %s176
      %p178 = scmp.lt.s32.totalorder %s14, 7
      %s179 = scalar_select %p178, %s14, 7
      %s180 = smul.addr %s179, 4
      %s181 = scalar_lea.vmem %s2, %s180
      %p182 = scmp.lt.s32.totalorder %s14, 7
      %s183 = scalar_select %p182, %s14, 7
      %s184 = smul.addr %s183, 4
      %s185 = scalar_lea.vmem %s3, %s184
      %p186 = scmp.eq.s32.totalorder %s14, 0
      // Predicated region
      $region33: #{esim_forward.10} parent=31 // pred_check
        %p187 = pneg %p186
      $region34: #{esim_forward.10} parent=31 // pred_check_branch
        %189 = sbr.rel (%p187) target = $region36
      $region35: #{esim_forward.10} parent=31 // pred_region
        %vm190 = vcmask 519168
        %191 = vst.msk [vmem:[#allocation2] sm:$0xf] %vm190, 0.0
        %192 = vst.msk [vmem:[#allocation3] sm:$0xf] %vm190, 0.0
      $region36: #{esim_forward.10} parent=31 // pred_fallthru
        _
      %v193 = vld [vmem:[%s177] sm:$0xff]
      %v194 = vld [vmem:[%s181] sm:$0xf]
      %v195 = vld [vmem:[#allocation2] sm:$0xf]
      %v196 = vld [vmem:[#allocation3] sm:$0xf]
      %v197 = vld [vmem:[%s1] sm:$0xff]
      %v198 = vld [vmem:[%s1 + $0x8] sm:$0xff]
      %v199 = vld [vmem:[%s1 + $0x10] sm:$0xff]
      %v200 = vld [vmem:[%s1 + $0x18] sm:$0xff]
      %v201 = vld [vmem:[%s1 + $0x20] sm:$0xff]
      %v202 = vld [vmem:[%s1 + $0x28] sm:$0xff]
      %v203 = vld [vmem:[%s1 + $0x30] sm:$0xff]
      %v204 = vld [vmem:[%s1 + $0x38] sm:$0xff]
      %v205 = vld [vmem:[%s1 + $0x40] sm:$0xff]
      %v206 = vld [vmem:[%s1 + $0x48] sm:$0xff]
      %v207 = vld [vmem:[%s1 + $0x50] sm:$0xff]
      %v208 = vld [vmem:[%s1 + $0x58] sm:$0xff]
      %v209 = vld [vmem:[%s1 + $0x60] sm:$0xff]
      %v210 = vld [vmem:[%s1 + $0x68] sm:$0xff]
      %v211 = vld [vmem:[%s1 + $0x70] sm:$0xff]
      %v212 = vld [vmem:[%s1 + $0x78] sm:$0xff]
      %vm213 = vcmask 523264
      %v215 = vsel %vm213, %v195, 0
      %217 = vmatprep.subr.mxu0 0.0
      %218 = vmatpush1.msra.mxu0 0.0
      %219 = vmatprep.subr.mxu0 0.0
      %220 = vmatpush1.msra.mxu0 0.0
      %221 = vmatprep.subr.mxu0 0.0
      %222 = vmatpush1.msra.mxu0 0.0
      %223 = vmatprep.subr.mxu0 0.0
      %224 = vmatpush1.msra.mxu0 0.0
      %225 = vmatprep.subr.mxu0 0.0
      %226 = vmatpush1.msra.mxu0 0.0
      %227 = vmatprep.subr.mxu0 0.0
      %228 = vmatpush1.msra.mxu0 0.0
      %229 = vmatprep.subr.mxu0 0.0
      %230 = vmatpush1.msra.mxu0 0.0
      %231 = vmatprep.subr.mxu0 0.0
      %232 = vmatpush1.msra.mxu0 0.0
      %233 = vmatprep.subr.mxu0 %v212
      %234 = vmatpush1.msra.mxu0 %v211
      %235 = vmatprep.subr.mxu0 %v210
      %236 = vmatpush1.msra.mxu0 %v209
      %237 = vmatprep.subr.mxu0 %v208
      %238 = vmatpush1.msra.mxu0 %v207
      %239 = vmatprep.subr.mxu0 %v206
      %240 = vmatpush1.msra.mxu0 %v205
      %241 = vmatprep.subr.mxu0 %v204
      %242 = vmatpush1.msra.mxu0 %v203
      %243 = vmatprep.subr.mxu0 %v202
      %244 = vmatpush1.msra.mxu0 %v201
      %245 = vmatprep.subr.mxu0 %v200
      %246 = vmatpush1.msra.mxu0 %v199
      %247 = vmatprep.subr.mxu0 %v198
      %248 = vmatpush1.msra.mxu0 %v197
      %249 = vmatprep.subr.mxu0 0.0
      %250 = vmatpush2.msra.mxu0 0.0
      %251 = vmatprep.subr.mxu0 0.0
      %252 = vmatpush2.msra.mxu0 0.0
      %253 = vmatprep.subr.mxu0 0.0
      %254 = vmatpush2.msra.mxu0 0.0
      %255 = vmatprep.subr.mxu0 0.0
      %256 = vmatpush2.msra.mxu0 0.0
      %257 = vmatprep.subr.mxu0 0.0
      %258 = vmatpush2.msra.mxu0 0.0
      %259 = vmatprep.subr.mxu0 0.0
      %260 = vmatpush2.msra.mxu0 0.0
      %261 = vmatprep.subr.mxu0 0.0
      %262 = vmatpush2.msra.mxu0 0.0
      %263 = vmatprep.subr.mxu0 0.0
      %264 = vmatpush2.msra.mxu0 0.0
      %265 = vmatprep.subr.mxu0 0.0
      %266 = vmatpush2.msra.mxu0 0.0
      %267 = vmatprep.subr.mxu0 0.0
      %268 = vmatpush2.msra.mxu0 0.0
      %269 = vmatprep.subr.mxu0 0.0
      %270 = vmatpush2.msra.mxu0 0.0
      %271 = vmatprep.subr.mxu0 0.0
      %272 = vmatpush2.msra.mxu0 0.0
      %273 = vmatprep.subr.mxu0 0.0
      %274 = vmatpush2.msra.mxu0 0.0
      %275 = vmatprep.subr.mxu0 0.0
      %276 = vmatpush2.msra.mxu0 0.0
      %277 = vmatprep.subr.mxu0 0.0
      %278 = vmatpush2.msra.mxu0 0.0
      %279 = vmatprep.subr.mxu0 0.0
      %280 = vmatpush2.msra.mxu0 0.0
      %281 = vmatprep.mubr.f32.mxu0 0.0
      %282 = vmatmul.mubr.f32.gmra.mxu0 %v215
      %v283 = vpop.f32.mrf.mxu0
      %v284 = vadd.f32 0.0, %v283
      %v285 = vpop.f32.mrf.mxu0
      %v286 = vadd.f32 0.0, %v285
      %287 = vdwg.mxu0
      %v290 = vcombine.low %v284, %v286
      %v292 = vadd.f32 %v193, %v290
      %v293 = vsub.f32 0.0, %v292
      %v294 = vmul.f32 %v293, 1.442695
      %v295 = vpow.pop %v294
      %v296 = vadd.f32 %v295, 1.0
      %v297 = vrcp.pop %v296
      %v298 = vmul.f32 1.0, %v297
      %v299 = vtanh.pop %v292
      %301 = vrot.lane.b32.xlu0 %v196, 32
      %v302 = vpop.permute.xlu0 %301
      %v304 = vmul.f32 %v298, %v302
      %306 = vrot.lane.b32.xlu0 %v299, 32
      %v307 = vpop.permute.xlu0 %306
      %v309 = vmul.f32 %v298, %v307
      %311 = vrot.lane.b32.xlu0 %v309, 32
      %v312 = vpop.permute.xlu0 %311
      %v314 = vadd.f32 %v304, %v312
      %v315 = vtanh.pop %v314
      %317 = vrot.lane.b32.xlu0 %v315, 32
      %v318 = vpop.permute.xlu0 %317
      %v320 = vmul.f32 %v298, %v318
      %v322 = vrot.slane %v292, 4
      %v324 = vsub.f32 0.0, %v322
      %v325 = vmul.f32 %v324, 1.442695
      %v326 = vpow.pop %v325
      %v327 = vadd.f32 %v326, 1.0
      %v328 = vrcp.pop %v327
      %v329 = vmul.f32 1.0, %v328
      %330 = vrot.lane.b32.xlu0 %v292, 32
      %v331 = vpop.permute.xlu0 %330
      %v332 = vrot.slane %v331, 4
      %v334 = vtanh.pop %v332
      %v335 = vmul.f32 %v329, %v196
      %v336 = vmul.f32 %v329, %v334
      %338 = vrot.lane.b32.xlu0 %v336, 32
      %v339 = vpop.permute.xlu0 %338
      %v341 = vadd.f32 %v335, %v339
      %v342 = vtanh.pop %v341
      %344 = vrot.lane.b32.xlu0 %v342, 32
      %v345 = vpop.permute.xlu0 %344
      %v347 = vmul.f32 %v329, %v345
      %349 = vrot.lane.b32.xlu0 %v320, 64
      %v350 = vpop.permute.xlu0 %349
      %353 = vrot.lane.b32.xlu0 %v347, 96
      %v354 = vpop.permute.xlu0 %353
      %vm356 = vcmask 261120
      %v357 = vsel %vm356, %v350, %v354
      %359 = vrot.lane.b32.xlu0 %v314, 96
      %v360 = vpop.permute.xlu0 %359
      %v362 = vsel %vm356, %v360, %v341
      %vm363 = vcmp.gt.f32.partialorder %v194, 0.0
      %v364 = vsel %vm363, 1, 0
      %365 = vset.pattern.permute.xlu0 0
      %366 = vperm.xlu0 %365, %v364
      %v367 = vpop.permute.xlu0 %366
      %vm368 = vcmp.eq.s32.totalorder %v367, 1
      %v369 = vsel %vm368, %v357, %v195
      %vm370 = vcmask 519168
      %371 = vst.msk [vmem:[#allocation2] sm:$0xf] %vm370, %v369
      %v372 = vsel %vm368, %v362, %v196
      %373 = vst.msk [vmem:[#allocation3] sm:$0xf] %vm370, %v372
      %v374 = vsel %vm368, %v357, 0.0
      %375 = vst.msk [vmem:[%s185] sm:$0xf] %vm370, %v374
      %p376 = scmp.lt.s32.totalorder %s14, 7
      %s377 = scalar_select %p376, %s14, 7
      %s378 = smul.addr %s377, 4
      %s379 = scalar_lea.vmem %s3, %s378
      // Predicated region
      $region37: #{esim_forward.10} parent=31 // pred_check
        %p380 = pneg %p105
      $region38: #{esim_forward.10} parent=31 // pred_check_branch
        %382 = sbr.rel (%p380) target = $region40
      $region39: #{esim_forward.10} parent=31 // pred_region
        _
      $region40: #{esim_forward.10} parent=31 // pred_fallthru
        _
    $region32: #{esim_forward.10} parent=5 // pred_fallthru
      _
    %p383 = scmp.le.s32.totalorder 2, %s9
    // Predicated region
    $region41: #{esim_forward.10} parent=5 // pred_check
      %p384 = pneg %p383
    $region42: #{esim_forward.10} parent=5 // pred_check_branch
      %386 = sbr.rel (%p384) target = $region44
    $region43: #{esim_forward.10} parent=5 // pred_region
      %s387 = ssub.s32 %s9, 2
      // Predicated region
      $region45: #{esim_forward.10} parent=43 // pred_check
        %p388 = pneg %p111
      $region46: #{esim_forward.10} parent=43 // pred_check_branch
        %390 = sbr.rel (%p388) target = $region48
      $region47: #{esim_forward.10} parent=43 // pred_region
        %p391 = scmp.lt.s32.totalorder %s15, 7
        %s392 = scalar_select %p391, %s15, 7
        %s393 = smul.addr %s392, 4
        %s394 = scalar_lea.vmem %s3, %s393
      $region48: #{esim_forward.10} parent=43 // pred_fallthru
        _
    $region44: #{esim_forward.10} parent=5 // pred_fallthru
      _
  $region6: #{esim_forward.10} parent=0 // loop_footer
    %s13 = sadd.s32 1, %s9
  $region7: #{esim_forward.10} parent=0 // loop_footer_branch
    %8 = sbr.rel target = $region3
  $region8: #{esim_forward.10} parent=0 // loop_exit
    _

// kernel: esim_forward.9
$region0: #{esim_forward.9}
  #allocation0 [shape = 'u32[]', space=smem, size = 0x4, offset = 0x4, fixed_abs, tag = 'smem constant byte address 0x4 - core index']
  #allocation1 [shape = 'u32[144,128]{1,0:T(1,128)}', space=vmem, size = 0x12000, scoped, tag = 'internal scratch']
  %s0 = inlined_call_operand.vmem [shape: f32[8,4,32], index: 0, kind: input, shape index: {}]
  %s1 = inlined_call_operand.vmem [shape: f32[8,4,32], index: 1, kind: input, shape index: {}]
  %s2 = inlined_call_operand.vmem [shape: f32[32,128], index: 2, kind: input, shape index: {}]
  %s3 = inlined_call_operand.vmem [shape: f32[32,128], index: 3, kind: input, shape index: {}]
  %s4 = inlined_call_operand.vmem [shape: f32[1,256], index: 4, kind: input, shape index: {}]
  %s5 = inlined_call_operand.vmem [shape: f32[8,4,256], index: 5, kind: output, shape index: {}]
  %s6 = sld [smem:[#allocation0]]
  $region53: #{esim_forward.9} parent=0
    _
  %s8 = ssub.s32 1, %s6
  %s9 = scalar_select 0, %s8, %s6
  loop: start=0, step=1, limit=10
  $region2: #{esim_forward.9} parent=0 // loop_pre_header
    _
  $region3: #{esim_forward.9} parent=0 // loop_header
    %s11 = sphi 0, %s15
    %p12 = scmp.ge.s32.totalorder %s11, 10
    %s21 = sphi 0, %s23
    %s24 = sphi 0, %s21
    %s25 = sphi 0, %s24
    %s41 = sphi 0, %s25
    %s47 = sphi 0, %s49
    %s50 = sphi 0, %s47
    %s51 = sphi 0, %s50
    %s67 = sphi 0, %s51
    %s71 = sphi 0, %s71
    %s73 = sphi 0, %s71
    %s74 = sphi 0, %s73
    %s88 = sphi 0, %s74
    %s92 = sphi 0, %s92
    %s94 = sphi 0, %s92
    %s95 = sphi 0, %s94
    %s109 = sphi 0, %s95
    %s113 = sphi 0, %s113
    %s115 = sphi 0, %s113
    %s116 = sphi 0, %s115
    %s130 = sphi 0, %s116
    %s136 = sphi 0, %s138
    %s139 = sphi 0, %s136
    %s140 = sphi 0, %s139
    %s156 = sphi 0, %s140
  $region4: #{esim_forward.9} parent=0 // loop_header_branch
    %14 = sbr.rel (%p12) target = $region8
  $region5: #{esim_forward.9} parent=0 // loop_body
    %s16 = ssub.s32 %s11, 1
    %s17 = ssub.s32 %s11, 2
    %s18 = sadd.s32 %s11, 1
    %s19 = ssub.s32 %s11, %s18
    %p20 = scmp.eq.s32.totalorder %s19, 0
    %s22 = sadd.s32 %s21, 1
    %s23 = scalar_select %p20, %s21, %s22
    %p26 = pneg %p20
    %p27 = scmp.eq.s32.totalorder %s11, 7
    %p28 = por %p26, %p27
    %p29 = scmp.ne.s32.totalorder %s21, %s24
    %p30 = scmp.eq.s32.totalorder %s11, 0
    %p31 = por %p29, %p30
    %p32 = scmp.ne.s32.totalorder %s21, %s24
    %p33 = scmp.eq.s32.totalorder %s16, 7
    %p34 = por %p32, %p33
    %p35 = scmp.ne.s32.totalorder %s24, %s25
    %p36 = scmp.eq.s32.totalorder %s16, 0
    %p37 = por %p35, %p36
    %p38 = scmp.ne.s32.totalorder %s24, %s25
    %p39 = scmp.eq.s32.totalorder %s17, 7
    %p40 = por %p38, %p39
    %p42 = scmp.ne.s32.totalorder %s25, %s41
    %p43 = scmp.eq.s32.totalorder %s17, 0
    %p44 = por %p42, %p43
    %s45 = ssub.s32 %s11, %s18
    %p46 = scmp.eq.s32.totalorder %s45, 0
    %s48 = sadd.s32 %s47, 1
    %s49 = scalar_select %p46, %s47, %s48
    %p52 = pneg %p46
    %p53 = scmp.eq.s32.totalorder %s11, 7
    %p54 = por %p52, %p53
    %p55 = scmp.ne.s32.totalorder %s47, %s50
    %p56 = scmp.eq.s32.totalorder %s11, 0
    %p57 = por %p55, %p56
    %p58 = scmp.ne.s32.totalorder %s47, %s50
    %p59 = scmp.eq.s32.totalorder %s16, 7
    %p60 = por %p58, %p59
    %p61 = scmp.ne.s32.totalorder %s50, %s51
    %p62 = scmp.eq.s32.totalorder %s16, 0
    %p63 = por %p61, %p62
    %p64 = scmp.ne.s32.totalorder %s50, %s51
    %p65 = scmp.eq.s32.totalorder %s17, 7
    %p66 = por %p64, %p65
    %p68 = scmp.ne.s32.totalorder %s51, %s67
    %p69 = scmp.eq.s32.totalorder %s17, 0
    %p70 = por %p68, %p69
    %s72 = sadd.s32 %s71, 1
    %p75 = scmp.eq.s32.totalorder %s11, 7
    %p76 = scmp.ne.s32.totalorder %s71, %s73
    %p77 = scmp.eq.s32.totalorder %s11, 0
    %p78 = por %p76, %p77
    %p79 = scmp.ne.s32.totalorder %s71, %s73
    %p80 = scmp.eq.s32.totalorder %s16, 7
    %p81 = por %p79, %p80
    %p82 = scmp.ne.s32.totalorder %s73, %s74
    %p83 = scmp.eq.s32.totalorder %s16, 0
    %p84 = por %p82, %p83
    %p85 = scmp.ne.s32.totalorder %s73, %s74
    %p86 = scmp.eq.s32.totalorder %s17, 7
    %p87 = por %p85, %p86
    %p89 = scmp.ne.s32.totalorder %s74, %s88
    %p90 = scmp.eq.s32.totalorder %s17, 0
    %p91 = por %p89, %p90
    %s93 = sadd.s32 %s92, 1
    %p96 = scmp.eq.s32.totalorder %s11, 7
    %p97 = scmp.ne.s32.totalorder %s92, %s94
    %p98 = scmp.eq.s32.totalorder %s11, 0
    %p99 = por %p97, %p98
    %p100 = scmp.ne.s32.totalorder %s92, %s94
    %p101 = scmp.eq.s32.totalorder %s16, 7
    %p102 = por %p100, %p101
    %p103 = scmp.ne.s32.totalorder %s94, %s95
    %p104 = scmp.eq.s32.totalorder %s16, 0
    %p105 = por %p103, %p104
    %p106 = scmp.ne.s32.totalorder %s94, %s95
    %p107 = scmp.eq.s32.totalorder %s17, 7
    %p108 = por %p106, %p107
    %p110 = scmp.ne.s32.totalorder %s95, %s109
    %p111 = scmp.eq.s32.totalorder %s17, 0
    %p112 = por %p110, %p111
    %s114 = sadd.s32 %s113, 1
    %p117 = scmp.eq.s32.totalorder %s11, 7
    %p118 = scmp.ne.s32.totalorder %s113, %s115
    %p119 = scmp.eq.s32.totalorder %s11, 0
    %p120 = por %p118, %p119
    %p121 = scmp.ne.s32.totalorder %s113, %s115
    %p122 = scmp.eq.s32.totalorder %s16, 7
    %p123 = por %p121, %p122
    %p124 = scmp.ne.s32.totalorder %s115, %s116
    %p125 = scmp.eq.s32.totalorder %s16, 0
    %p126 = por %p124, %p125
    %p127 = scmp.ne.s32.totalorder %s115, %s116
    %p128 = scmp.eq.s32.totalorder %s17, 7
    %p129 = por %p127, %p128
    %p131 = scmp.ne.s32.totalorder %s116, %s130
    %p132 = scmp.eq.s32.totalorder %s17, 0
    %p133 = por %p131, %p132
    %s134 = ssub.s32 %s11, %s18
    %p135 = scmp.eq.s32.totalorder %s134, 0
    %s137 = sadd.s32 %s136, 1
    %s138 = scalar_select %p135, %s136, %s137
    %p141 = pneg %p135
    %p142 = scmp.eq.s32.totalorder %s11, 7
    %p143 = por %p141, %p142
    %p144 = scmp.ne.s32.totalorder %s136, %s139
    %p145 = scmp.eq.s32.totalorder %s11, 0
    %p146 = por %p144, %p145
    %p147 = scmp.ne.s32.totalorder %s136, %s139
    %p148 = scmp.eq.s32.totalorder %s16, 7
    %p149 = por %p147, %p148
    %p150 = scmp.ne.s32.totalorder %s139, %s140
    %p151 = scmp.eq.s32.totalorder %s16, 0
    %p152 = por %p150, %p151
    %p153 = scmp.ne.s32.totalorder %s139, %s140
    %p154 = scmp.eq.s32.totalorder %s17, 7
    %p155 = por %p153, %p154
    %p157 = scmp.ne.s32.totalorder %s140, %s156
    %p158 = scmp.eq.s32.totalorder %s17, 0
    %p159 = por %p157, %p158
    %p160 = scmp.le.s32.totalorder 1, %s11
    %p161 = scmp.lt.s32.totalorder %s11, 9
    %p162 = pnand %p160, %p161
    %p163 = pneg %p162
    // Predicated region
    $region9: #{esim_forward.9} parent=5 // pred_check
      _
    $region10: #{esim_forward.9} parent=5 // pred_check_branch
      %165 = sbr.rel (%p162) target = $region12
    $region11: #{esim_forward.9} parent=5 // pred_region
      %s166 = ssub.s32 %s11, 1
      // Predicated region
      $region13: #{esim_forward.9} parent=11 // pred_check
        %p167 = pneg %p84
      $region14: #{esim_forward.9} parent=11 // pred_check_branch
        %169 = sbr.rel (%p167) target = $region16
      $region15: #{esim_forward.9} parent=11 // pred_region
        _
      $region16: #{esim_forward.9} parent=11 // pred_fallthru
        _
      // Predicated region
      $region17: #{esim_forward.9} parent=11 // pred_check
        %p170 = pneg %p105
      $region18: #{esim_forward.9} parent=11 // pred_check_branch
        %172 = sbr.rel (%p170) target = $region20
      $region19: #{esim_forward.9} parent=11 // pred_region
        _
      $region20: #{esim_forward.9} parent=11 // pred_fallthru
        _
      // Predicated region
      $region21: #{esim_forward.9} parent=11 // pred_check
        %p173 = pneg %p126
      $region22: #{esim_forward.9} parent=11 // pred_check_branch
        %175 = sbr.rel (%p173) target = $region24
      $region23: #{esim_forward.9} parent=11 // pred_region
        _
      $region24: #{esim_forward.9} parent=11 // pred_fallthru
        _
    $region12: #{esim_forward.9} parent=5 // pred_fallthru
      _
    %p176 = scmp.lt.s32.totalorder %s11, 8
    // Predicated region
    $region25: #{esim_forward.9} parent=5 // pred_check
      %p177 = pneg %p176
    $region26: #{esim_forward.9} parent=5 // pred_check_branch
      %179 = sbr.rel (%p177) target = $region28
    $region27: #{esim_forward.9} parent=5 // pred_region
      // Predicated region
      $region29: #{esim_forward.9} parent=27 // pred_check
        %p180 = pneg %p31
      $region30: #{esim_forward.9} parent=27 // pred_check_branch
        %182 = sbr.rel (%p180) target = $region32
      $region31: #{esim_forward.9} parent=27 // pred_region
        %p183 = scmp.lt.s32.totalorder %s11, 7
        %s184 = scalar_select %p183, %s11, 7
        %s185 = smul.addr %s184, 4
        %s186 = scalar_lea.vmem %s0, %s185
      $region32: #{esim_forward.9} parent=27 // pred_fallthru
        _
      // Predicated region
      $region33: #{esim_forward.9} parent=27 // pred_check
        %p187 = pneg %p57
      $region34: #{esim_forward.9} parent=27 // pred_check_branch
        %189 = sbr.rel (%p187) target = $region36
      $region35: #{esim_forward.9} parent=27 // pred_region
        %p190 = scmp.lt.s32.totalorder %s11, 7
        %s191 = scalar_select %p190, %s11, 7
        %s192 = smul.addr %s191, 4
        %s193 = scalar_lea.vmem %s1, %s192
      $region36: #{esim_forward.9} parent=27 // pred_fallthru
        _
    $region28: #{esim_forward.9} parent=5 // pred_fallthru
      _
    %p194 = scmp.le.s32.totalorder 1, %s11
    %p195 = scmp.lt.s32.totalorder %s11, 9
    %p196 = pnand %p194, %p195
    %p197 = pneg %p196
    // Predicated region
    $region37: #{esim_forward.9} parent=5 // pred_check
      _
    $region38: #{esim_forward.9} parent=5 // pred_check_branch
      %199 = sbr.rel (%p196) target = $region40
    $region39: #{esim_forward.9} parent=5 // pred_region
      %s200 = ssub.s32 %s11, 1
      %p201 = scmp.lt.s32.totalorder %s16, 7
      %s202 = scalar_select %p201, %s16, 7
      %s203 = smul.addr %s202, 4
      %s204 = scalar_lea.vmem %s0, %s203
      %p205 = pneg %p37
      %p206 = pneg %p34
      %p207 = scmp.lt.s32.totalorder %s16, 7
      %s208 = scalar_select %p207, %s16, 7
      %s209 = smul.addr %s208, 4
      %s210 = scalar_lea.vmem %s1, %s209
      %p211 = pneg %p63
      %p212 = pneg %p60
      %p213 = pneg %p84
      %p214 = pneg %p81
      %p215 = pneg %p105
      %p216 = pneg %p102
      %p217 = pneg %p126
      %p218 = pneg %p123
      %p219 = pneg %p152
      %p220 = pneg %p149
      %p221 = scmp.lt.s32.totalorder %s16, 7
      %s222 = scalar_select %p221, %s16, 7
      %s223 = smul.addr %s222, 2
      %s224 = smul.addr %s223, 4
      %s225 = scalar_lea.vmem %s5, %s224
      %p226 = scmp.lt.s32.totalorder %s16, 7
      %s227 = scalar_select %p226, %s16, 7
      %s228 = smul.addr %s227, 4
      %s229 = scalar_lea.vmem %s0, %s228
      %p230 = scmp.lt.s32.totalorder %s16, 7
      %s231 = scalar_select %p230, %s16, 7
      %s232 = smul.addr %s231, 4
      %s233 = scalar_lea.vmem %s1, %s232
      %p234 = scmp.lt.s32.totalorder %s16, 7
      %s235 = scalar_select %p234, %s16, 7
      %s236 = smul.addr %s235, 2
      %s237 = smul.addr %s236, 4
      %s238 = scalar_lea.vmem %s5, %s237
      %v239 = vld [vmem:[%s229] sm:$0xf]
      %v240 = vld [vmem:[%s2] sm:$0xff]
      %v241 = vld [vmem:[%s2 + $0x8] sm:$0xff]
      %v242 = vld [vmem:[%s2 + $0x10] sm:$0xff]
      %v243 = vld [vmem:[%s2 + $0x18] sm:$0xff]
      %v244 = vld [vmem:[%s4] sm:$0x1]
      %v246 = vlaneseq
      %v247 = vshrl.u32 %v246, 7
      %v248 = vsub.s32 0, %v247
      %v249 = vrot.slane %v244, %v248
      %vm251 = vcmask 261120
      %v253 = vsel %vm251, %v239, 0
      %255 = vmatprep.subr.mxu0 0.0
      %256 = vmatpush1.msra.mxu0 0.0
      %257 = vmatprep.subr.mxu0 0.0
      %258 = vmatpush1.msra.mxu0 0.0
      %259 = vmatprep.subr.mxu0 0.0
      %260 = vmatpush1.msra.mxu0 0.0
      %261 = vmatprep.subr.mxu0 0.0
      %262 = vmatpush1.msra.mxu0 0.0
      %263 = vmatprep.subr.mxu0 0.0
      %264 = vmatpush1.msra.mxu0 0.0
      %265 = vmatprep.subr.mxu0 0.0
      %266 = vmatpush1.msra.mxu0 0.0
      %267 = vmatprep.subr.mxu0 0.0
      %268 = vmatpush1.msra.mxu0 0.0
      %269 = vmatprep.subr.mxu0 0.0
      %270 = vmatpush1.msra.mxu0 0.0
      %271 = vmatprep.subr.mxu0 0.0
      %272 = vmatpush1.msra.mxu0 0.0
      %273 = vmatprep.subr.mxu0 0.0
      %274 = vmatpush1.msra.mxu0 0.0
      %275 = vmatprep.subr.mxu0 0.0
      %276 = vmatpush1.msra.mxu0 0.0
      %277 = vmatprep.subr.mxu0 0.0
      %278 = vmatpush1.msra.mxu0 0.0
      %279 = vmatprep.subr.mxu0 0.0
      %280 = vmatpush1.msra.mxu0 %v243
      %281 = vmatprep.subr.mxu0 0.0
      %282 = vmatpush1.msra.mxu0 %v242
      %283 = vmatprep.subr.mxu0 0.0
      %284 = vmatpush1.msra.mxu0 %v241
      %285 = vmatprep.subr.mxu0 0.0
      %286 = vmatpush1.msra.mxu0 %v240
      %287 = vmatprep.subr.mxu0 0.0
      %288 = vmatpush2.msra.mxu0 0.0
      %289 = vmatprep.subr.mxu0 0.0
      %290 = vmatpush2.msra.mxu0 0.0
      %291 = vmatprep.subr.mxu0 0.0
      %292 = vmatpush2.msra.mxu0 0.0
      %293 = vmatprep.subr.mxu0 0.0
      %294 = vmatpush2.msra.mxu0 0.0
      %295 = vmatprep.subr.mxu0 0.0
      %296 = vmatpush2.msra.mxu0 0.0
      %297 = vmatprep.subr.mxu0 0.0
      %298 = vmatpush2.msra.mxu0 0.0
      %299 = vmatprep.subr.mxu0 0.0
      %300 = vmatpush2.msra.mxu0 0.0
      %301 = vmatprep.subr.mxu0 0.0
      %302 = vmatpush2.msra.mxu0 0.0
      %303 = vmatprep.subr.mxu0 0.0
      %304 = vmatpush2.msra.mxu0 0.0
      %305 = vmatprep.subr.mxu0 0.0
      %306 = vmatpush2.msra.mxu0 0.0
      %307 = vmatprep.subr.mxu0 0.0
      %308 = vmatpush2.msra.mxu0 0.0
      %309 = vmatprep.subr.mxu0 0.0
      %310 = vmatpush2.msra.mxu0 0.0
      %311 = vmatprep.subr.mxu0 0.0
      %312 = vmatpush2.msra.mxu0 0.0
      %313 = vmatprep.subr.mxu0 0.0
      %314 = vmatpush2.msra.mxu0 0.0
      %315 = vmatprep.subr.mxu0 0.0
      %316 = vmatpush2.msra.mxu0 0.0
      %317 = vmatprep.subr.mxu0 0.0
      %318 = vmatpush2.msra.mxu0 0.0
      %319 = vmatprep.mubr.f32.mxu0 0.0
      %320 = vmatmul.mubr.f32.gmra.mxu0 %v253
      %v321 = vpop.f32.mrf.mxu0
      %v322 = vadd.f32 %v249, %v321
      %v323 = vpop.f32.mrf.mxu0
      %324 = vdwg.mxu0
      %325 = vst [vmem:[%s238] sm:$0xf] %v322
      %v326 = vld [vmem:[%s233] sm:$0xf]
      %v327 = vld [vmem:[%s3] sm:$0xff]
      %v328 = vld [vmem:[%s3 + $0x8] sm:$0xff]
      %v329 = vld [vmem:[%s3 + $0x10] sm:$0xff]
      %v330 = vld [vmem:[%s3 + $0x18] sm:$0xff]
      %v331 = vld [vmem:[%s4 + $0x1] sm:$0x1]
      %v333 = vlaneseq
      %v334 = vshrl.u32 %v333, 7
      %v335 = vsub.s32 0, %v334
      %v336 = vrot.slane %v331, %v335
      %v339 = vsel %vm251, %v326, 0
      %341 = vmatprep.subr.mxu0 0.0
      %342 = vmatpush1.msra.mxu0 0.0
      %343 = vmatprep.subr.mxu0 0.0
      %344 = vmatpush1.msra.mxu0 0.0
      %345 = vmatprep.subr.mxu0 0.0
      %346 = vmatpush1.msra.mxu0 0.0
      %347 = vmatprep.subr.mxu0 0.0
      %348 = vmatpush1.msra.mxu0 0.0
      %349 = vmatprep.subr.mxu0 0.0
      %350 = vmatpush1.msra.mxu0 0.0
      %351 = vmatprep.subr.mxu0 0.0
      %352 = vmatpush1.msra.mxu0 0.0
      %353 = vmatprep.subr.mxu0 0.0
      %354 = vmatpush1.msra.mxu0 0.0
      %355 = vmatprep.subr.mxu0 0.0
      %356 = vmatpush1.msra.mxu0 0.0
      %357 = vmatprep.subr.mxu0 0.0
      %358 = vmatpush1.msra.mxu0 0.0
      %359 = vmatprep.subr.mxu0 0.0
      %360 = vmatpush1.msra.mxu0 0.0
      %361 = vmatprep.subr.mxu0 0.0
      %362 = vmatpush1.msra.mxu0 0.0
      %363 = vmatprep.subr.mxu0 0.0
      %364 = vmatpush1.msra.mxu0 0.0
      %365 = vmatprep.subr.mxu0 0.0
      %366 = vmatpush1.msra.mxu0 %v330
      %367 = vmatprep.subr.mxu0 0.0
      %368 = vmatpush1.msra.mxu0 %v329
      %369 = vmatprep.subr.mxu0 0.0
      %370 = vmatpush1.msra.mxu0 %v328
      %371 = vmatprep.subr.mxu0 0.0
      %372 = vmatpush1.msra.mxu0 %v327
      %373 = vmatprep.subr.mxu0 0.0
      %374 = vmatpush2.msra.mxu0 0.0
      %375 = vmatprep.subr.mxu0 0.0
      %376 = vmatpush2.msra.mxu0 0.0
      %377 = vmatprep.subr.mxu0 0.0
      %378 = vmatpush2.msra.mxu0 0.0
      %379 = vmatprep.subr.mxu0 0.0
      %380 = vmatpush2.msra.mxu0 0.0
      %381 = vmatprep.subr.mxu0 0.0
      %382 = vmatpush2.msra.mxu0 0.0
      %383 = vmatprep.subr.mxu0 0.0
      %384 = vmatpush2.msra.mxu0 0.0
      %385 = vmatprep.subr.mxu0 0.0
      %386 = vmatpush2.msra.mxu0 0.0
      %387 = vmatprep.subr.mxu0 0.0
      %388 = vmatpush2.msra.mxu0 0.0
      %389 = vmatprep.subr.mxu0 0.0
      %390 = vmatpush2.msra.mxu0 0.0
      %391 = vmatprep.subr.mxu0 0.0
      %392 = vmatpush2.msra.mxu0 0.0
      %393 = vmatprep.subr.mxu0 0.0
      %394 = vmatpush2.msra.mxu0 0.0
      %395 = vmatprep.subr.mxu0 0.0
      %396 = vmatpush2.msra.mxu0 0.0
      %397 = vmatprep.subr.mxu0 0.0
      %398 = vmatpush2.msra.mxu0 0.0
      %399 = vmatprep.subr.mxu0 0.0
      %400 = vmatpush2.msra.mxu0 0.0
      %401 = vmatprep.subr.mxu0 0.0
      %402 = vmatpush2.msra.mxu0 0.0
      %403 = vmatprep.subr.mxu0 0.0
      %404 = vmatpush2.msra.mxu0 0.0
      %405 = vmatprep.mubr.f32.mxu0 0.0
      %406 = vmatmul.mubr.f32.gmra.mxu0 %v339
      %v407 = vpop.f32.mrf.mxu0
      %v408 = vadd.f32 %v336, %v407
      %v409 = vpop.f32.mrf.mxu0
      %410 = vdwg.mxu0
      %411 = vst [vmem:[%s238 + $0x4] sm:$0xf] %v408
      %p412 = scmp.lt.s32.totalorder %s16, 7
      %s413 = scalar_select %p412, %s16, 7
      %s414 = smul.addr %s413, 2
      %s415 = smul.addr %s414, 4
      %s416 = scalar_lea.vmem %s5, %s415
      // Predicated region
      $region41: #{esim_forward.9} parent=39 // pred_check
        %p417 = pneg %p149
      $region42: #{esim_forward.9} parent=39 // pred_check_branch
        %419 = sbr.rel (%p417) target = $region44
      $region43: #{esim_forward.9} parent=39 // pred_region
        _
      $region44: #{esim_forward.9} parent=39 // pred_fallthru
        _
    $region40: #{esim_forward.9} parent=5 // pred_fallthru
      _
    %p420 = scmp.le.s32.totalorder 2, %s11
    // Predicated region
    $region45: #{esim_forward.9} parent=5 // pred_check
      %p421 = pneg %p420
    $region46: #{esim_forward.9} parent=5 // pred_check_branch
      %423 = sbr.rel (%p421) target = $region48
    $region47: #{esim_forward.9} parent=5 // pred_region
      %s424 = ssub.s32 %s11, 2
      // Predicated region
      $region49: #{esim_forward.9} parent=47 // pred_check
        %p425 = pneg %p155
      $region50: #{esim_forward.9} parent=47 // pred_check_branch
        %427 = sbr.rel (%p425) target = $region52
      $region51: #{esim_forward.9} parent=47 // pred_region
        %p428 = scmp.lt.s32.totalorder %s17, 7
        %s429 = scalar_select %p428, %s17, 7
        %s430 = smul.addr %s429, 2
        %s431 = smul.addr %s430, 4
        %s432 = scalar_lea.vmem %s5, %s431
      $region52: #{esim_forward.9} parent=47 // pred_fallthru
        _
    $region48: #{esim_forward.9} parent=5 // pred_fallthru
      _
  $region6: #{esim_forward.9} parent=0 // loop_footer
    %s15 = sadd.s32 1, %s11
  $region7: #{esim_forward.9} parent=0 // loop_footer_branch
    %10 = sbr.rel target = $region3
  $region8: #{esim_forward.9} parent=0 // loop_exit
    _

// kernel: esim_forward.11
$region0: #{esim_forward.11}
  #allocation0 [shape = 'u32[]', space=smem, size = 0x4, offset = 0x4, fixed_abs, tag = 'smem constant byte address 0x4 - core index']
  #allocation1 [shape = 'u32[144,128]{1,0:T(1,128)}', space=vmem, size = 0x12000, scoped, tag = 'internal scratch']
  %s0 = inlined_call_operand.vmem [shape: f32[2,8,64], index: 0, kind: input, shape index: {}]
  %s1 = inlined_call_operand.vmem [shape: f32[2,8,64], index: 1, kind: input, shape index: {}]
  %s2 = inlined_call_operand.vmem [shape: f32[2,1,8], index: 2, kind: input, shape index: {}]
  %s3 = inlined_call_operand.vmem [shape: f32[2,8,1], index: 3, kind: input, shape index: {}]
  %s4 = inlined_call_operand.vmem [shape: f32[2,1,8], index: 4, kind: input, shape index: {}]
  %s5 = inlined_call_operand.vmem [shape: f32[2,8,1], index: 5, kind: input, shape index: {}]
  %s6 = inlined_call_operand.vmem [shape: f32[2,8,64], index: 6, kind: output, shape index: {0}]
  %s7 = inlined_call_operand.vmem [shape: f32[2,8,64], index: 7, kind: output, shape index: {1}]
  %8 = xla_tuple %s6, %s7
  %s9 = sld [smem:[#allocation0]]
  $region65: #{esim_forward.11} parent=0
    _
  %s11 = ssub.s32 1, %s9
  %s12 = scalar_select 0, %s11, %s9
  loop: start=0, step=1, limit=4
  $region2: #{esim_forward.11} parent=0 // loop_pre_header
    _
  $region3: #{esim_forward.11} parent=0 // loop_header
    %s14 = sphi 0, %s18
    %p15 = scmp.ge.s32.totalorder %s14, 4
    %s24 = sphi 0, %s26
    %s27 = sphi 0, %s24
    %s28 = sphi 0, %s27
    %s44 = sphi 0, %s28
    %s50 = sphi 0, %s52
    %s53 = sphi 0, %s50
    %s54 = sphi 0, %s53
    %s70 = sphi 0, %s54
    %s76 = sphi 0, %s78
    %s79 = sphi 0, %s76
    %s80 = sphi 0, %s79
    %s96 = sphi 0, %s80
    %s102 = sphi 0, %s104
    %s105 = sphi 0, %s102
    %s106 = sphi 0, %s105
    %s122 = sphi 0, %s106
    %s128 = sphi 0, %s130
    %s131 = sphi 0, %s128
    %s132 = sphi 0, %s131
    %s148 = sphi 0, %s132
    %s154 = sphi 0, %s156
    %s157 = sphi 0, %s154
    %s158 = sphi 0, %s157
    %s174 = sphi 0, %s158
    %s180 = sphi 0, %s182
    %s183 = sphi 0, %s180
    %s184 = sphi 0, %s183
    %s200 = sphi 0, %s184
    %s206 = sphi 0, %s208
    %s209 = sphi 0, %s206
    %s210 = sphi 0, %s209
    %s226 = sphi 0, %s210
  $region4: #{esim_forward.11} parent=0 // loop_header_branch
    %17 = sbr.rel (%p15) target = $region8
  $region5: #{esim_forward.11} parent=0 // loop_body
    %s19 = ssub.s32 %s14, 1
    %s20 = ssub.s32 %s14, 2
    %s21 = sadd.s32 %s14, 1
    %s22 = ssub.s32 %s14, %s21
    %p23 = scmp.eq.s32.totalorder %s22, 0
    %s25 = sadd.s32 %s24, 1
    %s26 = scalar_select %p23, %s24, %s25
    %p29 = pneg %p23
    %p30 = scmp.eq.s32.totalorder %s14, 1
    %p31 = por %p29, %p30
    %p32 = scmp.ne.s32.totalorder %s24, %s27
    %p33 = scmp.eq.s32.totalorder %s14, 0
    %p34 = por %p32, %p33
    %p35 = scmp.ne.s32.totalorder %s24, %s27
    %p36 = scmp.eq.s32.totalorder %s19, 1
    %p37 = por %p35, %p36
    %p38 = scmp.ne.s32.totalorder %s27, %s28
    %p39 = scmp.eq.s32.totalorder %s19, 0
    %p40 = por %p38, %p39
    %p41 = scmp.ne.s32.totalorder %s27, %s28
    %p42 = scmp.eq.s32.totalorder %s20, 1
    %p43 = por %p41, %p42
    %p45 = scmp.ne.s32.totalorder %s28, %s44
    %p46 = scmp.eq.s32.totalorder %s20, 0
    %p47 = por %p45, %p46
    %s48 = ssub.s32 %s14, %s21
    %p49 = scmp.eq.s32.totalorder %s48, 0
    %s51 = sadd.s32 %s50, 1
    %s52 = scalar_select %p49, %s50, %s51
    %p55 = pneg %p49
    %p56 = scmp.eq.s32.totalorder %s14, 1
    %p57 = por %p55, %p56
    %p58 = scmp.ne.s32.totalorder %s50, %s53
    %p59 = scmp.eq.s32.totalorder %s14, 0
    %p60 = por %p58, %p59
    %p61 = scmp.ne.s32.totalorder %s50, %s53
    %p62 = scmp.eq.s32.totalorder %s19, 1
    %p63 = por %p61, %p62
    %p64 = scmp.ne.s32.totalorder %s53, %s54
    %p65 = scmp.eq.s32.totalorder %s19, 0
    %p66 = por %p64, %p65
    %p67 = scmp.ne.s32.totalorder %s53, %s54
    %p68 = scmp.eq.s32.totalorder %s20, 1
    %p69 = por %p67, %p68
    %p71 = scmp.ne.s32.totalorder %s54, %s70
    %p72 = scmp.eq.s32.totalorder %s20, 0
    %p73 = por %p71, %p72
    %s74 = ssub.s32 %s14, %s21
    %p75 = scmp.eq.s32.totalorder %s74, 0
    %s77 = sadd.s32 %s76, 1
    %s78 = scalar_select %p75, %s76, %s77
    %p81 = pneg %p75
    %p82 = scmp.eq.s32.totalorder %s14, 1
    %p83 = por %p81, %p82
    %p84 = scmp.ne.s32.totalorder %s76, %s79
    %p85 = scmp.eq.s32.totalorder %s14, 0
    %p86 = por %p84, %p85
    %p87 = scmp.ne.s32.totalorder %s76, %s79
    %p88 = scmp.eq.s32.totalorder %s19, 1
    %p89 = por %p87, %p88
    %p90 = scmp.ne.s32.totalorder %s79, %s80
    %p91 = scmp.eq.s32.totalorder %s19, 0
    %p92 = por %p90, %p91
    %p93 = scmp.ne.s32.totalorder %s79, %s80
    %p94 = scmp.eq.s32.totalorder %s20, 1
    %p95 = por %p93, %p94
    %p97 = scmp.ne.s32.totalorder %s80, %s96
    %p98 = scmp.eq.s32.totalorder %s20, 0
    %p99 = por %p97, %p98
    %s100 = ssub.s32 %s14, %s21
    %p101 = scmp.eq.s32.totalorder %s100, 0
    %s103 = sadd.s32 %s102, 1
    %s104 = scalar_select %p101, %s102, %s103
    %p107 = pneg %p101
    %p108 = scmp.eq.s32.totalorder %s14, 1
    %p109 = por %p107, %p108
    %p110 = scmp.ne.s32.totalorder %s102, %s105
    %p111 = scmp.eq.s32.totalorder %s14, 0
    %p112 = por %p110, %p111
    %p113 = scmp.ne.s32.totalorder %s102, %s105
    %p114 = scmp.eq.s32.totalorder %s19, 1
    %p115 = por %p113, %p114
    %p116 = scmp.ne.s32.totalorder %s105, %s106
    %p117 = scmp.eq.s32.totalorder %s19, 0
    %p118 = por %p116, %p117
    %p119 = scmp.ne.s32.totalorder %s105, %s106
    %p120 = scmp.eq.s32.totalorder %s20, 1
    %p121 = por %p119, %p120
    %p123 = scmp.ne.s32.totalorder %s106, %s122
    %p124 = scmp.eq.s32.totalorder %s20, 0
    %p125 = por %p123, %p124
    %s126 = ssub.s32 %s14, %s21
    %p127 = scmp.eq.s32.totalorder %s126, 0
    %s129 = sadd.s32 %s128, 1
    %s130 = scalar_select %p127, %s128, %s129
    %p133 = pneg %p127
    %p134 = scmp.eq.s32.totalorder %s14, 1
    %p135 = por %p133, %p134
    %p136 = scmp.ne.s32.totalorder %s128, %s131
    %p137 = scmp.eq.s32.totalorder %s14, 0
    %p138 = por %p136, %p137
    %p139 = scmp.ne.s32.totalorder %s128, %s131
    %p140 = scmp.eq.s32.totalorder %s19, 1
    %p141 = por %p139, %p140
    %p142 = scmp.ne.s32.totalorder %s131, %s132
    %p143 = scmp.eq.s32.totalorder %s19, 0
    %p144 = por %p142, %p143
    %p145 = scmp.ne.s32.totalorder %s131, %s132
    %p146 = scmp.eq.s32.totalorder %s20, 1
    %p147 = por %p145, %p146
    %p149 = scmp.ne.s32.totalorder %s132, %s148
    %p150 = scmp.eq.s32.totalorder %s20, 0
    %p151 = por %p149, %p150
    %s152 = ssub.s32 %s14, %s21
    %p153 = scmp.eq.s32.totalorder %s152, 0
    %s155 = sadd.s32 %s154, 1
    %s156 = scalar_select %p153, %s154, %s155
    %p159 = pneg %p153
    %p160 = scmp.eq.s32.totalorder %s14, 1
    %p161 = por %p159, %p160
    %p162 = scmp.ne.s32.totalorder %s154, %s157
    %p163 = scmp.eq.s32.totalorder %s14, 0
    %p164 = por %p162, %p163
    %p165 = scmp.ne.s32.totalorder %s154, %s157
    %p166 = scmp.eq.s32.totalorder %s19, 1
    %p167 = por %p165, %p166
    %p168 = scmp.ne.s32.totalorder %s157, %s158
    %p169 = scmp.eq.s32.totalorder %s19, 0
    %p170 = por %p168, %p169
    %p171 = scmp.ne.s32.totalorder %s157, %s158
    %p172 = scmp.eq.s32.totalorder %s20, 1
    %p173 = por %p171, %p172
    %p175 = scmp.ne.s32.totalorder %s158, %s174
    %p176 = scmp.eq.s32.totalorder %s20, 0
    %p177 = por %p175, %p176
    %s178 = ssub.s32 %s14, %s21
    %p179 = scmp.eq.s32.totalorder %s178, 0
    %s181 = sadd.s32 %s180, 1
    %s182 = scalar_select %p179, %s180, %s181
    %p185 = pneg %p179
    %p186 = scmp.eq.s32.totalorder %s14, 1
    %p187 = por %p185, %p186
    %p188 = scmp.ne.s32.totalorder %s180, %s183
    %p189 = scmp.eq.s32.totalorder %s14, 0
    %p190 = por %p188, %p189
    %p191 = scmp.ne.s32.totalorder %s180, %s183
    %p192 = scmp.eq.s32.totalorder %s19, 1
    %p193 = por %p191, %p192
    %p194 = scmp.ne.s32.totalorder %s183, %s184
    %p195 = scmp.eq.s32.totalorder %s19, 0
    %p196 = por %p194, %p195
    %p197 = scmp.ne.s32.totalorder %s183, %s184
    %p198 = scmp.eq.s32.totalorder %s20, 1
    %p199 = por %p197, %p198
    %p201 = scmp.ne.s32.totalorder %s184, %s200
    %p202 = scmp.eq.s32.totalorder %s20, 0
    %p203 = por %p201, %p202
    %s204 = ssub.s32 %s14, %s21
    %p205 = scmp.eq.s32.totalorder %s204, 0
    %s207 = sadd.s32 %s206, 1
    %s208 = scalar_select %p205, %s206, %s207
    %p211 = pneg %p205
    %p212 = scmp.eq.s32.totalorder %s14, 1
    %p213 = por %p211, %p212
    %p214 = scmp.ne.s32.totalorder %s206, %s209
    %p215 = scmp.eq.s32.totalorder %s14, 0
    %p216 = por %p214, %p215
    %p217 = scmp.ne.s32.totalorder %s206, %s209
    %p218 = scmp.eq.s32.totalorder %s19, 1
    %p219 = por %p217, %p218
    %p220 = scmp.ne.s32.totalorder %s209, %s210
    %p221 = scmp.eq.s32.totalorder %s19, 0
    %p222 = por %p220, %p221
    %p223 = scmp.ne.s32.totalorder %s209, %s210
    %p224 = scmp.eq.s32.totalorder %s20, 1
    %p225 = por %p223, %p224
    %p227 = scmp.ne.s32.totalorder %s210, %s226
    %p228 = scmp.eq.s32.totalorder %s20, 0
    %p229 = por %p227, %p228
    %p230 = scmp.le.s32.totalorder 1, %s14
    %p231 = scmp.lt.s32.totalorder %s14, 3
    %p232 = pnand %p230, %p231
    %p233 = pneg %p232
    // Predicated region
    $region9: #{esim_forward.11} parent=5 // pred_check
      _
    $region10: #{esim_forward.11} parent=5 // pred_check_branch
      %235 = sbr.rel (%p232) target = $region12
    $region11: #{esim_forward.11} parent=5 // pred_region
      %s236 = ssub.s32 %s14, 1
    $region12: #{esim_forward.11} parent=5 // pred_fallthru
      _
    %p237 = scmp.lt.s32.totalorder %s14, 2
    // Predicated region
    $region13: #{esim_forward.11} parent=5 // pred_check
      %p238 = pneg %p237
    $region14: #{esim_forward.11} parent=5 // pred_check_branch
      %240 = sbr.rel (%p238) target = $region16
    $region15: #{esim_forward.11} parent=5 // pred_region
      // Predicated region
      $region17: #{esim_forward.11} parent=15 // pred_check
        %p241 = pneg %p34
      $region18: #{esim_forward.11} parent=15 // pred_check_branch
        %243 = sbr.rel (%p241) target = $region20
      $region19: #{esim_forward.11} parent=15 // pred_region
        %p244 = scmp.lt.s32.totalorder %s14, 1
        %s245 = scalar_select %p244, %s14, 1
        %s246 = smul.addr %s245, 8
        %s247 = scalar_lea.vmem %s0, %s246
      $region20: #{esim_forward.11} parent=15 // pred_fallthru
        _
      // Predicated region
      $region21: #{esim_forward.11} parent=15 // pred_check
        %p248 = pneg %p60
      $region22: #{esim_forward.11} parent=15 // pred_check_branch
        %250 = sbr.rel (%p248) target = $region24
      $region23: #{esim_forward.11} parent=15 // pred_region
        %p251 = scmp.lt.s32.totalorder %s14, 1
        %s252 = scalar_select %p251, %s14, 1
        %s253 = smul.addr %s252, 8
        %s254 = scalar_lea.vmem %s1, %s253
      $region24: #{esim_forward.11} parent=15 // pred_fallthru
        _
      // Predicated region
      $region25: #{esim_forward.11} parent=15 // pred_check
        %p255 = pneg %p86
      $region26: #{esim_forward.11} parent=15 // pred_check_branch
        %257 = sbr.rel (%p255) target = $region28
      $region27: #{esim_forward.11} parent=15 // pred_region
        %p258 = scmp.lt.s32.totalorder %s14, 1
        %s259 = scalar_select %p258, %s14, 1
        %s260 = scalar_lea.vmem %s2, %s259
      $region28: #{esim_forward.11} parent=15 // pred_fallthru
        _
      // Predicated region
      $region29: #{esim_forward.11} parent=15 // pred_check
        %p261 = pneg %p112
      $region30: #{esim_forward.11} parent=15 // pred_check_branch
        %263 = sbr.rel (%p261) target = $region32
      $region31: #{esim_forward.11} parent=15 // pred_region
        %p264 = scmp.lt.s32.totalorder %s14, 1
        %s265 = scalar_select %p264, %s14, 1
        %s266 = smul.addr %s265, 8
        %s267 = scalar_lea.vmem %s3, %s266
      $region32: #{esim_forward.11} parent=15 // pred_fallthru
        _
      // Predicated region
      $region33: #{esim_forward.11} parent=15 // pred_check
        %p268 = pneg %p138
      $region34: #{esim_forward.11} parent=15 // pred_check_branch
        %270 = sbr.rel (%p268) target = $region36
      $region35: #{esim_forward.11} parent=15 // pred_region
        %p271 = scmp.lt.s32.totalorder %s14, 1
        %s272 = scalar_select %p271, %s14, 1
        %s273 = scalar_lea.vmem %s4, %s272
      $region36: #{esim_forward.11} parent=15 // pred_fallthru
        _
      // Predicated region
      $region37: #{esim_forward.11} parent=15 // pred_check
        %p274 = pneg %p164
      $region38: #{esim_forward.11} parent=15 // pred_check_branch
        %276 = sbr.rel (%p274) target = $region40
      $region39: #{esim_forward.11} parent=15 // pred_region
        %p277 = scmp.lt.s32.totalorder %s14, 1
        %s278 = scalar_select %p277, %s14, 1
        %s279 = smul.addr %s278, 8
        %s280 = scalar_lea.vmem %s5, %s279
      $region40: #{esim_forward.11} parent=15 // pred_fallthru
        _
    $region16: #{esim_forward.11} parent=5 // pred_fallthru
      _
    %p281 = scmp.le.s32.totalorder 1, %s14
    %p282 = scmp.lt.s32.totalorder %s14, 3
    %p283 = pnand %p281, %p282
    %p284 = pneg %p283
    // Predicated region
    $region41: #{esim_forward.11} parent=5 // pred_check
      _
    $region42: #{esim_forward.11} parent=5 // pred_check_branch
      %286 = sbr.rel (%p283) target = $region44
    $region43: #{esim_forward.11} parent=5 // pred_region
      %s287 = ssub.s32 %s14, 1
      %p288 = scmp.lt.s32.totalorder %s19, 1
      %s289 = scalar_select %p288, %s19, 1
      %s290 = smul.addr %s289, 8
      %s291 = scalar_lea.vmem %s0, %s290
      %p292 = pneg %p40
      %p293 = pneg %p37
      %p294 = scmp.lt.s32.totalorder %s19, 1
      %s295 = scalar_select %p294, %s19, 1
      %s296 = smul.addr %s295, 8
      %s297 = scalar_lea.vmem %s1, %s296
      %p298 = pneg %p66
      %p299 = pneg %p63
      %p300 = scmp.lt.s32.totalorder %s19, 1
      %s301 = scalar_select %p300, %s19, 1
      %s302 = scalar_lea.vmem %s2, %s301
      %p303 = pneg %p92
      %p304 = pneg %p89
      %p305 = scmp.lt.s32.totalorder %s19, 1
      %s306 = scalar_select %p305, %s19, 1
      %s307 = smul.addr %s306, 8
      %s308 = scalar_lea.vmem %s3, %s307
      %p309 = pneg %p118
      %p310 = pneg %p115
      %p311 = scmp.lt.s32.totalorder %s19, 1
      %s312 = scalar_select %p311, %s19, 1
      %s313 = scalar_lea.vmem %s4, %s312
      %p314 = pneg %p144
      %p315 = pneg %p141
      %p316 = scmp.lt.s32.totalorder %s19, 1
      %s317 = scalar_select %p316, %s19, 1
      %s318 = smul.addr %s317, 8
      %s319 = scalar_lea.vmem %s5, %s318
      %p320 = pneg %p170
      %p321 = pneg %p167
      %p322 = pneg %p196
      %p323 = pneg %p193
      %p324 = scmp.lt.s32.totalorder %s19, 1
      %s325 = scalar_select %p324, %s19, 1
      %s326 = smul.addr %s325, 8
      %s327 = scalar_lea.vmem %s6, %s326
      %p328 = pneg %p222
      %p329 = pneg %p219
      %p330 = scmp.lt.s32.totalorder %s19, 1
      %s331 = scalar_select %p330, %s19, 1
      %s332 = smul.addr %s331, 8
      %s333 = scalar_lea.vmem %s7, %s332
      %p334 = scmp.lt.s32.totalorder %s19, 1
      %s335 = scalar_select %p334, %s19, 1
      %s336 = smul.addr %s335, 8
      %s337 = scalar_lea.vmem %s0, %s336
      %p338 = scmp.lt.s32.totalorder %s19, 1
      %s339 = scalar_select %p338, %s19, 1
      %s340 = smul.addr %s339, 8
      %s341 = scalar_lea.vmem %s1, %s340
      %p342 = scmp.lt.s32.totalorder %s19, 1
      %s343 = scalar_select %p342, %s19, 1
      %s344 = scalar_lea.vmem %s2, %s343
      %p345 = scmp.lt.s32.totalorder %s19, 1
      %s346 = scalar_select %p345, %s19, 1
      %s347 = smul.addr %s346, 8
      %s348 = scalar_lea.vmem %s3, %s347
      %p349 = scmp.lt.s32.totalorder %s19, 1
      %s350 = scalar_select %p349, %s19, 1
      %s351 = scalar_lea.vmem %s4, %s350
      %p352 = scmp.lt.s32.totalorder %s19, 1
      %s353 = scalar_select %p352, %s19, 1
      %s354 = smul.addr %s353, 8
      %s355 = scalar_lea.vmem %s5, %s354
      %p356 = scmp.lt.s32.totalorder %s19, 1
      %s357 = scalar_select %p356, %s19, 1
      %s358 = smul.addr %s357, 8
      %s359 = scalar_lea.vmem %s6, %s358
      %p360 = scmp.lt.s32.totalorder %s19, 1
      %s361 = scalar_select %p360, %s19, 1
      %s362 = smul.addr %s361, 8
      %s363 = scalar_lea.vmem %s7, %s362
      %v364 = vld [vmem:[%s337] sm:$0xff]
      %v365 = vld [vmem:[%s341] sm:$0xff]
      %v366 = vld [vmem:[%s344] sm:$0x1]
      %v367 = vld [vmem:[%s348] sm:$0xff]
      %v368 = vld [vmem:[%s351] sm:$0x1]
      %v369 = vld [vmem:[%s355] sm:$0xff]
      %vm370 = vcmask 523264
      %v372 = vsel %vm370, %v364, 0
      %v375 = vsel %vm370, %v365, 0
      %377 = vmatprep.subr.mxu0 0.0
      %378 = vmatpush1.xpose.msra.mxu0 0.0
      %379 = vmatprep.subr.mxu0 0.0
      %380 = vmatpush1.xpose.msra.mxu0 0.0
      %381 = vmatprep.subr.mxu0 0.0
      %382 = vmatpush1.xpose.msra.mxu0 0.0
      %383 = vmatprep.subr.mxu0 0.0
      %384 = vmatpush1.xpose.msra.mxu0 0.0
      %385 = vmatprep.subr.mxu0 0.0
      %386 = vmatpush1.xpose.msra.mxu0 0.0
      %387 = vmatprep.subr.mxu0 0.0
      %388 = vmatpush1.xpose.msra.mxu0 0.0
      %389 = vmatprep.subr.mxu0 0.0
      %390 = vmatpush1.xpose.msra.mxu0 0.0
      %391 = vmatprep.subr.mxu0 0.0
      %392 = vmatpush1.xpose.msra.mxu0 0.0
      %393 = vmatprep.subr.mxu0 0.0
      %394 = vmatpush1.xpose.msra.mxu0 0.0
      %395 = vmatprep.subr.mxu0 0.0
      %396 = vmatpush1.xpose.msra.mxu0 0.0
      %397 = vmatprep.subr.mxu0 0.0
      %398 = vmatpush1.xpose.msra.mxu0 0.0
      %399 = vmatprep.subr.mxu0 0.0
      %400 = vmatpush1.xpose.msra.mxu0 0.0
      %401 = vmatprep.subr.mxu0 0.0
      %402 = vmatpush1.xpose.msra.mxu0 0.0
      %403 = vmatprep.subr.mxu0 0.0
      %404 = vmatpush1.xpose.msra.mxu0 0.0
      %405 = vmatprep.subr.mxu0 0.0
      %406 = vmatpush1.xpose.msra.mxu0 0.0
      %407 = vmatprep.subr.mxu0 0.0
      %408 = vmatpush1.xpose.msra.mxu0 %v375
      %409 = vmatprep.subr.mxu0 0.0
      %410 = vmatpush2.xpose.msra.mxu0 0.0
      %411 = vmatprep.subr.mxu0 0.0
      %412 = vmatpush2.xpose.msra.mxu0 0.0
      %413 = vmatprep.subr.mxu0 0.0
      %414 = vmatpush2.xpose.msra.mxu0 0.0
      %415 = vmatprep.subr.mxu0 0.0
      %416 = vmatpush2.xpose.msra.mxu0 0.0
      %417 = vmatprep.subr.mxu0 0.0
      %418 = vmatpush2.xpose.msra.mxu0 0.0
      %419 = vmatprep.subr.mxu0 0.0
      %420 = vmatpush2.xpose.msra.mxu0 0.0
      %421 = vmatprep.subr.mxu0 0.0
      %422 = vmatpush2.xpose.msra.mxu0 0.0
      %423 = vmatprep.subr.mxu0 0.0
      %424 = vmatpush2.xpose.msra.mxu0 0.0
      %425 = vmatprep.subr.mxu0 0.0
      %426 = vmatpush2.xpose.msra.mxu0 0.0
      %427 = vmatprep.subr.mxu0 0.0
      %428 = vmatpush2.xpose.msra.mxu0 0.0
      %429 = vmatprep.subr.mxu0 0.0
      %430 = vmatpush2.xpose.msra.mxu0 0.0
      %431 = vmatprep.subr.mxu0 0.0
      %432 = vmatpush2.xpose.msra.mxu0 0.0
      %433 = vmatprep.subr.mxu0 0.0
      %434 = vmatpush2.xpose.msra.mxu0 0.0
      %435 = vmatprep.subr.mxu0 0.0
      %436 = vmatpush2.xpose.msra.mxu0 0.0
      %437 = vmatprep.subr.mxu0 0.0
      %438 = vmatpush2.xpose.msra.mxu0 0.0
      %439 = vmatprep.subr.mxu0 0.0
      %440 = vmatpush2.xpose.msra.mxu0 0.0
      %441 = vmatprep.mubr.f32.mxu0 0.0
      %442 = vmatmul.mubr.f32.gmra.mxu0 %v372
      %v443 = vpop.f32.mrf.mxu0
      %v444 = vadd.f32 0.0, %v443
      %v445 = vpop.f32.mrf.mxu0
      %446 = vdwg.mxu0
      %v447 = vsub.f32 1.0, %v368
      %v448 = vmul.f32 %v447, -10000000.0
      %v450 = vlaneseq
      %v451 = vshrl.u32 %v450, 7
      %v452 = vsub.s32 0, %v451
      %v453 = vrot.slane %v448, %v452
      %v455 = vadd.f32 %v444, %v453
      %vm456 = vcmask 64512
      %v457 = vsel %vm456, %v455, -inf
      %458 = vmax.xlane.f32.xlu0 %v457
      %v459 = vpop.xlane.xlu0 %458
      %v460 = vsub.f32 %v455, %v459
      %v461 = vmul.f32 %v460, 1.442695
      %v462 = vpow.pop %v461
      %v463 = vsel %vm456, %v462, 0.0
      %464 = vadd.xlane.f32.xlu0 %v463
      %v465 = vpop.xlane.xlu0 %464
      %v466 = vrcp.pop %v465
      %v467 = vmul.f32 %v462, %v466
      %468 = vxpose.xlu0.b32.start [1/16] %v444, 128
      %469 = vxpose.xlu0.b32.cont [2/16] 0.0, 128
      %470 = vxpose.xlu0.b32.cont [3/16] 0.0, 128
      %471 = vxpose.xlu0.b32.cont [4/16] 0.0, 128
      %472 = vxpose.xlu0.b32.cont [5/16] 0.0, 128
      %473 = vxpose.xlu0.b32.cont [6/16] 0.0, 128
      %474 = vxpose.xlu0.b32.cont [7/16] 0.0, 128
      %475 = vxpose.xlu0.b32.cont [8/16] 0.0, 128
      %476 = vxpose.xlu0.b32.cont [9/16] 0.0, 128
      %477 = vxpose.xlu0.b32.cont [10/16] 0.0, 128
      %478 = vxpose.xlu0.b32.cont [11/16] 0.0, 128
      %479 = vxpose.xlu0.b32.cont [12/16] 0.0, 128
      %480 = vxpose.xlu0.b32.cont [13/16] 0.0, 128
      %481 = vxpose.xlu0.b32.cont [14/16] 0.0, 128
      %482 = vxpose.xlu0.b32.cont [15/16] 0.0, 128
      %483 = vxpose.xlu0.b32.end [16/16] 0.0, 128
      %v484 = vpop.trf.xlu0
      %v485 = vpop.trf.xlu0
      %v486 = vpop.trf.xlu0
      %v487 = vpop.trf.xlu0
      %v488 = vpop.trf.xlu0
      %v489 = vpop.trf.xlu0
      %v490 = vpop.trf.xlu0
      %v491 = vpop.trf.xlu0
      %v492 = vpop.trf.xlu0
      %v493 = vpop.trf.xlu0
      %v494 = vpop.trf.xlu0
      %v495 = vpop.trf.xlu0
      %v496 = vpop.trf.xlu0
      %v497 = vpop.trf.xlu0
      %v498 = vpop.trf.xlu0
      %v499 = vpop.trf.xlu0
      %v500 = vsub.f32 1.0, %v366
      %v501 = vmul.f32 %v500, -10000000.0
      %v503 = vlaneseq
      %v504 = vshrl.u32 %v503, 7
      %v505 = vsub.s32 0, %v504
      %v506 = vrot.slane %v501, %v505
      %v508 = vadd.f32 %v484, %v506
      %v509 = vsel %vm456, %v508, -inf
      %510 = vmax.xlane.f32.xlu0 %v509
      %v511 = vpop.xlane.xlu0 %510
      %v512 = vsub.f32 %v508, %v511
      %v513 = vmul.f32 %v512, 1.442695
      %v514 = vpow.pop %v513
      %v515 = vsel %vm456, %v514, 0.0
      %516 = vadd.xlane.f32.xlu0 %v515
      %v517 = vpop.xlane.xlu0 %516
      %v518 = vrcp.pop %v517
      %v519 = vmul.f32 %v514, %v518
      %v521 = vsel %vm456, %v467, 0
      %523 = vmatprep.subr.mxu0 0.0
      %524 = vmatpush1.msra.mxu0 0.0
      %525 = vmatprep.subr.mxu0 0.0
      %526 = vmatpush1.msra.mxu0 0.0
      %527 = vmatprep.subr.mxu0 0.0
      %528 = vmatpush1.msra.mxu0 0.0
      %529 = vmatprep.subr.mxu0 0.0
      %530 = vmatpush1.msra.mxu0 0.0
      %531 = vmatprep.subr.mxu0 0.0
      %532 = vmatpush1.msra.mxu0 0.0
      %533 = vmatprep.subr.mxu0 0.0
      %534 = vmatpush1.msra.mxu0 0.0
      %535 = vmatprep.subr.mxu0 0.0
      %536 = vmatpush1.msra.mxu0 0.0
      %537 = vmatprep.subr.mxu0 0.0
      %538 = vmatpush1.msra.mxu0 0.0
      %539 = vmatprep.subr.mxu0 0.0
      %540 = vmatpush1.msra.mxu0 0.0
      %541 = vmatprep.subr.mxu0 0.0
      %542 = vmatpush1.msra.mxu0 0.0
      %543 = vmatprep.subr.mxu0 0.0
      %544 = vmatpush1.msra.mxu0 0.0
      %545 = vmatprep.subr.mxu0 0.0
      %546 = vmatpush1.msra.mxu0 0.0
      %547 = vmatprep.subr.mxu0 0.0
      %548 = vmatpush1.msra.mxu0 0.0
      %549 = vmatprep.subr.mxu0 0.0
      %550 = vmatpush1.msra.mxu0 0.0
      %551 = vmatprep.subr.mxu0 0.0
      %552 = vmatpush1.msra.mxu0 0.0
      %553 = vmatprep.subr.mxu0 0.0
      %554 = vmatpush1.msra.mxu0 %v365
      %555 = vmatprep.subr.mxu0 0.0
      %556 = vmatpush2.msra.mxu0 0.0
      %557 = vmatprep.subr.mxu0 0.0
      %558 = vmatpush2.msra.mxu0 0.0
      %559 = vmatprep.subr.mxu0 0.0
      %560 = vmatpush2.msra.mxu0 0.0
      %561 = vmatprep.subr.mxu0 0.0
      %562 = vmatpush2.msra.mxu0 0.0
      %563 = vmatprep.subr.mxu0 0.0
      %564 = vmatpush2.msra.mxu0 0.0
      %565 = vmatprep.subr.mxu0 0.0
      %566 = vmatpush2.msra.mxu0 0.0
      %567 = vmatprep.subr.mxu0 0.0
      %568 = vmatpush2.msra.mxu0 0.0
      %569 = vmatprep.subr.mxu0 0.0
      %570 = vmatpush2.msra.mxu0 0.0
      %571 = vmatprep.subr.mxu0 0.0
      %572 = vmatpush2.msra.mxu0 0.0
      %573 = vmatprep.subr.mxu0 0.0
      %574 = vmatpush2.msra.mxu0 0.0
      %575 = vmatprep.subr.mxu0 0.0
      %576 = vmatpush2.msra.mxu0 0.0
      %577 = vmatprep.subr.mxu0 0.0
      %578 = vmatpush2.msra.mxu0 0.0
      %579 = vmatprep.subr.mxu0 0.0
      %580 = vmatpush2.msra.mxu0 0.0
      %581 = vmatprep.subr.mxu0 0.0
      %582 = vmatpush2.msra.mxu0 0.0
      %583 = vmatprep.subr.mxu0 0.0
      %584 = vmatpush2.msra.mxu0 0.0
      %585 = vmatprep.subr.mxu0 0.0
      %586 = vmatpush2.msra.mxu0 0.0
      %587 = vmatprep.mubr.f32.mxu0 0.0
      %588 = vmatmul.mubr.f32.gmra.mxu0 %v521
      %v589 = vpop.f32.mrf.mxu0
      %v590 = vadd.f32 0.0, %v589
      %v591 = vpop.f32.mrf.mxu0
      %592 = vdwg.mxu0
      %594 = vset.pattern.permute.xlu0 0
      %595 = vperm.xlu0 %594, %v367
      %v596 = vpop.permute.xlu0 %595
      %v598 = vmul.f32 %v590, %v596
      %599 = vst.msk [vmem:[%s359] sm:$0xff] %vm370, %v598
      %v601 = vsel %vm456, %v519, 0
      %603 = vmatprep.subr.mxu0 0.0
      %604 = vmatpush1.msra.mxu0 0.0
      %605 = vmatprep.subr.mxu0 0.0
      %606 = vmatpush1.msra.mxu0 0.0
      %607 = vmatprep.subr.mxu0 0.0
      %608 = vmatpush1.msra.mxu0 0.0
      %609 = vmatprep.subr.mxu0 0.0
      %610 = vmatpush1.msra.mxu0 0.0
      %611 = vmatprep.subr.mxu0 0.0
      %612 = vmatpush1.msra.mxu0 0.0
      %613 = vmatprep.subr.mxu0 0.0
      %614 = vmatpush1.msra.mxu0 0.0
      %615 = vmatprep.subr.mxu0 0.0
      %616 = vmatpush1.msra.mxu0 0.0
      %617 = vmatprep.subr.mxu0 0.0
      %618 = vmatpush1.msra.mxu0 0.0
      %619 = vmatprep.subr.mxu0 0.0
      %620 = vmatpush1.msra.mxu0 0.0
      %621 = vmatprep.subr.mxu0 0.0
      %622 = vmatpush1.msra.mxu0 0.0
      %623 = vmatprep.subr.mxu0 0.0
      %624 = vmatpush1.msra.mxu0 0.0
      %625 = vmatprep.subr.mxu0 0.0
      %626 = vmatpush1.msra.mxu0 0.0
      %627 = vmatprep.subr.mxu0 0.0
      %628 = vmatpush1.msra.mxu0 0.0
      %629 = vmatprep.subr.mxu0 0.0
      %630 = vmatpush1.msra.mxu0 0.0
      %631 = vmatprep.subr.mxu0 0.0
      %632 = vmatpush1.msra.mxu0 0.0
      %633 = vmatprep.subr.mxu0 0.0
      %634 = vmatpush1.msra.mxu0 %v364
      %635 = vmatprep.subr.mxu0 0.0
      %636 = vmatpush2.msra.mxu0 0.0
      %637 = vmatprep.subr.mxu0 0.0
      %638 = vmatpush2.msra.mxu0 0.0
      %639 = vmatprep.subr.mxu0 0.0
      %640 = vmatpush2.msra.mxu0 0.0
      %641 = vmatprep.subr.mxu0 0.0
      %642 = vmatpush2.msra.mxu0 0.0
      %643 = vmatprep.subr.mxu0 0.0
      %644 = vmatpush2.msra.mxu0 0.0
      %645 = vmatprep.subr.mxu0 0.0
      %646 = vmatpush2.msra.mxu0 0.0
      %647 = vmatprep.subr.mxu0 0.0
      %648 = vmatpush2.msra.mxu0 0.0
      %649 = vmatprep.subr.mxu0 0.0
      %650 = vmatpush2.msra.mxu0 0.0
      %651 = vmatprep.subr.mxu0 0.0
      %652 = vmatpush2.msra.mxu0 0.0
      %653 = vmatprep.subr.mxu0 0.0
      %654 = vmatpush2.msra.mxu0 0.0
      %655 = vmatprep.subr.mxu0 0.0
      %656 = vmatpush2.msra.mxu0 0.0
      %657 = vmatprep.subr.mxu0 0.0
      %658 = vmatpush2.msra.mxu0 0.0
      %659 = vmatprep.subr.mxu0 0.0
      %660 = vmatpush2.msra.mxu0 0.0
      %661 = vmatprep.subr.mxu0 0.0
      %662 = vmatpush2.msra.mxu0 0.0
      %663 = vmatprep.subr.mxu0 0.0
      %664 = vmatpush2.msra.mxu0 0.0
      %665 = vmatprep.subr.mxu0 0.0
      %666 = vmatpush2.msra.mxu0 0.0
      %667 = vmatprep.mubr.f32.mxu0 0.0
      %668 = vmatmul.mubr.f32.gmra.mxu0 %v601
      %v669 = vpop.f32.mrf.mxu0
      %v670 = vadd.f32 0.0, %v669
      %v671 = vpop.f32.mrf.mxu0
      %672 = vdwg.mxu0
      %674 = vset.pattern.permute.xlu0 0
      %675 = vperm.xlu0 %674, %v369
      %v676 = vpop.permute.xlu0 %675
      %v678 = vmul.f32 %v670, %v676
      %679 = vst.msk [vmem:[%s363] sm:$0xff] %vm370, %v678
      %p680 = scmp.lt.s32.totalorder %s19, 1
      %s681 = scalar_select %p680, %s19, 1
      %s682 = smul.addr %s681, 8
      %s683 = scalar_lea.vmem %s6, %s682
      %p684 = scmp.lt.s32.totalorder %s19, 1
      %s685 = scalar_select %p684, %s19, 1
      %s686 = smul.addr %s685, 8
      %s687 = scalar_lea.vmem %s7, %s686
      // Predicated region
      $region45: #{esim_forward.11} parent=43 // pred_check
        %p688 = pneg %p193
      $region46: #{esim_forward.11} parent=43 // pred_check_branch
        %690 = sbr.rel (%p688) target = $region48
      $region47: #{esim_forward.11} parent=43 // pred_region
        _
      $region48: #{esim_forward.11} parent=43 // pred_fallthru
        _
      // Predicated region
      $region49: #{esim_forward.11} parent=43 // pred_check
        %p691 = pneg %p219
      $region50: #{esim_forward.11} parent=43 // pred_check_branch
        %693 = sbr.rel (%p691) target = $region52
      $region51: #{esim_forward.11} parent=43 // pred_region
        _
      $region52: #{esim_forward.11} parent=43 // pred_fallthru
        _
    $region44: #{esim_forward.11} parent=5 // pred_fallthru
      _
    %p694 = scmp.le.s32.totalorder 2, %s14
    // Predicated region
    $region53: #{esim_forward.11} parent=5 // pred_check
      %p695 = pneg %p694
    $region54: #{esim_forward.11} parent=5 // pred_check_branch
      %697 = sbr.rel (%p695) target = $region56
    $region55: #{esim_forward.11} parent=5 // pred_region
      %s698 = ssub.s32 %s14, 2
      // Predicated region
      $region57: #{esim_forward.11} parent=55 // pred_check
        %p699 = pneg %p199
      $region58: #{esim_forward.11} parent=55 // pred_check_branch
        %701 = sbr.rel (%p699) target = $region60
      $region59: #{esim_forward.11} parent=55 // pred_region
        %p702 = scmp.lt.s32.totalorder %s20, 1
        %s703 = scalar_select %p702, %s20, 1
        %s704 = smul.addr %s703, 8
        %s705 = scalar_lea.vmem %s6, %s704
      $region60: #{esim_forward.11} parent=55 // pred_fallthru
        _
      // Predicated region
      $region61: #{esim_forward.11} parent=55 // pred_check
        %p706 = pneg %p225
      $region62: #{esim_forward.11} parent=55 // pred_check_branch
        %708 = sbr.rel (%p706) target = $region64
      $region63: #{esim_forward.11} parent=55 // pred_region
        %p709 = scmp.lt.s32.totalorder %s20, 1
        %s710 = scalar_select %p709, %s20, 1
        %s711 = smul.addr %s710, 8
        %s712 = scalar_lea.vmem %s7, %s711
      $region64: #{esim_forward.11} parent=55 // pred_fallthru
        _
    $region56: #{esim_forward.11} parent=5 // pred_fallthru
      _
  $region6: #{esim_forward.11} parent=0 // loop_footer
    %s18 = sadd.s32 1, %s14
  $region7: #{esim_forward.11} parent=0 // loop_footer_branch
    %13 = sbr.rel target = $region3
  $region8: #{esim_forward.11} parent=0 // loop_exit
    _

// kernel: esim_forward.12
$region0: #{esim_forward.12}
  #allocation0 [shape = 'u32[]', space=smem, size = 0x4, offset = 0x4, fixed_abs, tag = 'smem constant byte address 0x4 - core index']
  #allocation1 [shape = 'u32[144,128]{1,0:T(1,128)}', space=vmem, size = 0x12000, scoped, tag = 'internal scratch']
  %s0 = inlined_call_operand.vmem [shape: f32[32,64], index: 0, kind: input, shape index: {}]
  %s1 = inlined_call_operand.vmem [shape: f32[32,64], index: 1, kind: input, shape index: {}]
  %s2 = inlined_call_operand.vmem [shape: f32[64,32], index: 2, kind: input, shape index: {}]
  %s3 = inlined_call_operand.vmem [shape: f32[64,32], index: 3, kind: input, shape index: {}]
  %s4 = inlined_call_operand.vmem [shape: f32[64,32], index: 4, kind: input, shape index: {}]
  %s5 = inlined_call_operand.vmem [shape: f32[1,32], index: 5, kind: input, shape index: {}]
  %s6 = inlined_call_operand.vmem [shape: f32[32,32], index: 6, kind: output, shape index: {}]
  %s7 = sld [smem:[#allocation0]]
  $region34: #{esim_forward.12} parent=0
    _
  %s9 = ssub.s32 1, %s7
  %s10 = scalar_select 0, %s9, %s7
  // Predicated region
  $region2: #{esim_forward.12} parent=0 // pred_check
    _
  $region3: #{esim_forward.12} parent=0 // pred_check_branch
    %12 = sbr.rel (0) target = $region5
  $region4: #{esim_forward.12} parent=0 // pred_region
    _
  $region5: #{esim_forward.12} parent=0 // pred_fallthru
    _
  // Predicated region
  $region6: #{esim_forward.12} parent=0 // pred_check
    _
  $region7: #{esim_forward.12} parent=0 // pred_check_branch
    %14 = sbr.rel (0) target = $region9
  $region8: #{esim_forward.12} parent=0 // pred_region
    _
  $region9: #{esim_forward.12} parent=0 // pred_fallthru
    _
  // Predicated region
  $region10: #{esim_forward.12} parent=0 // pred_check
    _
  $region11: #{esim_forward.12} parent=0 // pred_check_branch
    %16 = sbr.rel (0) target = $region13
  $region12: #{esim_forward.12} parent=0 // pred_region
    _
  $region13: #{esim_forward.12} parent=0 // pred_fallthru
    _
  // Predicated region
  $region14: #{esim_forward.12} parent=0 // pred_check
    _
  $region15: #{esim_forward.12} parent=0 // pred_check_branch
    %18 = sbr.rel (0) target = $region17
  $region16: #{esim_forward.12} parent=0 // pred_region
    _
  $region17: #{esim_forward.12} parent=0 // pred_fallthru
    _
  // Predicated region
  $region18: #{esim_forward.12} parent=0 // pred_check
    _
  $region19: #{esim_forward.12} parent=0 // pred_check_branch
    %20 = sbr.rel (0) target = $region21
  $region20: #{esim_forward.12} parent=0 // pred_region
    _
  $region21: #{esim_forward.12} parent=0 // pred_fallthru
    _
  // Predicated region
  $region22: #{esim_forward.12} parent=0 // pred_check
    _
  $region23: #{esim_forward.12} parent=0 // pred_check_branch
    %22 = sbr.rel (0) target = $region25
  $region24: #{esim_forward.12} parent=0 // pred_region
    _
  $region25: #{esim_forward.12} parent=0 // pred_fallthru
    _
  %v23 = vld [vmem:[%s0] sm:$0xff]
  %v24 = vld [vmem:[%s0 + $0x8] sm:$0xff]
  %v25 = vld [vmem:[%s0 + $0x10] sm:$0xff]
  %v26 = vld [vmem:[%s0 + $0x18] sm:$0xff]
  %v27 = vld [vmem:[%s1] sm:$0xff]
  %v28 = vld [vmem:[%s1 + $0x8] sm:$0xff]
  %v29 = vld [vmem:[%s1 + $0x10] sm:$0xff]
  %v30 = vld [vmem:[%s1 + $0x18] sm:$0xff]
  %v31 = vld [vmem:[%s2] sm:$0xff]
  %v32 = vld [vmem:[%s2 + $0x8] sm:$0xff]
  %v33 = vld [vmem:[%s2 + $0x10] sm:$0xff]
  %v34 = vld [vmem:[%s2 + $0x18] sm:$0xff]
  %v35 = vld [vmem:[%s2 + $0x20] sm:$0xff]
  %v36 = vld [vmem:[%s2 + $0x28] sm:$0xff]
  %v37 = vld [vmem:[%s2 + $0x30] sm:$0xff]
  %v38 = vld [vmem:[%s2 + $0x38] sm:$0xff]
  %v39 = vld [vmem:[%s3] sm:$0xff]
  %v40 = vld [vmem:[%s3 + $0x8] sm:$0xff]
  %v41 = vld [vmem:[%s3 + $0x10] sm:$0xff]
  %v42 = vld [vmem:[%s3 + $0x18] sm:$0xff]
  %v43 = vld [vmem:[%s3 + $0x20] sm:$0xff]
  %v44 = vld [vmem:[%s3 + $0x28] sm:$0xff]
  %v45 = vld [vmem:[%s3 + $0x30] sm:$0xff]
  %v46 = vld [vmem:[%s3 + $0x38] sm:$0xff]
  %vm47 = vcmask 523264
  %v49 = vsel %vm47, %v27, 0
  %v52 = vsel %vm47, %v28, 0
  %v55 = vsel %vm47, %v29, 0
  %v58 = vsel %vm47, %v30, 0
  %60 = vmatprep.subr.mxu0 0.0
  %61 = vmatpush1.msra.mxu0 0.0
  %62 = vmatprep.subr.mxu0 0.0
  %63 = vmatpush1.msra.mxu0 0.0
  %64 = vmatprep.subr.mxu0 0.0
  %65 = vmatpush1.msra.mxu0 0.0
  %66 = vmatprep.subr.mxu0 0.0
  %67 = vmatpush1.msra.mxu0 0.0
  %68 = vmatprep.subr.mxu0 0.0
  %69 = vmatpush1.msra.mxu0 0.0
  %70 = vmatprep.subr.mxu0 0.0
  %71 = vmatpush1.msra.mxu0 0.0
  %72 = vmatprep.subr.mxu0 0.0
  %73 = vmatpush1.msra.mxu0 0.0
  %74 = vmatprep.subr.mxu0 0.0
  %75 = vmatpush1.msra.mxu0 0.0
  %76 = vmatprep.subr.mxu0 0.0
  %77 = vmatpush1.msra.mxu0 %v46
  %78 = vmatprep.subr.mxu0 0.0
  %79 = vmatpush1.msra.mxu0 %v45
  %80 = vmatprep.subr.mxu0 0.0
  %81 = vmatpush1.msra.mxu0 %v44
  %82 = vmatprep.subr.mxu0 0.0
  %83 = vmatpush1.msra.mxu0 %v43
  %84 = vmatprep.subr.mxu0 0.0
  %85 = vmatpush1.msra.mxu0 %v42
  %86 = vmatprep.subr.mxu0 0.0
  %87 = vmatpush1.msra.mxu0 %v41
  %88 = vmatprep.subr.mxu0 0.0
  %89 = vmatpush1.msra.mxu0 %v40
  %90 = vmatprep.subr.mxu0 0.0
  %91 = vmatpush1.msra.mxu0 %v39
  %92 = vmatprep.subr.mxu0 0.0
  %93 = vmatpush2.msra.mxu0 0.0
  %94 = vmatprep.subr.mxu0 0.0
  %95 = vmatpush2.msra.mxu0 0.0
  %96 = vmatprep.subr.mxu0 0.0
  %97 = vmatpush2.msra.mxu0 0.0
  %98 = vmatprep.subr.mxu0 0.0
  %99 = vmatpush2.msra.mxu0 0.0
  %100 = vmatprep.subr.mxu0 0.0
  %101 = vmatpush2.msra.mxu0 0.0
  %102 = vmatprep.subr.mxu0 0.0
  %103 = vmatpush2.msra.mxu0 0.0
  %104 = vmatprep.subr.mxu0 0.0
  %105 = vmatpush2.msra.mxu0 0.0
  %106 = vmatprep.subr.mxu0 0.0
  %107 = vmatpush2.msra.mxu0 0.0
  %108 = vmatprep.subr.mxu0 0.0
  %109 = vmatpush2.msra.mxu0 0.0
  %110 = vmatprep.subr.mxu0 0.0
  %111 = vmatpush2.msra.mxu0 0.0
  %112 = vmatprep.subr.mxu0 0.0
  %113 = vmatpush2.msra.mxu0 0.0
  %114 = vmatprep.subr.mxu0 0.0
  %115 = vmatpush2.msra.mxu0 0.0
  %116 = vmatprep.subr.mxu0 0.0
  %117 = vmatpush2.msra.mxu0 0.0
  %118 = vmatprep.subr.mxu0 0.0
  %119 = vmatpush2.msra.mxu0 0.0
  %120 = vmatprep.subr.mxu0 0.0
  %121 = vmatpush2.msra.mxu0 0.0
  %122 = vmatprep.subr.mxu0 0.0
  %123 = vmatpush2.msra.mxu0 0.0
  %124 = vmatprep.mubr.f32.mxu0 0.0
  %125 = vmatmul.mubr.f32.gmra.mxu0 %v49
  %v126 = vpop.f32.mrf.mxu0
  %v127 = vadd.f32 0.0, %v126
  %v128 = vpop.f32.mrf.mxu0
  %129 = vmatprep.mubr.f32.mxu0 0.0
  %130 = vmatmul.mubr.f32.gmra.mxu0 %v52
  %v131 = vpop.f32.mrf.mxu0
  %v132 = vadd.f32 0.0, %v131
  %v133 = vpop.f32.mrf.mxu0
  %134 = vmatprep.mubr.f32.mxu0 0.0
  %135 = vmatmul.mubr.f32.gmra.mxu0 %v55
  %v136 = vpop.f32.mrf.mxu0
  %v137 = vadd.f32 0.0, %v136
  %v138 = vpop.f32.mrf.mxu0
  %139 = vmatprep.mubr.f32.mxu0 0.0
  %140 = vmatmul.mubr.f32.gmra.mxu0 %v58
  %v141 = vpop.f32.mrf.mxu0
  %v142 = vadd.f32 0.0, %v141
  %v143 = vpop.f32.mrf.mxu0
  %144 = vdwg.mxu0
  %v146 = vsel %vm47, %v23, 0
  %v149 = vsel %vm47, %v24, 0
  %v152 = vsel %vm47, %v25, 0
  %v155 = vsel %vm47, %v26, 0
  %157 = vmatprep.subr.mxu0 0.0
  %158 = vmatpush1.msra.mxu0 0.0
  %159 = vmatprep.subr.mxu0 0.0
  %160 = vmatpush1.msra.mxu0 0.0
  %161 = vmatprep.subr.mxu0 0.0
  %162 = vmatpush1.msra.mxu0 0.0
  %163 = vmatprep.subr.mxu0 0.0
  %164 = vmatpush1.msra.mxu0 0.0
  %165 = vmatprep.subr.mxu0 0.0
  %166 = vmatpush1.msra.mxu0 0.0
  %167 = vmatprep.subr.mxu0 0.0
  %168 = vmatpush1.msra.mxu0 0.0
  %169 = vmatprep.subr.mxu0 0.0
  %170 = vmatpush1.msra.mxu0 0.0
  %171 = vmatprep.subr.mxu0 0.0
  %172 = vmatpush1.msra.mxu0 0.0
  %173 = vmatprep.subr.mxu0 0.0
  %174 = vmatpush1.msra.mxu0 %v38
  %175 = vmatprep.subr.mxu0 0.0
  %176 = vmatpush1.msra.mxu0 %v37
  %177 = vmatprep.subr.mxu0 0.0
  %178 = vmatpush1.msra.mxu0 %v36
  %179 = vmatprep.subr.mxu0 0.0
  %180 = vmatpush1.msra.mxu0 %v35
  %181 = vmatprep.subr.mxu0 0.0
  %182 = vmatpush1.msra.mxu0 %v34
  %183 = vmatprep.subr.mxu0 0.0
  %184 = vmatpush1.msra.mxu0 %v33
  %185 = vmatprep.subr.mxu0 0.0
  %186 = vmatpush1.msra.mxu0 %v32
  %187 = vmatprep.subr.mxu0 0.0
  %188 = vmatpush1.msra.mxu0 %v31
  %189 = vmatprep.subr.mxu0 0.0
  %190 = vmatpush2.msra.mxu0 0.0
  %191 = vmatprep.subr.mxu0 0.0
  %192 = vmatpush2.msra.mxu0 0.0
  %193 = vmatprep.subr.mxu0 0.0
  %194 = vmatpush2.msra.mxu0 0.0
  %195 = vmatprep.subr.mxu0 0.0
  %196 = vmatpush2.msra.mxu0 0.0
  %197 = vmatprep.subr.mxu0 0.0
  %198 = vmatpush2.msra.mxu0 0.0
  %199 = vmatprep.subr.mxu0 0.0
  %200 = vmatpush2.msra.mxu0 0.0
  %201 = vmatprep.subr.mxu0 0.0
  %202 = vmatpush2.msra.mxu0 0.0
  %203 = vmatprep.subr.mxu0 0.0
  %204 = vmatpush2.msra.mxu0 0.0
  %205 = vmatprep.subr.mxu0 0.0
  %206 = vmatpush2.msra.mxu0 0.0
  %207 = vmatprep.subr.mxu0 0.0
  %208 = vmatpush2.msra.mxu0 0.0
  %209 = vmatprep.subr.mxu0 0.0
  %210 = vmatpush2.msra.mxu0 0.0
  %211 = vmatprep.subr.mxu0 0.0
  %212 = vmatpush2.msra.mxu0 0.0
  %213 = vmatprep.subr.mxu0 0.0
  %214 = vmatpush2.msra.mxu0 0.0
  %215 = vmatprep.subr.mxu0 0.0
  %216 = vmatpush2.msra.mxu0 0.0
  %217 = vmatprep.subr.mxu0 0.0
  %218 = vmatpush2.msra.mxu0 0.0
  %219 = vmatprep.subr.mxu0 0.0
  %220 = vmatpush2.msra.mxu0 0.0
  %221 = vmatprep.mubr.f32.mxu0 0.0
  %222 = vmatmul.mubr.f32.gmra.mxu0 %v146
  %v223 = vpop.f32.mrf.mxu0
  %v224 = vadd.f32 %v127, %v223
  %v225 = vpop.f32.mrf.mxu0
  %226 = vmatprep.mubr.f32.mxu0 0.0
  %227 = vmatmul.mubr.f32.gmra.mxu0 %v149
  %v228 = vpop.f32.mrf.mxu0
  %v229 = vadd.f32 %v132, %v228
  %v230 = vpop.f32.mrf.mxu0
  %231 = vmatprep.mubr.f32.mxu0 0.0
  %232 = vmatmul.mubr.f32.gmra.mxu0 %v152
  %v233 = vpop.f32.mrf.mxu0
  %v234 = vadd.f32 %v137, %v233
  %v235 = vpop.f32.mrf.mxu0
  %236 = vmatprep.mubr.f32.mxu0 0.0
  %237 = vmatmul.mubr.f32.gmra.mxu0 %v155
  %v238 = vpop.f32.mrf.mxu0
  %v239 = vadd.f32 %v142, %v238
  %v240 = vpop.f32.mrf.mxu0
  %241 = vdwg.mxu0
  %v242 = vmul.f32 %v23, %v27
  %v243 = vmul.f32 %v24, %v28
  %v244 = vmul.f32 %v25, %v29
  %v245 = vmul.f32 %v26, %v30
  %v246 = vld [vmem:[%s4] sm:$0xff]
  %v247 = vld [vmem:[%s4 + $0x8] sm:$0xff]
  %v248 = vld [vmem:[%s4 + $0x10] sm:$0xff]
  %v249 = vld [vmem:[%s4 + $0x18] sm:$0xff]
  %v250 = vld [vmem:[%s4 + $0x20] sm:$0xff]
  %v251 = vld [vmem:[%s4 + $0x28] sm:$0xff]
  %v252 = vld [vmem:[%s4 + $0x30] sm:$0xff]
  %v253 = vld [vmem:[%s4 + $0x38] sm:$0xff]
  %v255 = vsel %vm47, %v242, 0
  %v258 = vsel %vm47, %v243, 0
  %v261 = vsel %vm47, %v244, 0
  %v264 = vsel %vm47, %v245, 0
  %266 = vmatprep.subr.mxu0 0.0
  %267 = vmatpush1.msra.mxu0 0.0
  %268 = vmatprep.subr.mxu0 0.0
  %269 = vmatpush1.msra.mxu0 0.0
  %270 = vmatprep.subr.mxu0 0.0
  %271 = vmatpush1.msra.mxu0 0.0
  %272 = vmatprep.subr.mxu0 0.0
  %273 = vmatpush1.msra.mxu0 0.0
  %274 = vmatprep.subr.mxu0 0.0
  %275 = vmatpush1.msra.mxu0 0.0
  %276 = vmatprep.subr.mxu0 0.0
  %277 = vmatpush1.msra.mxu0 0.0
  %278 = vmatprep.subr.mxu0 0.0
  %279 = vmatpush1.msra.mxu0 0.0
  %280 = vmatprep.subr.mxu0 0.0
  %281 = vmatpush1.msra.mxu0 0.0
  %282 = vmatprep.subr.mxu0 0.0
  %283 = vmatpush1.msra.mxu0 %v253
  %284 = vmatprep.subr.mxu0 0.0
  %285 = vmatpush1.msra.mxu0 %v252
  %286 = vmatprep.subr.mxu0 0.0
  %287 = vmatpush1.msra.mxu0 %v251
  %288 = vmatprep.subr.mxu0 0.0
  %289 = vmatpush1.msra.mxu0 %v250
  %290 = vmatprep.subr.mxu0 0.0
  %291 = vmatpush1.msra.mxu0 %v249
  %292 = vmatprep.subr.mxu0 0.0
  %293 = vmatpush1.msra.mxu0 %v248
  %294 = vmatprep.subr.mxu0 0.0
  %295 = vmatpush1.msra.mxu0 %v247
  %296 = vmatprep.subr.mxu0 0.0
  %297 = vmatpush1.msra.mxu0 %v246
  %298 = vmatprep.subr.mxu0 0.0
  %299 = vmatpush2.msra.mxu0 0.0
  %300 = vmatprep.subr.mxu0 0.0
  %301 = vmatpush2.msra.mxu0 0.0
  %302 = vmatprep.subr.mxu0 0.0
  %303 = vmatpush2.msra.mxu0 0.0
  %304 = vmatprep.subr.mxu0 0.0
  %305 = vmatpush2.msra.mxu0 0.0
  %306 = vmatprep.subr.mxu0 0.0
  %307 = vmatpush2.msra.mxu0 0.0
  %308 = vmatprep.subr.mxu0 0.0
  %309 = vmatpush2.msra.mxu0 0.0
  %310 = vmatprep.subr.mxu0 0.0
  %311 = vmatpush2.msra.mxu0 0.0
  %312 = vmatprep.subr.mxu0 0.0
  %313 = vmatpush2.msra.mxu0 0.0
  %314 = vmatprep.subr.mxu0 0.0
  %315 = vmatpush2.msra.mxu0 0.0
  %316 = vmatprep.subr.mxu0 0.0
  %317 = vmatpush2.msra.mxu0 0.0
  %318 = vmatprep.subr.mxu0 0.0
  %319 = vmatpush2.msra.mxu0 0.0
  %320 = vmatprep.subr.mxu0 0.0
  %321 = vmatpush2.msra.mxu0 0.0
  %322 = vmatprep.subr.mxu0 0.0
  %323 = vmatpush2.msra.mxu0 0.0
  %324 = vmatprep.subr.mxu0 0.0
  %325 = vmatpush2.msra.mxu0 0.0
  %326 = vmatprep.subr.mxu0 0.0
  %327 = vmatpush2.msra.mxu0 0.0
  %328 = vmatprep.subr.mxu0 0.0
  %329 = vmatpush2.msra.mxu0 0.0
  %330 = vmatprep.mubr.f32.mxu0 0.0
  %331 = vmatmul.mubr.f32.gmra.mxu0 %v255
  %v332 = vpop.f32.mrf.mxu0
  %v333 = vadd.f32 0.0, %v332
  %v334 = vpop.f32.mrf.mxu0
  %335 = vmatprep.mubr.f32.mxu0 0.0
  %336 = vmatmul.mubr.f32.gmra.mxu0 %v258
  %v337 = vpop.f32.mrf.mxu0
  %v338 = vadd.f32 0.0, %v337
  %v339 = vpop.f32.mrf.mxu0
  %340 = vmatprep.mubr.f32.mxu0 0.0
  %341 = vmatmul.mubr.f32.gmra.mxu0 %v261
  %v342 = vpop.f32.mrf.mxu0
  %v343 = vadd.f32 0.0, %v342
  %v344 = vpop.f32.mrf.mxu0
  %345 = vmatprep.mubr.f32.mxu0 0.0
  %346 = vmatmul.mubr.f32.gmra.mxu0 %v264
  %v347 = vpop.f32.mrf.mxu0
  %v348 = vadd.f32 0.0, %v347
  %v349 = vpop.f32.mrf.mxu0
  %350 = vdwg.mxu0
  %v351 = vadd.f32 %v224, %v333
  %v352 = vadd.f32 %v229, %v338
  %v353 = vadd.f32 %v234, %v343
  %v354 = vadd.f32 %v239, %v348
  %v355 = vld [vmem:[%s5] sm:$0x1]
  %v357 = vlaneseq
  %v358 = vshrl.u32 %v357, 7
  %v359 = vsub.s32 0, %v358
  %v360 = vrot.slane %v355, %v359
  %v362 = vadd.f32 %v351, %v360
  %v363 = vadd.f32 %v352, %v360
  %v364 = vadd.f32 %v353, %v360
  %v365 = vadd.f32 %v354, %v360
  %v366 = vmax.f32 %v362, 0.0
  %v367 = vmax.f32 %v363, 0.0
  %v368 = vmax.f32 %v364, 0.0
  %v369 = vmax.f32 %v365, 0.0
  %vm370 = vcmask 261120
  %371 = vst.msk [vmem:[%s6] sm:$0xff] %vm370, %v366
  %372 = vst.msk [vmem:[%s6 + $0x8] sm:$0xff] %vm370, %v367
  %373 = vst.msk [vmem:[%s6 + $0x10] sm:$0xff] %vm370, %v368
  %374 = vst.msk [vmem:[%s6 + $0x18] sm:$0xff] %vm370, %v369
  // Predicated region
  $region26: #{esim_forward.12} parent=0 // pred_check
    _
  $region27: #{esim_forward.12} parent=0 // pred_check_branch
    %376 = sbr.rel (0) target = $region29
  $region28: #{esim_forward.12} parent=0 // pred_region
    _
  $region29: #{esim_forward.12} parent=0 // pred_fallthru
    _
  // Predicated region
  $region30: #{esim_forward.12} parent=0 // pred_check
    _
  $region31: #{esim_forward.12} parent=0 // pred_check_branch
    %378 = sbr.rel (0) target = $region33
  $region32: #{esim_forward.12} parent=0 // pred_region
    _
  $region33: #{esim_forward.12} parent=0 // pred_fallthru
    _

// kernel: esim_forward.15
$region0: #{esim_forward.15}
  #allocation0 [shape = 'u32[]', space=smem, size = 0x4, offset = 0x4, fixed_abs, tag = 'smem constant byte address 0x4 - core index']
  #allocation1 [shape = 'u32[144,128]{1,0:T(1,128)}', space=vmem, size = 0x12000, scoped, tag = 'internal scratch']
  %s0 = inlined_call_operand.vmem [shape: f32[4,8,64], index: 0, kind: input, shape index: {}]
  %s1 = inlined_call_operand.vmem [shape: f32[4,8,1], index: 1, kind: input, shape index: {}]
  %s2 = inlined_call_operand.vmem [shape: f32[4,1,128], index: 2, kind: output, shape index: {}]
  %s3 = sld [smem:[#allocation0]]
  $region41: #{esim_forward.15} parent=0
    _
  %s5 = ssub.s32 1, %s3
  %s6 = scalar_select 0, %s5, %s3
  loop: start=0, step=1, limit=6
  $region2: #{esim_forward.15} parent=0 // loop_pre_header
    _
  $region3: #{esim_forward.15} parent=0 // loop_header
    %s8 = sphi 0, %s12
    %p9 = scmp.ge.s32.totalorder %s8, 6
    %s18 = sphi 0, %s20
    %s21 = sphi 0, %s18
    %s22 = sphi 0, %s21
    %s38 = sphi 0, %s22
    %s44 = sphi 0, %s46
    %s47 = sphi 0, %s44
    %s48 = sphi 0, %s47
    %s64 = sphi 0, %s48
    %s70 = sphi 0, %s72
    %s73 = sphi 0, %s70
    %s74 = sphi 0, %s73
    %s90 = sphi 0, %s74
  $region4: #{esim_forward.15} parent=0 // loop_header_branch
    %11 = sbr.rel (%p9) target = $region8
  $region5: #{esim_forward.15} parent=0 // loop_body
    %s13 = ssub.s32 %s8, 1
    %s14 = ssub.s32 %s8, 2
    %s15 = sadd.s32 %s8, 1
    %s16 = ssub.s32 %s8, %s15
    %p17 = scmp.eq.s32.totalorder %s16, 0
    %s19 = sadd.s32 %s18, 1
    %s20 = scalar_select %p17, %s18, %s19
    %p23 = pneg %p17
    %p24 = scmp.eq.s32.totalorder %s8, 3
    %p25 = por %p23, %p24
    %p26 = scmp.ne.s32.totalorder %s18, %s21
    %p27 = scmp.eq.s32.totalorder %s8, 0
    %p28 = por %p26, %p27
    %p29 = scmp.ne.s32.totalorder %s18, %s21
    %p30 = scmp.eq.s32.totalorder %s13, 3
    %p31 = por %p29, %p30
    %p32 = scmp.ne.s32.totalorder %s21, %s22
    %p33 = scmp.eq.s32.totalorder %s13, 0
    %p34 = por %p32, %p33
    %p35 = scmp.ne.s32.totalorder %s21, %s22
    %p36 = scmp.eq.s32.totalorder %s14, 3
    %p37 = por %p35, %p36
    %p39 = scmp.ne.s32.totalorder %s22, %s38
    %p40 = scmp.eq.s32.totalorder %s14, 0
    %p41 = por %p39, %p40
    %s42 = ssub.s32 %s8, %s15
    %p43 = scmp.eq.s32.totalorder %s42, 0
    %s45 = sadd.s32 %s44, 1
    %s46 = scalar_select %p43, %s44, %s45
    %p49 = pneg %p43
    %p50 = scmp.eq.s32.totalorder %s8, 3
    %p51 = por %p49, %p50
    %p52 = scmp.ne.s32.totalorder %s44, %s47
    %p53 = scmp.eq.s32.totalorder %s8, 0
    %p54 = por %p52, %p53
    %p55 = scmp.ne.s32.totalorder %s44, %s47
    %p56 = scmp.eq.s32.totalorder %s13, 3
    %p57 = por %p55, %p56
    %p58 = scmp.ne.s32.totalorder %s47, %s48
    %p59 = scmp.eq.s32.totalorder %s13, 0
    %p60 = por %p58, %p59
    %p61 = scmp.ne.s32.totalorder %s47, %s48
    %p62 = scmp.eq.s32.totalorder %s14, 3
    %p63 = por %p61, %p62
    %p65 = scmp.ne.s32.totalorder %s48, %s64
    %p66 = scmp.eq.s32.totalorder %s14, 0
    %p67 = por %p65, %p66
    %s68 = ssub.s32 %s8, %s15
    %p69 = scmp.eq.s32.totalorder %s68, 0
    %s71 = sadd.s32 %s70, 1
    %s72 = scalar_select %p69, %s70, %s71
    %p75 = pneg %p69
    %p76 = scmp.eq.s32.totalorder %s8, 3
    %p77 = por %p75, %p76
    %p78 = scmp.ne.s32.totalorder %s70, %s73
    %p79 = scmp.eq.s32.totalorder %s8, 0
    %p80 = por %p78, %p79
    %p81 = scmp.ne.s32.totalorder %s70, %s73
    %p82 = scmp.eq.s32.totalorder %s13, 3
    %p83 = por %p81, %p82
    %p84 = scmp.ne.s32.totalorder %s73, %s74
    %p85 = scmp.eq.s32.totalorder %s13, 0
    %p86 = por %p84, %p85
    %p87 = scmp.ne.s32.totalorder %s73, %s74
    %p88 = scmp.eq.s32.totalorder %s14, 3
    %p89 = por %p87, %p88
    %p91 = scmp.ne.s32.totalorder %s74, %s90
    %p92 = scmp.eq.s32.totalorder %s14, 0
    %p93 = por %p91, %p92
    %p94 = scmp.le.s32.totalorder 1, %s8
    %p95 = scmp.lt.s32.totalorder %s8, 5
    %p96 = pnand %p94, %p95
    %p97 = pneg %p96
    // Predicated region
    $region9: #{esim_forward.15} parent=5 // pred_check
      _
    $region10: #{esim_forward.15} parent=5 // pred_check_branch
      %99 = sbr.rel (%p96) target = $region12
    $region11: #{esim_forward.15} parent=5 // pred_region
      %s100 = ssub.s32 %s8, 1
    $region12: #{esim_forward.15} parent=5 // pred_fallthru
      _
    %p101 = scmp.lt.s32.totalorder %s8, 4
    // Predicated region
    $region13: #{esim_forward.15} parent=5 // pred_check
      %p102 = pneg %p101
    $region14: #{esim_forward.15} parent=5 // pred_check_branch
      %104 = sbr.rel (%p102) target = $region16
    $region15: #{esim_forward.15} parent=5 // pred_region
      // Predicated region
      $region17: #{esim_forward.15} parent=15 // pred_check
        %p105 = pneg %p28
      $region18: #{esim_forward.15} parent=15 // pred_check_branch
        %107 = sbr.rel (%p105) target = $region20
      $region19: #{esim_forward.15} parent=15 // pred_region
        %p108 = scmp.lt.s32.totalorder %s8, 3
        %s109 = scalar_select %p108, %s8, 3
        %s110 = smul.addr %s109, 8
        %s111 = scalar_lea.vmem %s0, %s110
      $region20: #{esim_forward.15} parent=15 // pred_fallthru
        _
      // Predicated region
      $region21: #{esim_forward.15} parent=15 // pred_check
        %p112 = pneg %p54
      $region22: #{esim_forward.15} parent=15 // pred_check_branch
        %114 = sbr.rel (%p112) target = $region24
      $region23: #{esim_forward.15} parent=15 // pred_region
        %p115 = scmp.lt.s32.totalorder %s8, 3
        %s116 = scalar_select %p115, %s8, 3
        %s117 = smul.addr %s116, 8
        %s118 = scalar_lea.vmem %s1, %s117
      $region24: #{esim_forward.15} parent=15 // pred_fallthru
        _
    $region16: #{esim_forward.15} parent=5 // pred_fallthru
      _
    %p119 = scmp.le.s32.totalorder 1, %s8
    %p120 = scmp.lt.s32.totalorder %s8, 5
    %p121 = pnand %p119, %p120
    %p122 = pneg %p121
    // Predicated region
    $region25: #{esim_forward.15} parent=5 // pred_check
      _
    $region26: #{esim_forward.15} parent=5 // pred_check_branch
      %124 = sbr.rel (%p121) target = $region28
    $region27: #{esim_forward.15} parent=5 // pred_region
      %s125 = ssub.s32 %s8, 1
      %p126 = scmp.lt.s32.totalorder %s13, 3
      %s127 = scalar_select %p126, %s13, 3
      %s128 = smul.addr %s127, 8
      %s129 = scalar_lea.vmem %s0, %s128
      %p130 = pneg %p34
      %p131 = pneg %p31
      %p132 = scmp.lt.s32.totalorder %s13, 3
      %s133 = scalar_select %p132, %s13, 3
      %s134 = smul.addr %s133, 8
      %s135 = scalar_lea.vmem %s1, %s134
      %p136 = pneg %p60
      %p137 = pneg %p57
      %p138 = pneg %p86
      %p139 = pneg %p83
      %p140 = scmp.lt.s32.totalorder %s13, 3
      %s141 = scalar_select %p140, %s13, 3
      %s142 = scalar_lea.vmem %s2, %s141
      %p143 = scmp.lt.s32.totalorder %s13, 3
      %s144 = scalar_select %p143, %s13, 3
      %s145 = smul.addr %s144, 8
      %s146 = scalar_lea.vmem %s0, %s145
      %p147 = scmp.lt.s32.totalorder %s13, 3
      %s148 = scalar_select %p147, %s13, 3
      %s149 = smul.addr %s148, 8
      %s150 = scalar_lea.vmem %s1, %s149
      %p151 = scmp.lt.s32.totalorder %s13, 3
      %s152 = scalar_select %p151, %s13, 3
      %s153 = scalar_lea.vmem %s2, %s152
      %v154 = vld [vmem:[%s146] sm:$0xff]
      %v155 = vld [vmem:[%s150] sm:$0xff]
      %vm156 = vcmask 7168
      %v157 = vsel %vm156, %v155, 0.0
      %v158 = vrot.slane %v157, 4
      %v159 = vadd.f32 %v157, %v158
      %v160 = vrot.slane %v159, 2
      %v161 = vadd.f32 %v159, %v160
      %v162 = vrot.slane %v161, 1
      %v163 = vadd.f32 %v161, %v162
      %v164 = vmax.f32 %v163, 1.0
      %166 = vset.pattern.permute.xlu0 0
      %167 = vperm.xlu0 %166, %v155
      %v168 = vpop.permute.xlu0 %167
      %v170 = vmul.f32 %v154, %v168
      %vm171 = vcmask 523264
      %v172 = vsel %vm171, %v170, 0.0
      %v173 = vrot.slane %v172, 4
      %v174 = vadd.f32 %v172, %v173
      %v175 = vrot.slane %v174, 2
      %v176 = vadd.f32 %v174, %v175
      %v177 = vrot.slane %v176, 1
      %v178 = vadd.f32 %v176, %v177
      %180 = vset.pattern.permute.xlu0 0
      %181 = vperm.xlu0 %180, %v164
      %v182 = vpop.permute.xlu0 %181
      %v184 = vrcp.pop %v182
      %v185 = vmul.f32 %v178, %v184
      %vm186 = vcmp.gt.f32.partialorder %v155, 0.0
      %v187 = vsel %vm186, 1, 0
      %188 = vset.pattern.permute.xlu0 0
      %189 = vperm.xlu0 %188, %v187
      %v190 = vpop.permute.xlu0 %189
      %vm191 = vcmp.eq.s32.totalorder %v190, 1
      %v192 = vsel %vm191, %v154, -10000000.0
      %v193 = vsel %vm171, %v192, -inf
      %v194 = vrot.slane %v193, 4
      %v195 = vmax.f32 %v193, %v194
      %v196 = vrot.slane %v195, 2
      %v197 = vmax.f32 %v195, %v196
      %v198 = vrot.slane %v197, 1
      %v199 = vmax.f32 %v197, %v198
      %vm200 = vcmask 516096
      %201 = vst.msk [vmem:[%s153] sm:$0x1] %vm200, %v185
      %203 = vrot.lane.b32.xlu0 %v199, 64
      %v204 = vpop.permute.xlu0 %203
      %vm206 = vcmask 1040896
      %207 = vst.msk [vmem:[%s153] sm:$0x1] %vm206, %v204
      %p208 = scmp.lt.s32.totalorder %s13, 3
      %s209 = scalar_select %p208, %s13, 3
      %s210 = scalar_lea.vmem %s2, %s209
      // Predicated region
      $region29: #{esim_forward.15} parent=27 // pred_check
        %p211 = pneg %p83
      $region30: #{esim_forward.15} parent=27 // pred_check_branch
        %213 = sbr.rel (%p211) target = $region32
      $region31: #{esim_forward.15} parent=27 // pred_region
        _
      $region32: #{esim_forward.15} parent=27 // pred_fallthru
        _
    $region28: #{esim_forward.15} parent=5 // pred_fallthru
      _
    %p214 = scmp.le.s32.totalorder 2, %s8
    // Predicated region
    $region33: #{esim_forward.15} parent=5 // pred_check
      %p215 = pneg %p214
    $region34: #{esim_forward.15} parent=5 // pred_check_branch
      %217 = sbr.rel (%p215) target = $region36
    $region35: #{esim_forward.15} parent=5 // pred_region
      %s218 = ssub.s32 %s8, 2
      // Predicated region
      $region37: #{esim_forward.15} parent=35 // pred_check
        %p219 = pneg %p89
      $region38: #{esim_forward.15} parent=35 // pred_check_branch
        %221 = sbr.rel (%p219) target = $region40
      $region39: #{esim_forward.15} parent=35 // pred_region
        %p222 = scmp.lt.s32.totalorder %s14, 3
        %s223 = scalar_select %p222, %s14, 3
        %s224 = scalar_lea.vmem %s2, %s223
      $region40: #{esim_forward.15} parent=35 // pred_fallthru
        _
    $region36: #{esim_forward.15} parent=5 // pred_fallthru
      _
  $region6: #{esim_forward.15} parent=0 // loop_footer
    %s12 = sadd.s32 1, %s8
  $region7: #{esim_forward.15} parent=0 // loop_footer_branch
    %7 = sbr.rel target = $region3
  $region8: #{esim_forward.15} parent=0 // loop_exit
    _

// kernel: esim_forward.16
$region0: #{esim_forward.16}
  #allocation0 [shape = 'u32[]', space=smem, size = 0x4, offset = 0x4, fixed_abs, tag = 'smem constant byte address 0x4 - core index']
  #allocation1 [shape = 'u32[144,128]{1,0:T(1,128)}', space=vmem, size = 0x12000, scoped, tag = 'internal scratch']
  %s0 = inlined_call_operand.vmem [shape: f32[8,256], index: 0, kind: input, shape index: {}]
  %s1 = inlined_call_operand.vmem [shape: f32[256,32], index: 1, kind: input, shape index: {}]
  %s2 = inlined_call_operand.vmem [shape: f32[1,32], index: 2, kind: input, shape index: {}]
  %s3 = inlined_call_operand.vmem [shape: f32[8,32], index: 3, kind: output, shape index: {}]
  %s4 = sld [smem:[#allocation0]]
  $region22: #{esim_forward.16} parent=0
    _
  %s6 = ssub.s32 1, %s4
  %s7 = scalar_select 0, %s6, %s4
  // Predicated region
  $region2: #{esim_forward.16} parent=0 // pred_check
    _
  $region3: #{esim_forward.16} parent=0 // pred_check_branch
    %9 = sbr.rel (0) target = $region5
  $region4: #{esim_forward.16} parent=0 // pred_region
    _
  $region5: #{esim_forward.16} parent=0 // pred_fallthru
    _
  // Predicated region
  $region6: #{esim_forward.16} parent=0 // pred_check
    _
  $region7: #{esim_forward.16} parent=0 // pred_check_branch
    %11 = sbr.rel (0) target = $region9
  $region8: #{esim_forward.16} parent=0 // pred_region
    _
  $region9: #{esim_forward.16} parent=0 // pred_fallthru
    _
  // Predicated region
  $region10: #{esim_forward.16} parent=0 // pred_check
    _
  $region11: #{esim_forward.16} parent=0 // pred_check_branch
    %13 = sbr.rel (0) target = $region13
  $region12: #{esim_forward.16} parent=0 // pred_region
    _
  $region13: #{esim_forward.16} parent=0 // pred_fallthru
    _
  %v14 = vld [vmem:[%s0] sm:$0xff]
  %v15 = vld [vmem:[%s0 + $0x8] sm:$0xff]
  %v16 = vld [vmem:[%s1] sm:$0xff]
  %v17 = vld [vmem:[%s1 + $0x8] sm:$0xff]
  %v18 = vld [vmem:[%s1 + $0x10] sm:$0xff]
  %v19 = vld [vmem:[%s1 + $0x18] sm:$0xff]
  %v20 = vld [vmem:[%s1 + $0x20] sm:$0xff]
  %v21 = vld [vmem:[%s1 + $0x28] sm:$0xff]
  %v22 = vld [vmem:[%s1 + $0x30] sm:$0xff]
  %v23 = vld [vmem:[%s1 + $0x38] sm:$0xff]
  %v24 = vld [vmem:[%s1 + $0x40] sm:$0xff]
  %v25 = vld [vmem:[%s1 + $0x48] sm:$0xff]
  %v26 = vld [vmem:[%s1 + $0x50] sm:$0xff]
  %v27 = vld [vmem:[%s1 + $0x58] sm:$0xff]
  %v28 = vld [vmem:[%s1 + $0x60] sm:$0xff]
  %v29 = vld [vmem:[%s1 + $0x68] sm:$0xff]
  %v30 = vld [vmem:[%s1 + $0x70] sm:$0xff]
  %v31 = vld [vmem:[%s1 + $0x78] sm:$0xff]
  %v32 = vld [vmem:[%s1 + $0x80] sm:$0xff]
  %v33 = vld [vmem:[%s1 + $0x88] sm:$0xff]
  %v34 = vld [vmem:[%s1 + $0x90] sm:$0xff]
  %v35 = vld [vmem:[%s1 + $0x98] sm:$0xff]
  %v36 = vld [vmem:[%s1 + $0xa0] sm:$0xff]
  %v37 = vld [vmem:[%s1 + $0xa8] sm:$0xff]
  %v38 = vld [vmem:[%s1 + $0xb0] sm:$0xff]
  %v39 = vld [vmem:[%s1 + $0xb8] sm:$0xff]
  %v40 = vld [vmem:[%s1 + $0xc0] sm:$0xff]
  %v41 = vld [vmem:[%s1 + $0xc8] sm:$0xff]
  %v42 = vld [vmem:[%s1 + $0xd0] sm:$0xff]
  %v43 = vld [vmem:[%s1 + $0xd8] sm:$0xff]
  %v44 = vld [vmem:[%s1 + $0xe0] sm:$0xff]
  %v45 = vld [vmem:[%s1 + $0xe8] sm:$0xff]
  %v46 = vld [vmem:[%s1 + $0xf0] sm:$0xff]
  %v47 = vld [vmem:[%s1 + $0xf8] sm:$0xff]
  %v48 = vld [vmem:[%s2] sm:$0x1]
  %v50 = vlaneseq
  %v51 = vshrl.u32 %v50, 7
  %v52 = vsub.s32 0, %v51
  %v53 = vrot.slane %v48, %v52
  %55 = vmatprep.subr.mxu0 0.0
  %56 = vmatpush1.msra.mxu0 %v31
  %57 = vmatprep.subr.mxu0 0.0
  %58 = vmatpush1.msra.mxu0 %v30
  %59 = vmatprep.subr.mxu0 0.0
  %60 = vmatpush1.msra.mxu0 %v29
  %61 = vmatprep.subr.mxu0 0.0
  %62 = vmatpush1.msra.mxu0 %v28
  %63 = vmatprep.subr.mxu0 0.0
  %64 = vmatpush1.msra.mxu0 %v27
  %65 = vmatprep.subr.mxu0 0.0
  %66 = vmatpush1.msra.mxu0 %v26
  %67 = vmatprep.subr.mxu0 0.0
  %68 = vmatpush1.msra.mxu0 %v25
  %69 = vmatprep.subr.mxu0 0.0
  %70 = vmatpush1.msra.mxu0 %v24
  %71 = vmatprep.subr.mxu0 0.0
  %72 = vmatpush1.msra.mxu0 %v23
  %73 = vmatprep.subr.mxu0 0.0
  %74 = vmatpush1.msra.mxu0 %v22
  %75 = vmatprep.subr.mxu0 0.0
  %76 = vmatpush1.msra.mxu0 %v21
  %77 = vmatprep.subr.mxu0 0.0
  %78 = vmatpush1.msra.mxu0 %v20
  %79 = vmatprep.subr.mxu0 0.0
  %80 = vmatpush1.msra.mxu0 %v19
  %81 = vmatprep.subr.mxu0 0.0
  %82 = vmatpush1.msra.mxu0 %v18
  %83 = vmatprep.subr.mxu0 0.0
  %84 = vmatpush1.msra.mxu0 %v17
  %85 = vmatprep.subr.mxu0 0.0
  %86 = vmatpush1.msra.mxu0 %v16
  %87 = vmatprep.subr.mxu0 0.0
  %88 = vmatpush2.msra.mxu0 %v47
  %89 = vmatprep.subr.mxu0 0.0
  %90 = vmatpush2.msra.mxu0 %v46
  %91 = vmatprep.subr.mxu0 0.0
  %92 = vmatpush2.msra.mxu0 %v45
  %93 = vmatprep.subr.mxu0 0.0
  %94 = vmatpush2.msra.mxu0 %v44
  %95 = vmatprep.subr.mxu0 0.0
  %96 = vmatpush2.msra.mxu0 %v43
  %97 = vmatprep.subr.mxu0 0.0
  %98 = vmatpush2.msra.mxu0 %v42
  %99 = vmatprep.subr.mxu0 0.0
  %100 = vmatpush2.msra.mxu0 %v41
  %101 = vmatprep.subr.mxu0 0.0
  %102 = vmatpush2.msra.mxu0 %v40
  %103 = vmatprep.subr.mxu0 0.0
  %104 = vmatpush2.msra.mxu0 %v39
  %105 = vmatprep.subr.mxu0 0.0
  %106 = vmatpush2.msra.mxu0 %v38
  %107 = vmatprep.subr.mxu0 0.0
  %108 = vmatpush2.msra.mxu0 %v37
  %109 = vmatprep.subr.mxu0 0.0
  %110 = vmatpush2.msra.mxu0 %v36
  %111 = vmatprep.subr.mxu0 0.0
  %112 = vmatpush2.msra.mxu0 %v35
  %113 = vmatprep.subr.mxu0 0.0
  %114 = vmatpush2.msra.mxu0 %v34
  %115 = vmatprep.subr.mxu0 0.0
  %116 = vmatpush2.msra.mxu0 %v33
  %117 = vmatprep.subr.mxu0 0.0
  %118 = vmatpush2.msra.mxu0 %v32
  %119 = vmatprep.mubr.f32.mxu0 %v15
  %120 = vmatmul.mubr.f32.gmra.mxu0 %v14
  %v121 = vpop.f32.mrf.mxu0
  %v122 = vadd.f32 %v53, %v121
  %v123 = vpop.f32.mrf.mxu0
  %124 = vdwg.mxu0
  %v125 = vtanh.pop %v122
  %vm126 = vcmask 261120
  %127 = vst.msk [vmem:[%s3] sm:$0xff] %vm126, %v125
  // Predicated region
  $region14: #{esim_forward.16} parent=0 // pred_check
    _
  $region15: #{esim_forward.16} parent=0 // pred_check_branch
    %129 = sbr.rel (0) target = $region17
  $region16: #{esim_forward.16} parent=0 // pred_region
    _
  $region17: #{esim_forward.16} parent=0 // pred_fallthru
    _
  // Predicated region
  $region18: #{esim_forward.16} parent=0 // pred_check
    _
  $region19: #{esim_forward.16} parent=0 // pred_check_branch
    %131 = sbr.rel (0) target = $region21
  $region20: #{esim_forward.16} parent=0 // pred_region
    _
  $region21: #{esim_forward.16} parent=0 // pred_fallthru
    _

// kernel: esim_forward.17
$region0: #{esim_forward.17}
  #allocation0 [shape = 'u32[]', space=smem, size = 0x4, offset = 0x4, fixed_abs, tag = 'smem constant byte address 0x4 - core index']
  #allocation1 [shape = 'u32[144,128]{1,0:T(1,128)}', space=vmem, size = 0x12000, scoped, tag = 'internal scratch']
  %s0 = inlined_call_operand.vmem [shape: f32[8,32], index: 0, kind: input, shape index: {}]
  %s1 = inlined_call_operand.vmem [shape: f32[32,3], index: 1, kind: input, shape index: {}]
  %s2 = inlined_call_operand.vmem [shape: f32[1,3], index: 2, kind: input, shape index: {}]
  %s3 = inlined_call_operand.vmem [shape: f32[8,3], index: 3, kind: output, shape index: {}]
  %s4 = sld [smem:[#allocation0]]
  $region22: #{esim_forward.17} parent=0
    _
  %s6 = ssub.s32 1, %s4
  %s7 = scalar_select 0, %s6, %s4
  // Predicated region
  $region2: #{esim_forward.17} parent=0 // pred_check
    _
  $region3: #{esim_forward.17} parent=0 // pred_check_branch
    %9 = sbr.rel (0) target = $region5
  $region4: #{esim_forward.17} parent=0 // pred_region
    _
  $region5: #{esim_forward.17} parent=0 // pred_fallthru
    _
  // Predicated region
  $region6: #{esim_forward.17} parent=0 // pred_check
    _
  $region7: #{esim_forward.17} parent=0 // pred_check_branch
    %11 = sbr.rel (0) target = $region9
  $region8: #{esim_forward.17} parent=0 // pred_region
    _
  $region9: #{esim_forward.17} parent=0 // pred_fallthru
    _
  // Predicated region
  $region10: #{esim_forward.17} parent=0 // pred_check
    _
  $region11: #{esim_forward.17} parent=0 // pred_check_branch
    %13 = sbr.rel (0) target = $region13
  $region12: #{esim_forward.17} parent=0 // pred_region
    _
  $region13: #{esim_forward.17} parent=0 // pred_fallthru
    _
  %v14 = vld [vmem:[%s0] sm:$0xff]
  %v15 = vld [vmem:[%s1] sm:$0xff]
  %v16 = vld [vmem:[%s1 + $0x8] sm:$0xff]
  %v17 = vld [vmem:[%s1 + $0x10] sm:$0xff]
  %v18 = vld [vmem:[%s1 + $0x18] sm:$0xff]
  %v19 = vld [vmem:[%s2] sm:$0x1]
  %v21 = vlaneseq
  %v22 = vshrl.u32 %v21, 7
  %v23 = vsub.s32 0, %v22
  %v24 = vrot.slane %v19, %v23
  %vm26 = vcmask 261120
  %v28 = vsel %vm26, %v14, 0
  %30 = vmatprep.subr.mxu0 0.0
  %31 = vmatpush1.msra.mxu0 0.0
  %32 = vmatprep.subr.mxu0 0.0
  %33 = vmatpush1.msra.mxu0 0.0
  %34 = vmatprep.subr.mxu0 0.0
  %35 = vmatpush1.msra.mxu0 0.0
  %36 = vmatprep.subr.mxu0 0.0
  %37 = vmatpush1.msra.mxu0 0.0
  %38 = vmatprep.subr.mxu0 0.0
  %39 = vmatpush1.msra.mxu0 0.0
  %40 = vmatprep.subr.mxu0 0.0
  %41 = vmatpush1.msra.mxu0 0.0
  %42 = vmatprep.subr.mxu0 0.0
  %43 = vmatpush1.msra.mxu0 0.0
  %44 = vmatprep.subr.mxu0 0.0
  %45 = vmatpush1.msra.mxu0 0.0
  %46 = vmatprep.subr.mxu0 0.0
  %47 = vmatpush1.msra.mxu0 0.0
  %48 = vmatprep.subr.mxu0 0.0
  %49 = vmatpush1.msra.mxu0 0.0
  %50 = vmatprep.subr.mxu0 0.0
  %51 = vmatpush1.msra.mxu0 0.0
  %52 = vmatprep.subr.mxu0 0.0
  %53 = vmatpush1.msra.mxu0 0.0
  %54 = vmatprep.subr.mxu0 0.0
  %55 = vmatpush1.msra.mxu0 %v18
  %56 = vmatprep.subr.mxu0 0.0
  %57 = vmatpush1.msra.mxu0 %v17
  %58 = vmatprep.subr.mxu0 0.0
  %59 = vmatpush1.msra.mxu0 %v16
  %60 = vmatprep.subr.mxu0 0.0
  %61 = vmatpush1.msra.mxu0 %v15
  %62 = vmatprep.subr.mxu0 0.0
  %63 = vmatpush2.msra.mxu0 0.0
  %64 = vmatprep.subr.mxu0 0.0
  %65 = vmatpush2.msra.mxu0 0.0
  %66 = vmatprep.subr.mxu0 0.0
  %67 = vmatpush2.msra.mxu0 0.0
  %68 = vmatprep.subr.mxu0 0.0
  %69 = vmatpush2.msra.mxu0 0.0
  %70 = vmatprep.subr.mxu0 0.0
  %71 = vmatpush2.msra.mxu0 0.0
  %72 = vmatprep.subr.mxu0 0.0
  %73 = vmatpush2.msra.mxu0 0.0
  %74 = vmatprep.subr.mxu0 0.0
  %75 = vmatpush2.msra.mxu0 0.0
  %76 = vmatprep.subr.mxu0 0.0
  %77 = vmatpush2.msra.mxu0 0.0
  %78 = vmatprep.subr.mxu0 0.0
  %79 = vmatpush2.msra.mxu0 0.0
  %80 = vmatprep.subr.mxu0 0.0
  %81 = vmatpush2.msra.mxu0 0.0
  %82 = vmatprep.subr.mxu0 0.0
  %83 = vmatpush2.msra.mxu0 0.0
  %84 = vmatprep.subr.mxu0 0.0
  %85 = vmatpush2.msra.mxu0 0.0
  %86 = vmatprep.subr.mxu0 0.0
  %87 = vmatpush2.msra.mxu0 0.0
  %88 = vmatprep.subr.mxu0 0.0
  %89 = vmatpush2.msra.mxu0 0.0
  %90 = vmatprep.subr.mxu0 0.0
  %91 = vmatpush2.msra.mxu0 0.0
  %92 = vmatprep.subr.mxu0 0.0
  %93 = vmatpush2.msra.mxu0 0.0
  %94 = vmatprep.mubr.f32.mxu0 0.0
  %95 = vmatmul.mubr.f32.gmra.mxu0 %v28
  %v96 = vpop.f32.mrf.mxu0
  %v97 = vadd.f32 %v24, %v96
  %v98 = vpop.f32.mrf.mxu0
  %99 = vdwg.mxu0
  %vm100 = vcmask 23552
  %101 = vst.msk [vmem:[%s3] sm:$0xff] %vm100, %v97
  // Predicated region
  $region14: #{esim_forward.17} parent=0 // pred_check
    _
  $region15: #{esim_forward.17} parent=0 // pred_check_branch
    %103 = sbr.rel (0) target = $region17
  $region16: #{esim_forward.17} parent=0 // pred_region
    _
  $region17: #{esim_forward.17} parent=0 // pred_fallthru
    _
  // Predicated region
  $region18: #{esim_forward.17} parent=0 // pred_check
    _
  $region19: #{esim_forward.17} parent=0 // pred_check_branch
    %105 = sbr.rel (0) target = $region21
  $region20: #{esim_forward.17} parent=0 // pred_region
    _
  $region21: #{esim_forward.17} parent=0 // pred_fallthru
    _

</llo_original>
